<compile_context>
chip_gen: v7x
topology: tpu7x:2x2x1
jax: 0.10.0
libtpu: 0.0.40
codegen_flags: <defaults>
</compile_context>

<pallas_src>
import jax
import jax.numpy as jnp
from jax import lax
from jax.experimental import pallas as pl
from jax.experimental.pallas import tpu as pltpu

# Model constants from the PyTorch module.
C_IN, C_OUT, N_CLS = 3, 16, 10
KH = KW = 3


def test_model_forward(x_nchw, w_conv, b_conv, w_fc, b_fc):
    """Default forward of TestModel: classifier(features(x)) -> (N, 10) logits."""
    # TODO(synk): the `last`/`freeze` flags of the PyTorch forward are plain Python
    # control flow (return pooled features instead); not a kernel concern.
    n, c, h, w = x_nchw.shape
    assert c == C_IN and w_conv.shape == (C_OUT, C_IN, KH, KW)

    hp, wp = h + (KH - 1), w + (KW - 1)        # padded spatial dims (padding=1)
    p = hp * wp                                 # flattened padded positions / image
    max_shift = (KH - 1) * wp + (KW - 1)        # largest tap lane offset (38)
    pwide = -(-(p + max_shift) // 128) * 128    # 128-aligned per-image lane segment
    hw = h * w

    # Images per grid step: batch along lanes, but keep >= 2 grid steps when
    # possible so both v7x TensorCores receive work.
    bsz = next(b for b in (8, 4, 2, 1) if n >= 2 * b) if n >= 2 else 1
    n_pad = -(-n // bsz) * bsz
    nb = n_pad // bsz
    wblk = bsz * pwide

    k9c = KH * KW * C_IN          # 27 real contraction rows
    kpad = 32                     # padded K (zero weight columns 27..31)

    # ---------------- host-side prep: reshapes only for x (pad happens on-chip) ----
    x_flat = x_nchw.reshape(n, C_IN, hw).astype(jnp.float32)
    if n_pad != n:
        x_flat = jnp.pad(x_flat, ((0, n_pad - n), (0, 0), (0, 0)))
    x_blk = x_flat.reshape(nb, bsz, C_IN, hw)

    # Conv weights as one (OC, 32) bf16 matrix, columns ordered (tap, channel).
    w27 = w_conv.transpose(0, 2, 3, 1).reshape(C_OUT, k9c)
    w27 = jnp.pad(w27, ((0, 0), (0, kpad - k9c))).astype(jnp.bfloat16)
    b1 = b_conv.reshape(C_OUT, 1).astype(jnp.float32)

    # Block-diagonal pooling matrix: validity mask, 1/(H*W) scale and the
    # per-image lane reduction fused into a single MXU mat-vec.
    pos = jnp.arange(pwide, dtype=jnp.int32)
    valid = (pos < p) & (pos // wp < h) & (pos % wp < w)
    mask1d = jnp.where(valid, 1.0 / hw, 0.0).astype(jnp.float32)          # (pwide,)
    mpool = (mask1d[None, :, None] *
             jnp.eye(bsz, dtype=jnp.float32)[:, None, :]).reshape(wblk, bsz)

    w2 = w_fc.astype(jnp.float32)                       # (10, 16)
    b2 = b_fc.reshape(N_CLS, 1).astype(jnp.float32)     # (10, 1)

    # Static lane offsets of the 3x3 taps in flattened padded coordinates.
    shifts = tuple(i * wp + j for i in range(KH) for j in range(KW))

    def kernel(x_ref, w27_ref, b1_ref, mp_ref, w2_ref, b2_ref, o_ref,
               pad_ref, pat_ref):
        # 1) Zero the padded-image scratch every step (borders / slack lanes must
        #    be zero and scratch persists across grid steps & per-core splits).
        pad_ref[...] = jnp.zeros(pad_ref.shape, pad_ref.dtype)

        # 2) In-kernel zero padding: scatter raw image rows into the padded layout.
        for b in range(bsz):
            base = b * pwide
            for r in range(h):
                dst = base + (r + 1) * wp + 1
                pad_ref[:, pl.ds(dst, w)] = x_ref[0, b, :, pl.ds(r * w, w)]

        # 3) Stage the 9 lane-shifted taps into one (32, wblk) patches matrix.
        #    Rows 27..31 are zeroed (their weight columns are zero; keep them finite).
        pat_ref[pl.ds(k9c, kpad - k9c), :] = jnp.zeros((kpad - k9c, wblk), jnp.float32)
        for t, s in enumerate(shifts):
            pat_ref[pl.ds(t * C_IN, C_IN), :] = pad_ref[:, pl.ds(s, wblk)]

        # 4) Single K=32 MXU contraction, bf16 operands, f32 accumulation.
        acc = jnp.dot(w27_ref[...], pat_ref[...].astype(jnp.bfloat16),
                      preferred_element_type=jnp.float32)          # (16, wblk) f32
        conv = jnp.maximum(acc + b1_ref[...], 0.0)                 # bias + ReLU (f32)

        # 5) mask + 1/(H*W) + per-image reduction as one mat-vec, then the classifier.
        pooled = jnp.dot(conv, mp_ref[...],
                         preferred_element_type=jnp.float32)        # (16, B)
        logits = jnp.dot(w2_ref[...], pooled,
                         preferred_element_type=jnp.float32) + b2_ref[...]  # (10, B)
        o_ref[0] = logits          # one (NCLS, B) writeback per B images

    const2 = lambda i: (0, 0)
    out = pl.pallas_call(
        kernel,
        out_shape=jax.ShapeDtypeStruct((nb, N_CLS, bsz), jnp.float32),
        grid=(nb,),
        in_specs=[
            pl.BlockSpec((1, bsz, C_IN, hw), lambda i: (i, 0, 0, 0)),  # B raw images
            pl.BlockSpec((C_OUT, kpad), const2),                        # conv weights (bf16)
            pl.BlockSpec((C_OUT, 1), const2),                           # conv bias
            pl.BlockSpec((wblk, bsz), const2),                          # block-diag pool matrix
            pl.BlockSpec((N_CLS, C_OUT), const2),                       # fc weight
            pl.BlockSpec((N_CLS, 1), const2),                           # fc bias
        ],
        out_specs=pl.BlockSpec((1, N_CLS, bsz), lambda i: (i, 0, 0)),
        scratch_shapes=[
            pltpu.VMEM((C_IN, wblk + 128), jnp.float32),   # padded images (+ tap slack)
            pltpu.VMEM((kpad, wblk), jnp.float32),         # staged patches
        ],
        compiler_params=pltpu.CompilerParams(
            dimension_semantics=("parallel",)),
    )(x_blk, w27, b1, mpool, w2, b2)

    # (nb, 10, B) -> (N, 10); tiny host-side fixup (avoids an in-kernel sub-tile transpose).
    return out.transpose(0, 2, 1).reshape(n_pad, N_CLS)[:n]


if __name__ == "__main__":
    key = jax.random.PRNGKey(0)
    k_x, k_wc, k_bc, k_wf, k_bf = jax.random.split(key, 5)

    N, C, H, W = 8, 3, 16, 16          # N=8 -> 4 images/step, 2 grid steps
    x = jax.random.normal(k_x, (N, C, H, W), dtype=jnp.float32)
    w_conv = jax.random.normal(k_wc, (C_OUT, C_IN, 3, 3), dtype=jnp.float32) * 0.1
    b_conv = jax.random.normal(k_bc, (C_OUT,), dtype=jnp.float32) * 0.1
    w_fc = jax.random.normal(k_wf, (N_CLS, C_OUT), dtype=jnp.float32) * 0.1
    b_fc = jax.random.normal(k_bf, (N_CLS,), dtype=jnp.float32) * 0.1

    fwd = jax.jit(test_model_forward)
    out = jax.block_until_ready(fwd(x, w_conv, b_conv, w_fc, b_fc))
    assert out.shape == (N, N_CLS), out.shape

    # Pure-JAX f32 reference (module semantics).
    ref_conv = lax.conv_general_dilated(
        x, w_conv, window_strides=(1, 1), padding="SAME",
        dimension_numbers=("NCHW", "OIHW", "NCHW"),
        precision=lax.Precision.HIGHEST,
    ) + b_conv[None, :, None, None]
    ref_feat = jnp.mean(jnp.maximum(ref_conv, 0.0), axis=(2, 3))   # (N, 16)
    ref_out = ref_feat @ w_fc.T + b_fc                             # (N, 10)

    err = float(jnp.max(jnp.abs(out - ref_out)))
    # bf16 MXU operands (f32 accumulate) leave a few-1e-4 residual vs. the f32 reference.
    assert jnp.allclose(out, ref_out, atol=2e-3, rtol=2e-3), err
    print("KERNEL_OK")
</pallas_src>

<mosaic_0001>
module attributes {stable_mosaic.version = 11 : i64} {
  func.func @kernel(%arg0: i32, %arg1: memref<1x4x3x256xf32, #tpu.memory_space<vmem>>, %arg2: memref<16x32xbf16, #tpu.memory_space<vmem>>, %arg3: memref<16x1xf32, #tpu.memory_space<vmem>>, %arg4: memref<1536x4xf32, #tpu.memory_space<vmem>>, %arg5: memref<10x16xf32, #tpu.memory_space<vmem>>, %arg6: memref<10x1xf32, #tpu.memory_space<vmem>>, %arg7: memref<1x10x4xf32, #tpu.memory_space<vmem>>, %arg8: memref<3x1664xf32, #tpu.memory_space<vmem>>, %arg9: memref<32x1536xf32, #tpu.memory_space<vmem>>) attributes {dimension_semantics = [#tpu.dimension_semantics<parallel>], iteration_bounds = array<i64: 2>, scalar_prefetch = 0 : i64, scratch_operands = 2 : i64, tpu.core_type = #tpu.core_type<tc>, window_params = [{transform_indices = @transform_0, window_bounds = array<i64: 1, 4, 3, 256>}, {pipeline_mode = #tpu.pipeline_mode<synchronous>, transform_indices = @transform_1, window_bounds = array<i64: 16, 32>}, {pipeline_mode = #tpu.pipeline_mode<synchronous>, transform_indices = @transform_2, window_bounds = array<i64: 16, 1>}, {pipeline_mode = #tpu.pipeline_mode<synchronous>, transform_indices = @transform_3, window_bounds = array<i64: 1536, 4>}, {pipeline_mode = #tpu.pipeline_mode<synchronous>, transform_indices = @transform_4, window_bounds = array<i64: 10, 16>}, {pipeline_mode = #tpu.pipeline_mode<synchronous>, transform_indices = @transform_5, window_bounds = array<i64: 10, 1>}, {transform_indices = @transform_6, window_bounds = array<i64: 1, 10, 4>}]} {
    %cst = arith.constant 0.000000e+00 : f32
    %0 = vector.broadcast %cst : f32 to vector<3x1664xf32>
    %c0 = arith.constant 0 : index
    %c0_0 = arith.constant 0 : index
    %1 = vector.load %arg8[%c0, %c0_0] : memref<3x1664xf32, #tpu.memory_space<vmem>>, vector<3x1664xf32>
    tpu.vector_store %arg8[%c0, %c0_0], %0 {strides = array<i32>} : memref<3x1664xf32, #tpu.memory_space<vmem>>, vector<3x1664xf32>,
    %c0_1 = arith.constant 0 : index
    %c0_2 = arith.constant 0 : index
    %c0_3 = arith.constant 0 : index
    %c0_4 = arith.constant 0 : index
    %2 = vector.load %arg1[%c0_1, %c0_2, %c0_3, %c0_4] : memref<1x4x3x256xf32, #tpu.memory_space<vmem>>, vector<1x1x3x16xf32>
    %3 = vector.shape_cast %2 : vector<1x1x3x16xf32> to vector<3x16xf32>
    %c0_5 = arith.constant 0 : index
    %c19 = arith.constant 19 : index
    %4 = vector.load %arg8[%c0_5, %c19] : memref<3x1664xf32, #tpu.memory_space<vmem>>, vector<3x16xf32>
    tpu.vector_store %arg8[%c0_5, %c19], %3 {strides = array<i32>} : memref<3x1664xf32, #tpu.memory_space<vmem>>, vector<3x16xf32>,
    %c0_6 = arith.constant 0 : index
    %c0_7 = arith.constant 0 : index
    %c0_8 = arith.constant 0 : index
    %c16 = arith.constant 16 : index
    %5 = vector.load %arg1[%c0_6, %c0_7, %c0_8, %c16] : memref<1x4x3x256xf32, #tpu.memory_space<vmem>>, vector<1x1x3x16xf32>
    %6 = vector.shape_cast %5 : vector<1x1x3x16xf32> to vector<3x16xf32>
    %c0_9 = arith.constant 0 : index
    %c37 = arith.constant 37 : index
    %7 = vector.load %arg8[%c0_9, %c37] : memref<3x1664xf32, #tpu.memory_space<vmem>>, vector<3x16xf32>
    tpu.vector_store %arg8[%c0_9, %c37], %6 {strides = array<i32>} : memref<3x1664xf32, #tpu.memory_space<vmem>>, vector<3x16xf32>,
    %c0_10 = arith.constant 0 : index
    %c0_11 = arith.constant 0 : index
    %c0_12 = arith.constant 0 : index
    %c32 = arith.constant 32 : index
    %8 = vector.load %arg1[%c0_10, %c0_11, %c0_12, %c32] : memref<1x4x3x256xf32, #tpu.memory_space<vmem>>, vector<1x1x3x16xf32>
    %9 = vector.shape_cast %8 : vector<1x1x3x16xf32> to vector<3x16xf32>
    %c0_13 = arith.constant 0 : index
    %c55 = arith.constant 55 : index
    %10 = vector.load %arg8[%c0_13, %c55] : memref<3x1664xf32, #tpu.memory_space<vmem>>, vector<3x16xf32>
    tpu.vector_store %arg8[%c0_13, %c55], %9 {strides = array<i32>} : memref<3x1664xf32, #tpu.memory_space<vmem>>, vector<3x16xf32>,
    %c0_14 = arith.constant 0 : index
    %c0_15 = arith.constant 0 : index
    %c0_16 = arith.constant 0 : index
    %c48 = arith.constant 48 : index
    %11 = vector.load %arg1[%c0_14, %c0_15, %c0_16, %c48] : memref<1x4x3x256xf32, #tpu.memory_space<vmem>>, vector<1x1x3x16xf32>
    %12 = vector.shape_cast %11 : vector<1x1x3x16xf32> to vector<3x16xf32>
    %c0_17 = arith.constant 0 : index
    %c73 = arith.constant 73 : index
    %13 = vector.load %arg8[%c0_17, %c73] : memref<3x1664xf32, #tpu.memory_space<vmem>>, vector<3x16xf32>
    tpu.vector_store %arg8[%c0_17, %c73], %12 {strides = array<i32>} : memref<3x1664xf32, #tpu.memory_space<vmem>>, vector<3x16xf32>,
    %c0_18 = arith.constant 0 : index
    %c0_19 = arith.constant 0 : index
    %c0_20 = arith.constant 0 : index
    %c64 = arith.constant 64 : index
    %14 = vector.load %arg1[%c0_18, %c0_19, %c0_20, %c64] : memref<1x4x3x256xf32, #tpu.memory_space<vmem>>, vector<1x1x3x16xf32>
    %15 = vector.shape_cast %14 : vector<1x1x3x16xf32> to vector<3x16xf32>
    %c0_21 = arith.constant 0 : index
    %c91 = arith.constant 91 : index
    %16 = vector.load %arg8[%c0_21, %c91] : memref<3x1664xf32, #tpu.memory_space<vmem>>, vector<3x16xf32>
    tpu.vector_store %arg8[%c0_21, %c91], %15 {strides = array<i32>} : memref<3x1664xf32, #tpu.memory_space<vmem>>, vector<3x16xf32>,
    %c0_22 = arith.constant 0 : index
    %c0_23 = arith.constant 0 : index
    %c0_24 = arith.constant 0 : index
    %c80 = arith.constant 80 : index
    %17 = vector.load %arg1[%c0_22, %c0_23, %c0_24, %c80] : memref<1x4x3x256xf32, #tpu.memory_space<vmem>>, vector<1x1x3x16xf32>
    %18 = vector.shape_cast %17 : vector<1x1x3x16xf32> to vector<3x16xf32>
    %c0_25 = arith.constant 0 : index
    %c109 = arith.constant 109 : index
    %19 = vector.load %arg8[%c0_25, %c109] : memref<3x1664xf32, #tpu.memory_space<vmem>>, vector<3x16xf32>
    tpu.vector_store %arg8[%c0_25, %c109], %18 {strides = array<i32>} : memref<3x1664xf32, #tpu.memory_space<vmem>>, vector<3x16xf32>,
    %c0_26 = arith.constant 0 : index
    %c0_27 = arith.constant 0 : index
    %c0_28 = arith.constant 0 : index
    %c96 = arith.constant 96 : index
    %20 = vector.load %arg1[%c0_26, %c0_27, %c0_28, %c96] : memref<1x4x3x256xf32, #tpu.memory_space<vmem>>, vector<1x1x3x16xf32>
    %21 = vector.shape_cast %20 : vector<1x1x3x16xf32> to vector<3x16xf32>
    %c0_29 = arith.constant 0 : index
    %c127 = arith.constant 127 : index
    %22 = vector.load %arg8[%c0_29, %c127] : memref<3x1664xf32, #tpu.memory_space<vmem>>, vector<3x16xf32>
    tpu.vector_store %arg8[%c0_29, %c127], %21 {strides = array<i32>} : memref<3x1664xf32, #tpu.memory_space<vmem>>, vector<3x16xf32>,
    %c0_30 = arith.constant 0 : index
    %c0_31 = arith.constant 0 : index
    %c0_32 = arith.constant 0 : index
    %c112 = arith.constant 112 : index
    %23 = vector.load %arg1[%c0_30, %c0_31, %c0_32, %c112] : memref<1x4x3x256xf32, #tpu.memory_space<vmem>>, vector<1x1x3x16xf32>
    %24 = vector.shape_cast %23 : vector<1x1x3x16xf32> to vector<3x16xf32>
    %c0_33 = arith.constant 0 : index
    %c145 = arith.constant 145 : index
    %25 = vector.load %arg8[%c0_33, %c145] : memref<3x1664xf32, #tpu.memory_space<vmem>>, vector<3x16xf32>
    tpu.vector_store %arg8[%c0_33, %c145], %24 {strides = array<i32>} : memref<3x1664xf32, #tpu.memory_space<vmem>>, vector<3x16xf32>,
    %c0_34 = arith.constant 0 : index
    %c0_35 = arith.constant 0 : index
    %c0_36 = arith.constant 0 : index
    %c128 = arith.constant 128 : index
    %26 = vector.load %arg1[%c0_34, %c0_35, %c0_36, %c128] : memref<1x4x3x256xf32, #tpu.memory_space<vmem>>, vector<1x1x3x16xf32>
    %27 = vector.shape_cast %26 : vector<1x1x3x16xf32> to vector<3x16xf32>
    %c0_37 = arith.constant 0 : index
    %c163 = arith.constant 163 : index
    %28 = vector.load %arg8[%c0_37, %c163] : memref<3x1664xf32, #tpu.memory_space<vmem>>, vector<3x16xf32>
    tpu.vector_store %arg8[%c0_37, %c163], %27 {strides = array<i32>} : memref<3x1664xf32, #tpu.memory_space<vmem>>, vector<3x16xf32>,
    %c0_38 = arith.constant 0 : index
    %c0_39 = arith.constant 0 : index
    %c0_40 = arith.constant 0 : index
    %c144 = arith.constant 144 : index
    %29 = vector.load %arg1[%c0_38, %c0_39, %c0_40, %c144] : memref<1x4x3x256xf32, #tpu.memory_space<vmem>>, vector<1x1x3x16xf32>
    %30 = vector.shape_cast %29 : vector<1x1x3x16xf32> to vector<3x16xf32>
    %c0_41 = arith.constant 0 : index
    %c181 = arith.constant 181 : index
    %31 = vector.load %arg8[%c0_41, %c181] : memref<3x1664xf32, #tpu.memory_space<vmem>>, vector<3x16xf32>
    tpu.vector_store %arg8[%c0_41, %c181], %30 {strides = array<i32>} : memref<3x1664xf32, #tpu.memory_space<vmem>>, vector<3x16xf32>,
    %c0_42 = arith.constant 0 : index
    %c0_43 = arith.constant 0 : index
    %c0_44 = arith.constant 0 : index
    %c160 = arith.constant 160 : index
    %32 = vector.load %arg1[%c0_42, %c0_43, %c0_44, %c160] : memref<1x4x3x256xf32, #tpu.memory_space<vmem>>, vector<1x1x3x16xf32>
    %33 = vector.shape_cast %32 : vector<1x1x3x16xf32> to vector<3x16xf32>
    %c0_45 = arith.constant 0 : index
    %c199 = arith.constant 199 : index
    %34 = vector.load %arg8[%c0_45, %c199] : memref<3x1664xf32, #tpu.memory_space<vmem>>, vector<3x16xf32>
    tpu.vector_store %arg8[%c0_45, %c199], %33 {strides = array<i32>} : memref<3x1664xf32, #tpu.memory_space<vmem>>, vector<3x16xf32>,
    %c0_46 = arith.constant 0 : index
    %c0_47 = arith.constant 0 : index
    %c0_48 = arith.constant 0 : index
    %c176 = arith.constant 176 : index
    %35 = vector.load %arg1[%c0_46, %c0_47, %c0_48, %c176] : memref<1x4x3x256xf32, #tpu.memory_space<vmem>>, vector<1x1x3x16xf32>
    %36 = vector.shape_cast %35 : vector<1x1x3x16xf32> to vector<3x16xf32>
    %c0_49 = arith.constant 0 : index
    %c217 = arith.constant 217 : index
    %37 = vector.load %arg8[%c0_49, %c217] : memref<3x1664xf32, #tpu.memory_space<vmem>>, vector<3x16xf32>
    tpu.vector_store %arg8[%c0_49, %c217], %36 {strides = array<i32>} : memref<3x1664xf32, #tpu.memory_space<vmem>>, vector<3x16xf32>,
    %c0_50 = arith.constant 0 : index
    %c0_51 = arith.constant 0 : index
    %c0_52 = arith.constant 0 : index
    %c192 = arith.constant 192 : index
    %38 = vector.load %arg1[%c0_50, %c0_51, %c0_52, %c192] : memref<1x4x3x256xf32, #tpu.memory_space<vmem>>, vector<1x1x3x16xf32>
    %39 = vector.shape_cast %38 : vector<1x1x3x16xf32> to vector<3x16xf32>
    %c0_53 = arith.constant 0 : index
    %c235 = arith.constant 235 : index
    %40 = vector.load %arg8[%c0_53, %c235] : memref<3x1664xf32, #tpu.memory_space<vmem>>, vector<3x16xf32>
    tpu.vector_store %arg8[%c0_53, %c235], %39 {strides = array<i32>} : memref<3x1664xf32, #tpu.memory_space<vmem>>, vector<3x16xf32>,
    %c0_54 = arith.constant 0 : index
    %c0_55 = arith.constant 0 : index
    %c0_56 = arith.constant 0 : index
    %c208 = arith.constant 208 : index
    %41 = vector.load %arg1[%c0_54, %c0_55, %c0_56, %c208] : memref<1x4x3x256xf32, #tpu.memory_space<vmem>>, vector<1x1x3x16xf32>
    %42 = vector.shape_cast %41 : vector<1x1x3x16xf32> to vector<3x16xf32>
    %c0_57 = arith.constant 0 : index
    %c253 = arith.constant 253 : index
    %43 = vector.load %arg8[%c0_57, %c253] : memref<3x1664xf32, #tpu.memory_space<vmem>>, vector<3x16xf32>
    tpu.vector_store %arg8[%c0_57, %c253], %42 {strides = array<i32>} : memref<3x1664xf32, #tpu.memory_space<vmem>>, vector<3x16xf32>,
    %c0_58 = arith.constant 0 : index
    %c0_59 = arith.constant 0 : index
    %c0_60 = arith.constant 0 : index
    %c224 = arith.constant 224 : index
    %44 = vector.load %arg1[%c0_58, %c0_59, %c0_60, %c224] : memref<1x4x3x256xf32, #tpu.memory_space<vmem>>, vector<1x1x3x16xf32>
    %45 = vector.shape_cast %44 : vector<1x1x3x16xf32> to vector<3x16xf32>
    %c0_61 = arith.constant 0 : index
    %c271 = arith.constant 271 : index
    %46 = vector.load %arg8[%c0_61, %c271] : memref<3x1664xf32, #tpu.memory_space<vmem>>, vector<3x16xf32>
    tpu.vector_store %arg8[%c0_61, %c271], %45 {strides = array<i32>} : memref<3x1664xf32, #tpu.memory_space<vmem>>, vector<3x16xf32>,
    %c0_62 = arith.constant 0 : index
    %c0_63 = arith.constant 0 : index
    %c0_64 = arith.constant 0 : index
    %c240 = arith.constant 240 : index
    %47 = vector.load %arg1[%c0_62, %c0_63, %c0_64, %c240] : memref<1x4x3x256xf32, #tpu.memory_space<vmem>>, vector<1x1x3x16xf32>
    %48 = vector.shape_cast %47 : vector<1x1x3x16xf32> to vector<3x16xf32>
    %c0_65 = arith.constant 0 : index
    %c289 = arith.constant 289 : index
    %49 = vector.load %arg8[%c0_65, %c289] : memref<3x1664xf32, #tpu.memory_space<vmem>>, vector<3x16xf32>
    tpu.vector_store %arg8[%c0_65, %c289], %48 {strides = array<i32>} : memref<3x1664xf32, #tpu.memory_space<vmem>>, vector<3x16xf32>,
    %c0_66 = arith.constant 0 : index
    %c1 = arith.constant 1 : index
    %c0_67 = arith.constant 0 : index
    %c0_68 = arith.constant 0 : index
    %50 = vector.load %arg1[%c0_66, %c1, %c0_67, %c0_68] : memref<1x4x3x256xf32, #tpu.memory_space<vmem>>, vector<1x1x3x16xf32>
    %51 = vector.shape_cast %50 : vector<1x1x3x16xf32> to vector<3x16xf32>
    %c0_69 = arith.constant 0 : index
    %c403 = arith.constant 403 : index
    %52 = vector.load %arg8[%c0_69, %c403] : memref<3x1664xf32, #tpu.memory_space<vmem>>, vector<3x16xf32>
    tpu.vector_store %arg8[%c0_69, %c403], %51 {strides = array<i32>} : memref<3x1664xf32, #tpu.memory_space<vmem>>, vector<3x16xf32>,
    %c0_70 = arith.constant 0 : index
    %c1_71 = arith.constant 1 : index
    %c0_72 = arith.constant 0 : index
    %c16_73 = arith.constant 16 : index
    %53 = vector.load %arg1[%c0_70, %c1_71, %c0_72, %c16_73] : memref<1x4x3x256xf32, #tpu.memory_space<vmem>>, vector<1x1x3x16xf32>
    %54 = vector.shape_cast %53 : vector<1x1x3x16xf32> to vector<3x16xf32>
    %c0_74 = arith.constant 0 : index
    %c421 = arith.constant 421 : index
    %55 = vector.load %arg8[%c0_74, %c421] : memref<3x1664xf32, #tpu.memory_space<vmem>>, vector<3x16xf32>
    tpu.vector_store %arg8[%c0_74, %c421], %54 {strides = array<i32>} : memref<3x1664xf32, #tpu.memory_space<vmem>>, vector<3x16xf32>,
    %c0_75 = arith.constant 0 : index
    %c1_76 = arith.constant 1 : index
    %c0_77 = arith.constant 0 : index
    %c32_78 = arith.constant 32 : index
    %56 = vector.load %arg1[%c0_75, %c1_76, %c0_77, %c32_78] : memref<1x4x3x256xf32, #tpu.memory_space<vmem>>, vector<1x1x3x16xf32>
    %57 = vector.shape_cast %56 : vector<1x1x3x16xf32> to vector<3x16xf32>
    %c0_79 = arith.constant 0 : index
    %c439 = arith.constant 439 : index
    %58 = vector.load %arg8[%c0_79, %c439] : memref<3x1664xf32, #tpu.memory_space<vmem>>, vector<3x16xf32>
    tpu.vector_store %arg8[%c0_79, %c439], %57 {strides = array<i32>} : memref<3x1664xf32, #tpu.memory_space<vmem>>, vector<3x16xf32>,
    %c0_80 = arith.constant 0 : index
    %c1_81 = arith.constant 1 : index
    %c0_82 = arith.constant 0 : index
    %c48_83 = arith.constant 48 : index
    %59 = vector.load %arg1[%c0_80, %c1_81, %c0_82, %c48_83] : memref<1x4x3x256xf32, #tpu.memory_space<vmem>>, vector<1x1x3x16xf32>
    %60 = vector.shape_cast %59 : vector<1x1x3x16xf32> to vector<3x16xf32>
    %c0_84 = arith.constant 0 : index
    %c457 = arith.constant 457 : index
    %61 = vector.load %arg8[%c0_84, %c457] : memref<3x1664xf32, #tpu.memory_space<vmem>>, vector<3x16xf32>
    tpu.vector_store %arg8[%c0_84, %c457], %60 {strides = array<i32>} : memref<3x1664xf32, #tpu.memory_space<vmem>>, vector<3x16xf32>,
    %c0_85 = arith.constant 0 : index
    %c1_86 = arith.constant 1 : index
    %c0_87 = arith.constant 0 : index
    %c64_88 = arith.constant 64 : index
    %62 = vector.load %arg1[%c0_85, %c1_86, %c0_87, %c64_88] : memref<1x4x3x256xf32, #tpu.memory_space<vmem>>, vector<1x1x3x16xf32>
    %63 = vector.shape_cast %62 : vector<1x1x3x16xf32> to vector<3x16xf32>
    %c0_89 = arith.constant 0 : index
    %c475 = arith.constant 475 : index
    %64 = vector.load %arg8[%c0_89, %c475] : memref<3x1664xf32, #tpu.memory_space<vmem>>, vector<3x16xf32>
    tpu.vector_store %arg8[%c0_89, %c475], %63 {strides = array<i32>} : memref<3x1664xf32, #tpu.memory_space<vmem>>, vector<3x16xf32>,
    %c0_90 = arith.constant 0 : index
    %c1_91 = arith.constant 1 : index
    %c0_92 = arith.constant 0 : index
    %c80_93 = arith.constant 80 : index
    %65 = vector.load %arg1[%c0_90, %c1_91, %c0_92, %c80_93] : memref<1x4x3x256xf32, #tpu.memory_space<vmem>>, vector<1x1x3x16xf32>
    %66 = vector.shape_cast %65 : vector<1x1x3x16xf32> to vector<3x16xf32>
    %c0_94 = arith.constant 0 : index
    %c493 = arith.constant 493 : index
    %67 = vector.load %arg8[%c0_94, %c493] : memref<3x1664xf32, #tpu.memory_space<vmem>>, vector<3x16xf32>
    tpu.vector_store %arg8[%c0_94, %c493], %66 {strides = array<i32>} : memref<3x1664xf32, #tpu.memory_space<vmem>>, vector<3x16xf32>,
    %c0_95 = arith.constant 0 : index
    %c1_96 = arith.constant 1 : index
    %c0_97 = arith.constant 0 : index
    %c96_98 = arith.constant 96 : index
    %68 = vector.load %arg1[%c0_95, %c1_96, %c0_97, %c96_98] : memref<1x4x3x256xf32, #tpu.memory_space<vmem>>, vector<1x1x3x16xf32>
    %69 = vector.shape_cast %68 : vector<1x1x3x16xf32> to vector<3x16xf32>
    %c0_99 = arith.constant 0 : index
    %c511 = arith.constant 511 : index
    %70 = vector.load %arg8[%c0_99, %c511] : memref<3x1664xf32, #tpu.memory_space<vmem>>, vector<3x16xf32>
    tpu.vector_store %arg8[%c0_99, %c511], %69 {strides = array<i32>} : memref<3x1664xf32, #tpu.memory_space<vmem>>, vector<3x16xf32>,
    %c0_100 = arith.constant 0 : index
    %c1_101 = arith.constant 1 : index
    %c0_102 = arith.constant 0 : index
    %c112_103 = arith.constant 112 : index
    %71 = vector.load %arg1[%c0_100, %c1_101, %c0_102, %c112_103] : memref<1x4x3x256xf32, #tpu.memory_space<vmem>>, vector<1x1x3x16xf32>
    %72 = vector.shape_cast %71 : vector<1x1x3x16xf32> to vector<3x16xf32>
    %c0_104 = arith.constant 0 : index
    %c529 = arith.constant 529 : index
    %73 = vector.load %arg8[%c0_104, %c529] : memref<3x1664xf32, #tpu.memory_space<vmem>>, vector<3x16xf32>
    tpu.vector_store %arg8[%c0_104, %c529], %72 {strides = array<i32>} : memref<3x1664xf32, #tpu.memory_space<vmem>>, vector<3x16xf32>,
    %c0_105 = arith.constant 0 : index
    %c1_106 = arith.constant 1 : index
    %c0_107 = arith.constant 0 : index
    %c128_108 = arith.constant 128 : index
    %74 = vector.load %arg1[%c0_105, %c1_106, %c0_107, %c128_108] : memref<1x4x3x256xf32, #tpu.memory_space<vmem>>, vector<1x1x3x16xf32>
    %75 = vector.shape_cast %74 : vector<1x1x3x16xf32> to vector<3x16xf32>
    %c0_109 = arith.constant 0 : index
    %c547 = arith.constant 547 : index
    %76 = vector.load %arg8[%c0_109, %c547] : memref<3x1664xf32, #tpu.memory_space<vmem>>, vector<3x16xf32>
    tpu.vector_store %arg8[%c0_109, %c547], %75 {strides = array<i32>} : memref<3x1664xf32, #tpu.memory_space<vmem>>, vector<3x16xf32>,
    %c0_110 = arith.constant 0 : index
    %c1_111 = arith.constant 1 : index
    %c0_112 = arith.constant 0 : index
    %c144_113 = arith.constant 144 : index
    %77 = vector.load %arg1[%c0_110, %c1_111, %c0_112, %c144_113] : memref<1x4x3x256xf32, #tpu.memory_space<vmem>>, vector<1x1x3x16xf32>
    %78 = vector.shape_cast %77 : vector<1x1x3x16xf32> to vector<3x16xf32>
    %c0_114 = arith.constant 0 : index
    %c565 = arith.constant 565 : index
    %79 = vector.load %arg8[%c0_114, %c565] : memref<3x1664xf32, #tpu.memory_space<vmem>>, vector<3x16xf32>
    tpu.vector_store %arg8[%c0_114, %c565], %78 {strides = array<i32>} : memref<3x1664xf32, #tpu.memory_space<vmem>>, vector<3x16xf32>,
    %c0_115 = arith.constant 0 : index
    %c1_116 = arith.constant 1 : index
    %c0_117 = arith.constant 0 : index
    %c160_118 = arith.constant 160 : index
    %80 = vector.load %arg1[%c0_115, %c1_116, %c0_117, %c160_118] : memref<1x4x3x256xf32, #tpu.memory_space<vmem>>, vector<1x1x3x16xf32>
    %81 = vector.shape_cast %80 : vector<1x1x3x16xf32> to vector<3x16xf32>
    %c0_119 = arith.constant 0 : index
    %c583 = arith.constant 583 : index
    %82 = vector.load %arg8[%c0_119, %c583] : memref<3x1664xf32, #tpu.memory_space<vmem>>, vector<3x16xf32>
    tpu.vector_store %arg8[%c0_119, %c583], %81 {strides = array<i32>} : memref<3x1664xf32, #tpu.memory_space<vmem>>, vector<3x16xf32>,
    %c0_120 = arith.constant 0 : index
    %c1_121 = arith.constant 1 : index
    %c0_122 = arith.constant 0 : index
    %c176_123 = arith.constant 176 : index
    %83 = vector.load %arg1[%c0_120, %c1_121, %c0_122, %c176_123] : memref<1x4x3x256xf32, #tpu.memory_space<vmem>>, vector<1x1x3x16xf32>
    %84 = vector.shape_cast %83 : vector<1x1x3x16xf32> to vector<3x16xf32>
    %c0_124 = arith.constant 0 : index
    %c601 = arith.constant 601 : index
    %85 = vector.load %arg8[%c0_124, %c601] : memref<3x1664xf32, #tpu.memory_space<vmem>>, vector<3x16xf32>
    tpu.vector_store %arg8[%c0_124, %c601], %84 {strides = array<i32>} : memref<3x1664xf32, #tpu.memory_space<vmem>>, vector<3x16xf32>,
    %c0_125 = arith.constant 0 : index
    %c1_126 = arith.constant 1 : index
    %c0_127 = arith.constant 0 : index
    %c192_128 = arith.constant 192 : index
    %86 = vector.load %arg1[%c0_125, %c1_126, %c0_127, %c192_128] : memref<1x4x3x256xf32, #tpu.memory_space<vmem>>, vector<1x1x3x16xf32>
    %87 = vector.shape_cast %86 : vector<1x1x3x16xf32> to vector<3x16xf32>
    %c0_129 = arith.constant 0 : index
    %c619 = arith.constant 619 : index
    %88 = vector.load %arg8[%c0_129, %c619] : memref<3x1664xf32, #tpu.memory_space<vmem>>, vector<3x16xf32>
    tpu.vector_store %arg8[%c0_129, %c619], %87 {strides = array<i32>} : memref<3x1664xf32, #tpu.memory_space<vmem>>, vector<3x16xf32>,
    %c0_130 = arith.constant 0 : index
    %c1_131 = arith.constant 1 : index
    %c0_132 = arith.constant 0 : index
    %c208_133 = arith.constant 208 : index
    %89 = vector.load %arg1[%c0_130, %c1_131, %c0_132, %c208_133] : memref<1x4x3x256xf32, #tpu.memory_space<vmem>>, vector<1x1x3x16xf32>
    %90 = vector.shape_cast %89 : vector<1x1x3x16xf32> to vector<3x16xf32>
    %c0_134 = arith.constant 0 : index
    %c637 = arith.constant 637 : index
    %91 = vector.load %arg8[%c0_134, %c637] : memref<3x1664xf32, #tpu.memory_space<vmem>>, vector<3x16xf32>
    tpu.vector_store %arg8[%c0_134, %c637], %90 {strides = array<i32>} : memref<3x1664xf32, #tpu.memory_space<vmem>>, vector<3x16xf32>,
    %c0_135 = arith.constant 0 : index
    %c1_136 = arith.constant 1 : index
    %c0_137 = arith.constant 0 : index
    %c224_138 = arith.constant 224 : index
    %92 = vector.load %arg1[%c0_135, %c1_136, %c0_137, %c224_138] : memref<1x4x3x256xf32, #tpu.memory_space<vmem>>, vector<1x1x3x16xf32>
    %93 = vector.shape_cast %92 : vector<1x1x3x16xf32> to vector<3x16xf32>
    %c0_139 = arith.constant 0 : index
    %c655 = arith.constant 655 : index
    %94 = vector.load %arg8[%c0_139, %c655] : memref<3x1664xf32, #tpu.memory_space<vmem>>, vector<3x16xf32>
    tpu.vector_store %arg8[%c0_139, %c655], %93 {strides = array<i32>} : memref<3x1664xf32, #tpu.memory_space<vmem>>, vector<3x16xf32>,
    %c0_140 = arith.constant 0 : index
    %c1_141 = arith.constant 1 : index
    %c0_142 = arith.constant 0 : index
    %c240_143 = arith.constant 240 : index
    %95 = vector.load %arg1[%c0_140, %c1_141, %c0_142, %c240_143] : memref<1x4x3x256xf32, #tpu.memory_space<vmem>>, vector<1x1x3x16xf32>
    %96 = vector.shape_cast %95 : vector<1x1x3x16xf32> to vector<3x16xf32>
    %c0_144 = arith.constant 0 : index
    %c673 = arith.constant 673 : index
    %97 = vector.load %arg8[%c0_144, %c673] : memref<3x1664xf32, #tpu.memory_space<vmem>>, vector<3x16xf32>
    tpu.vector_store %arg8[%c0_144, %c673], %96 {strides = array<i32>} : memref<3x1664xf32, #tpu.memory_space<vmem>>, vector<3x16xf32>,
    %c0_145 = arith.constant 0 : index
    %c2 = arith.constant 2 : index
    %c0_146 = arith.constant 0 : index
    %c0_147 = arith.constant 0 : index
    %98 = vector.load %arg1[%c0_145, %c2, %c0_146, %c0_147] : memref<1x4x3x256xf32, #tpu.memory_space<vmem>>, vector<1x1x3x16xf32>
    %99 = vector.shape_cast %98 : vector<1x1x3x16xf32> to vector<3x16xf32>
    %c0_148 = arith.constant 0 : index
    %c787 = arith.constant 787 : index
    %100 = vector.load %arg8[%c0_148, %c787] : memref<3x1664xf32, #tpu.memory_space<vmem>>, vector<3x16xf32>
    tpu.vector_store %arg8[%c0_148, %c787], %99 {strides = array<i32>} : memref<3x1664xf32, #tpu.memory_space<vmem>>, vector<3x16xf32>,
    %c0_149 = arith.constant 0 : index
    %c2_150 = arith.constant 2 : index
    %c0_151 = arith.constant 0 : index
    %c16_152 = arith.constant 16 : index
    %101 = vector.load %arg1[%c0_149, %c2_150, %c0_151, %c16_152] : memref<1x4x3x256xf32, #tpu.memory_space<vmem>>, vector<1x1x3x16xf32>
    %102 = vector.shape_cast %101 : vector<1x1x3x16xf32> to vector<3x16xf32>
    %c0_153 = arith.constant 0 : index
    %c805 = arith.constant 805 : index
    %103 = vector.load %arg8[%c0_153, %c805] : memref<3x1664xf32, #tpu.memory_space<vmem>>, vector<3x16xf32>
    tpu.vector_store %arg8[%c0_153, %c805], %102 {strides = array<i32>} : memref<3x1664xf32, #tpu.memory_space<vmem>>, vector<3x16xf32>,
    %c0_154 = arith.constant 0 : index
    %c2_155 = arith.constant 2 : index
    %c0_156 = arith.constant 0 : index
    %c32_157 = arith.constant 32 : index
    %104 = vector.load %arg1[%c0_154, %c2_155, %c0_156, %c32_157] : memref<1x4x3x256xf32, #tpu.memory_space<vmem>>, vector<1x1x3x16xf32>
    %105 = vector.shape_cast %104 : vector<1x1x3x16xf32> to vector<3x16xf32>
    %c0_158 = arith.constant 0 : index
    %c823 = arith.constant 823 : index
    %106 = vector.load %arg8[%c0_158, %c823] : memref<3x1664xf32, #tpu.memory_space<vmem>>, vector<3x16xf32>
    tpu.vector_store %arg8[%c0_158, %c823], %105 {strides = array<i32>} : memref<3x1664xf32, #tpu.memory_space<vmem>>, vector<3x16xf32>,
    %c0_159 = arith.constant 0 : index
    %c2_160 = arith.constant 2 : index
    %c0_161 = arith.constant 0 : index
    %c48_162 = arith.constant 48 : index
    %107 = vector.load %arg1[%c0_159, %c2_160, %c0_161, %c48_162] : memref<1x4x3x256xf32, #tpu.memory_space<vmem>>, vector<1x1x3x16xf32>
    %108 = vector.shape_cast %107 : vector<1x1x3x16xf32> to vector<3x16xf32>
    %c0_163 = arith.constant 0 : index
    %c841 = arith.constant 841 : index
    %109 = vector.load %arg8[%c0_163, %c841] : memref<3x1664xf32, #tpu.memory_space<vmem>>, vector<3x16xf32>
    tpu.vector_store %arg8[%c0_163, %c841], %108 {strides = array<i32>} : memref<3x1664xf32, #tpu.memory_space<vmem>>, vector<3x16xf32>,
    %c0_164 = arith.constant 0 : index
    %c2_165 = arith.constant 2 : index
    %c0_166 = arith.constant 0 : index
    %c64_167 = arith.constant 64 : index
    %110 = vector.load %arg1[%c0_164, %c2_165, %c0_166, %c64_167] : memref<1x4x3x256xf32, #tpu.memory_space<vmem>>, vector<1x1x3x16xf32>
    %111 = vector.shape_cast %110 : vector<1x1x3x16xf32> to vector<3x16xf32>
    %c0_168 = arith.constant 0 : index
    %c859 = arith.constant 859 : index
    %112 = vector.load %arg8[%c0_168, %c859] : memref<3x1664xf32, #tpu.memory_space<vmem>>, vector<3x16xf32>
    tpu.vector_store %arg8[%c0_168, %c859], %111 {strides = array<i32>} : memref<3x1664xf32, #tpu.memory_space<vmem>>, vector<3x16xf32>,
    %c0_169 = arith.constant 0 : index
    %c2_170 = arith.constant 2 : index
    %c0_171 = arith.constant 0 : index
    %c80_172 = arith.constant 80 : index
    %113 = vector.load %arg1[%c0_169, %c2_170, %c0_171, %c80_172] : memref<1x4x3x256xf32, #tpu.memory_space<vmem>>, vector<1x1x3x16xf32>
    %114 = vector.shape_cast %113 : vector<1x1x3x16xf32> to vector<3x16xf32>
    %c0_173 = arith.constant 0 : index
    %c877 = arith.constant 877 : index
    %115 = vector.load %arg8[%c0_173, %c877] : memref<3x1664xf32, #tpu.memory_space<vmem>>, vector<3x16xf32>
    tpu.vector_store %arg8[%c0_173, %c877], %114 {strides = array<i32>} : memref<3x1664xf32, #tpu.memory_space<vmem>>, vector<3x16xf32>,
    %c0_174 = arith.constant 0 : index
    %c2_175 = arith.constant 2 : index
    %c0_176 = arith.constant 0 : index
    %c96_177 = arith.constant 96 : index
    %116 = vector.load %arg1[%c0_174, %c2_175, %c0_176, %c96_177] : memref<1x4x3x256xf32, #tpu.memory_space<vmem>>, vector<1x1x3x16xf32>
    %117 = vector.shape_cast %116 : vector<1x1x3x16xf32> to vector<3x16xf32>
    %c0_178 = arith.constant 0 : index
    %c895 = arith.constant 895 : index
    %118 = vector.load %arg8[%c0_178, %c895] : memref<3x1664xf32, #tpu.memory_space<vmem>>, vector<3x16xf32>
    tpu.vector_store %arg8[%c0_178, %c895], %117 {strides = array<i32>} : memref<3x1664xf32, #tpu.memory_space<vmem>>, vector<3x16xf32>,
    %c0_179 = arith.constant 0 : index
    %c2_180 = arith.constant 2 : index
    %c0_181 = arith.constant 0 : index
    %c112_182 = arith.constant 112 : index
    %119 = vector.load %arg1[%c0_179, %c2_180, %c0_181, %c112_182] : memref<1x4x3x256xf32, #tpu.memory_space<vmem>>, vector<1x1x3x16xf32>
    %120 = vector.shape_cast %119 : vector<1x1x3x16xf32> to vector<3x16xf32>
    %c0_183 = arith.constant 0 : index
    %c913 = arith.constant 913 : index
    %121 = vector.load %arg8[%c0_183, %c913] : memref<3x1664xf32, #tpu.memory_space<vmem>>, vector<3x16xf32>
    tpu.vector_store %arg8[%c0_183, %c913], %120 {strides = array<i32>} : memref<3x1664xf32, #tpu.memory_space<vmem>>, vector<3x16xf32>,
    %c0_184 = arith.constant 0 : index
    %c2_185 = arith.constant 2 : index
    %c0_186 = arith.constant 0 : index
    %c128_187 = arith.constant 128 : index
    %122 = vector.load %arg1[%c0_184, %c2_185, %c0_186, %c128_187] : memref<1x4x3x256xf32, #tpu.memory_space<vmem>>, vector<1x1x3x16xf32>
    %123 = vector.shape_cast %122 : vector<1x1x3x16xf32> to vector<3x16xf32>
    %c0_188 = arith.constant 0 : index
    %c931 = arith.constant 931 : index
    %124 = vector.load %arg8[%c0_188, %c931] : memref<3x1664xf32, #tpu.memory_space<vmem>>, vector<3x16xf32>
    tpu.vector_store %arg8[%c0_188, %c931], %123 {strides = array<i32>} : memref<3x1664xf32, #tpu.memory_space<vmem>>, vector<3x16xf32>,
    %c0_189 = arith.constant 0 : index
    %c2_190 = arith.constant 2 : index
    %c0_191 = arith.constant 0 : index
    %c144_192 = arith.constant 144 : index
    %125 = vector.load %arg1[%c0_189, %c2_190, %c0_191, %c144_192] : memref<1x4x3x256xf32, #tpu.memory_space<vmem>>, vector<1x1x3x16xf32>
    %126 = vector.shape_cast %125 : vector<1x1x3x16xf32> to vector<3x16xf32>
    %c0_193 = arith.constant 0 : index
    %c949 = arith.constant 949 : index
    %127 = vector.load %arg8[%c0_193, %c949] : memref<3x1664xf32, #tpu.memory_space<vmem>>, vector<3x16xf32>
    tpu.vector_store %arg8[%c0_193, %c949], %126 {strides = array<i32>} : memref<3x1664xf32, #tpu.memory_space<vmem>>, vector<3x16xf32>,
    %c0_194 = arith.constant 0 : index
    %c2_195 = arith.constant 2 : index
    %c0_196 = arith.constant 0 : index
    %c160_197 = arith.constant 160 : index
    %128 = vector.load %arg1[%c0_194, %c2_195, %c0_196, %c160_197] : memref<1x4x3x256xf32, #tpu.memory_space<vmem>>, vector<1x1x3x16xf32>
    %129 = vector.shape_cast %128 : vector<1x1x3x16xf32> to vector<3x16xf32>
    %c0_198 = arith.constant 0 : index
    %c967 = arith.constant 967 : index
    %130 = vector.load %arg8[%c0_198, %c967] : memref<3x1664xf32, #tpu.memory_space<vmem>>, vector<3x16xf32>
    tpu.vector_store %arg8[%c0_198, %c967], %129 {strides = array<i32>} : memref<3x1664xf32, #tpu.memory_space<vmem>>, vector<3x16xf32>,
    %c0_199 = arith.constant 0 : index
    %c2_200 = arith.constant 2 : index
    %c0_201 = arith.constant 0 : index
    %c176_202 = arith.constant 176 : index
    %131 = vector.load %arg1[%c0_199, %c2_200, %c0_201, %c176_202] : memref<1x4x3x256xf32, #tpu.memory_space<vmem>>, vector<1x1x3x16xf32>
    %132 = vector.shape_cast %131 : vector<1x1x3x16xf32> to vector<3x16xf32>
    %c0_203 = arith.constant 0 : index
    %c985 = arith.constant 985 : index
    %133 = vector.load %arg8[%c0_203, %c985] : memref<3x1664xf32, #tpu.memory_space<vmem>>, vector<3x16xf32>
    tpu.vector_store %arg8[%c0_203, %c985], %132 {strides = array<i32>} : memref<3x1664xf32, #tpu.memory_space<vmem>>, vector<3x16xf32>,
    %c0_204 = arith.constant 0 : index
    %c2_205 = arith.constant 2 : index
    %c0_206 = arith.constant 0 : index
    %c192_207 = arith.constant 192 : index
    %134 = vector.load %arg1[%c0_204, %c2_205, %c0_206, %c192_207] : memref<1x4x3x256xf32, #tpu.memory_space<vmem>>, vector<1x1x3x16xf32>
    %135 = vector.shape_cast %134 : vector<1x1x3x16xf32> to vector<3x16xf32>
    %c0_208 = arith.constant 0 : index
    %c1003 = arith.constant 1003 : index
    %136 = vector.load %arg8[%c0_208, %c1003] : memref<3x1664xf32, #tpu.memory_space<vmem>>, vector<3x16xf32>
    tpu.vector_store %arg8[%c0_208, %c1003], %135 {strides = array<i32>} : memref<3x1664xf32, #tpu.memory_space<vmem>>, vector<3x16xf32>,
    %c0_209 = arith.constant 0 : index
    %c2_210 = arith.constant 2 : index
    %c0_211 = arith.constant 0 : index
    %c208_212 = arith.constant 208 : index
    %137 = vector.load %arg1[%c0_209, %c2_210, %c0_211, %c208_212] : memref<1x4x3x256xf32, #tpu.memory_space<vmem>>, vector<1x1x3x16xf32>
    %138 = vector.shape_cast %137 : vector<1x1x3x16xf32> to vector<3x16xf32>
    %c0_213 = arith.constant 0 : index
    %c1021 = arith.constant 1021 : index
    %139 = vector.load %arg8[%c0_213, %c1021] : memref<3x1664xf32, #tpu.memory_space<vmem>>, vector<3x16xf32>
    tpu.vector_store %arg8[%c0_213, %c1021], %138 {strides = array<i32>} : memref<3x1664xf32, #tpu.memory_space<vmem>>, vector<3x16xf32>,
    %c0_214 = arith.constant 0 : index
    %c2_215 = arith.constant 2 : index
    %c0_216 = arith.constant 0 : index
    %c224_217 = arith.constant 224 : index
    %140 = vector.load %arg1[%c0_214, %c2_215, %c0_216, %c224_217] : memref<1x4x3x256xf32, #tpu.memory_space<vmem>>, vector<1x1x3x16xf32>
    %141 = vector.shape_cast %140 : vector<1x1x3x16xf32> to vector<3x16xf32>
    %c0_218 = arith.constant 0 : index
    %c1039 = arith.constant 1039 : index
    %142 = vector.load %arg8[%c0_218, %c1039] : memref<3x1664xf32, #tpu.memory_space<vmem>>, vector<3x16xf32>
    tpu.vector_store %arg8[%c0_218, %c1039], %141 {strides = array<i32>} : memref<3x1664xf32, #tpu.memory_space<vmem>>, vector<3x16xf32>,
    %c0_219 = arith.constant 0 : index
    %c2_220 = arith.constant 2 : index
    %c0_221 = arith.constant 0 : index
    %c240_222 = arith.constant 240 : index
    %143 = vector.load %arg1[%c0_219, %c2_220, %c0_221, %c240_222] : memref<1x4x3x256xf32, #tpu.memory_space<vmem>>, vector<1x1x3x16xf32>
    %144 = vector.shape_cast %143 : vector<1x1x3x16xf32> to vector<3x16xf32>
    %c0_223 = arith.constant 0 : index
    %c1057 = arith.constant 1057 : index
    %145 = vector.load %arg8[%c0_223, %c1057] : memref<3x1664xf32, #tpu.memory_space<vmem>>, vector<3x16xf32>
    tpu.vector_store %arg8[%c0_223, %c1057], %144 {strides = array<i32>} : memref<3x1664xf32, #tpu.memory_space<vmem>>, vector<3x16xf32>,
    %c0_224 = arith.constant 0 : index
    %c3 = arith.constant 3 : index
    %c0_225 = arith.constant 0 : index
    %c0_226 = arith.constant 0 : index
    %146 = vector.load %arg1[%c0_224, %c3, %c0_225, %c0_226] : memref<1x4x3x256xf32, #tpu.memory_space<vmem>>, vector<1x1x3x16xf32>
    %147 = vector.shape_cast %146 : vector<1x1x3x16xf32> to vector<3x16xf32>
    %c0_227 = arith.constant 0 : index
    %c1171 = arith.constant 1171 : index
    %148 = vector.load %arg8[%c0_227, %c1171] : memref<3x1664xf32, #tpu.memory_space<vmem>>, vector<3x16xf32>
    tpu.vector_store %arg8[%c0_227, %c1171], %147 {strides = array<i32>} : memref<3x1664xf32, #tpu.memory_space<vmem>>, vector<3x16xf32>,
    %c0_228 = arith.constant 0 : index
    %c3_229 = arith.constant 3 : index
    %c0_230 = arith.constant 0 : index
    %c16_231 = arith.constant 16 : index
    %149 = vector.load %arg1[%c0_228, %c3_229, %c0_230, %c16_231] : memref<1x4x3x256xf32, #tpu.memory_space<vmem>>, vector<1x1x3x16xf32>
    %150 = vector.shape_cast %149 : vector<1x1x3x16xf32> to vector<3x16xf32>
    %c0_232 = arith.constant 0 : index
    %c1189 = arith.constant 1189 : index
    %151 = vector.load %arg8[%c0_232, %c1189] : memref<3x1664xf32, #tpu.memory_space<vmem>>, vector<3x16xf32>
    tpu.vector_store %arg8[%c0_232, %c1189], %150 {strides = array<i32>} : memref<3x1664xf32, #tpu.memory_space<vmem>>, vector<3x16xf32>,
    %c0_233 = arith.constant 0 : index
    %c3_234 = arith.constant 3 : index
    %c0_235 = arith.constant 0 : index
    %c32_236 = arith.constant 32 : index
    %152 = vector.load %arg1[%c0_233, %c3_234, %c0_235, %c32_236] : memref<1x4x3x256xf32, #tpu.memory_space<vmem>>, vector<1x1x3x16xf32>
    %153 = vector.shape_cast %152 : vector<1x1x3x16xf32> to vector<3x16xf32>
    %c0_237 = arith.constant 0 : index
    %c1207 = arith.constant 1207 : index
    %154 = vector.load %arg8[%c0_237, %c1207] : memref<3x1664xf32, #tpu.memory_space<vmem>>, vector<3x16xf32>
    tpu.vector_store %arg8[%c0_237, %c1207], %153 {strides = array<i32>} : memref<3x1664xf32, #tpu.memory_space<vmem>>, vector<3x16xf32>,
    %c0_238 = arith.constant 0 : index
    %c3_239 = arith.constant 3 : index
    %c0_240 = arith.constant 0 : index
    %c48_241 = arith.constant 48 : index
    %155 = vector.load %arg1[%c0_238, %c3_239, %c0_240, %c48_241] : memref<1x4x3x256xf32, #tpu.memory_space<vmem>>, vector<1x1x3x16xf32>
    %156 = vector.shape_cast %155 : vector<1x1x3x16xf32> to vector<3x16xf32>
    %c0_242 = arith.constant 0 : index
    %c1225 = arith.constant 1225 : index
    %157 = vector.load %arg8[%c0_242, %c1225] : memref<3x1664xf32, #tpu.memory_space<vmem>>, vector<3x16xf32>
    tpu.vector_store %arg8[%c0_242, %c1225], %156 {strides = array<i32>} : memref<3x1664xf32, #tpu.memory_space<vmem>>, vector<3x16xf32>,
    %c0_243 = arith.constant 0 : index
    %c3_244 = arith.constant 3 : index
    %c0_245 = arith.constant 0 : index
    %c64_246 = arith.constant 64 : index
    %158 = vector.load %arg1[%c0_243, %c3_244, %c0_245, %c64_246] : memref<1x4x3x256xf32, #tpu.memory_space<vmem>>, vector<1x1x3x16xf32>
    %159 = vector.shape_cast %158 : vector<1x1x3x16xf32> to vector<3x16xf32>
    %c0_247 = arith.constant 0 : index
    %c1243 = arith.constant 1243 : index
    %160 = vector.load %arg8[%c0_247, %c1243] : memref<3x1664xf32, #tpu.memory_space<vmem>>, vector<3x16xf32>
    tpu.vector_store %arg8[%c0_247, %c1243], %159 {strides = array<i32>} : memref<3x1664xf32, #tpu.memory_space<vmem>>, vector<3x16xf32>,
    %c0_248 = arith.constant 0 : index
    %c3_249 = arith.constant 3 : index
    %c0_250 = arith.constant 0 : index
    %c80_251 = arith.constant 80 : index
    %161 = vector.load %arg1[%c0_248, %c3_249, %c0_250, %c80_251] : memref<1x4x3x256xf32, #tpu.memory_space<vmem>>, vector<1x1x3x16xf32>
    %162 = vector.shape_cast %161 : vector<1x1x3x16xf32> to vector<3x16xf32>
    %c0_252 = arith.constant 0 : index
    %c1261 = arith.constant 1261 : index
    %163 = vector.load %arg8[%c0_252, %c1261] : memref<3x1664xf32, #tpu.memory_space<vmem>>, vector<3x16xf32>
    tpu.vector_store %arg8[%c0_252, %c1261], %162 {strides = array<i32>} : memref<3x1664xf32, #tpu.memory_space<vmem>>, vector<3x16xf32>,
    %c0_253 = arith.constant 0 : index
    %c3_254 = arith.constant 3 : index
    %c0_255 = arith.constant 0 : index
    %c96_256 = arith.constant 96 : index
    %164 = vector.load %arg1[%c0_253, %c3_254, %c0_255, %c96_256] : memref<1x4x3x256xf32, #tpu.memory_space<vmem>>, vector<1x1x3x16xf32>
    %165 = vector.shape_cast %164 : vector<1x1x3x16xf32> to vector<3x16xf32>
    %c0_257 = arith.constant 0 : index
    %c1279 = arith.constant 1279 : index
    %166 = vector.load %arg8[%c0_257, %c1279] : memref<3x1664xf32, #tpu.memory_space<vmem>>, vector<3x16xf32>
    tpu.vector_store %arg8[%c0_257, %c1279], %165 {strides = array<i32>} : memref<3x1664xf32, #tpu.memory_space<vmem>>, vector<3x16xf32>,
    %c0_258 = arith.constant 0 : index
    %c3_259 = arith.constant 3 : index
    %c0_260 = arith.constant 0 : index
    %c112_261 = arith.constant 112 : index
    %167 = vector.load %arg1[%c0_258, %c3_259, %c0_260, %c112_261] : memref<1x4x3x256xf32, #tpu.memory_space<vmem>>, vector<1x1x3x16xf32>
    %168 = vector.shape_cast %167 : vector<1x1x3x16xf32> to vector<3x16xf32>
    %c0_262 = arith.constant 0 : index
    %c1297 = arith.constant 1297 : index
    %169 = vector.load %arg8[%c0_262, %c1297] : memref<3x1664xf32, #tpu.memory_space<vmem>>, vector<3x16xf32>
    tpu.vector_store %arg8[%c0_262, %c1297], %168 {strides = array<i32>} : memref<3x1664xf32, #tpu.memory_space<vmem>>, vector<3x16xf32>,
    %c0_263 = arith.constant 0 : index
    %c3_264 = arith.constant 3 : index
    %c0_265 = arith.constant 0 : index
    %c128_266 = arith.constant 128 : index
    %170 = vector.load %arg1[%c0_263, %c3_264, %c0_265, %c128_266] : memref<1x4x3x256xf32, #tpu.memory_space<vmem>>, vector<1x1x3x16xf32>
    %171 = vector.shape_cast %170 : vector<1x1x3x16xf32> to vector<3x16xf32>
    %c0_267 = arith.constant 0 : index
    %c1315 = arith.constant 1315 : index
    %172 = vector.load %arg8[%c0_267, %c1315] : memref<3x1664xf32, #tpu.memory_space<vmem>>, vector<3x16xf32>
    tpu.vector_store %arg8[%c0_267, %c1315], %171 {strides = array<i32>} : memref<3x1664xf32, #tpu.memory_space<vmem>>, vector<3x16xf32>,
    %c0_268 = arith.constant 0 : index
    %c3_269 = arith.constant 3 : index
    %c0_270 = arith.constant 0 : index
    %c144_271 = arith.constant 144 : index
    %173 = vector.load %arg1[%c0_268, %c3_269, %c0_270, %c144_271] : memref<1x4x3x256xf32, #tpu.memory_space<vmem>>, vector<1x1x3x16xf32>
    %174 = vector.shape_cast %173 : vector<1x1x3x16xf32> to vector<3x16xf32>
    %c0_272 = arith.constant 0 : index
    %c1333 = arith.constant 1333 : index
    %175 = vector.load %arg8[%c0_272, %c1333] : memref<3x1664xf32, #tpu.memory_space<vmem>>, vector<3x16xf32>
    tpu.vector_store %arg8[%c0_272, %c1333], %174 {strides = array<i32>} : memref<3x1664xf32, #tpu.memory_space<vmem>>, vector<3x16xf32>,
    %c0_273 = arith.constant 0 : index
    %c3_274 = arith.constant 3 : index
    %c0_275 = arith.constant 0 : index
    %c160_276 = arith.constant 160 : index
    %176 = vector.load %arg1[%c0_273, %c3_274, %c0_275, %c160_276] : memref<1x4x3x256xf32, #tpu.memory_space<vmem>>, vector<1x1x3x16xf32>
    %177 = vector.shape_cast %176 : vector<1x1x3x16xf32> to vector<3x16xf32>
    %c0_277 = arith.constant 0 : index
    %c1351 = arith.constant 1351 : index
    %178 = vector.load %arg8[%c0_277, %c1351] : memref<3x1664xf32, #tpu.memory_space<vmem>>, vector<3x16xf32>
    tpu.vector_store %arg8[%c0_277, %c1351], %177 {strides = array<i32>} : memref<3x1664xf32, #tpu.memory_space<vmem>>, vector<3x16xf32>,
    %c0_278 = arith.constant 0 : index
    %c3_279 = arith.constant 3 : index
    %c0_280 = arith.constant 0 : index
    %c176_281 = arith.constant 176 : index
    %179 = vector.load %arg1[%c0_278, %c3_279, %c0_280, %c176_281] : memref<1x4x3x256xf32, #tpu.memory_space<vmem>>, vector<1x1x3x16xf32>
    %180 = vector.shape_cast %179 : vector<1x1x3x16xf32> to vector<3x16xf32>
    %c0_282 = arith.constant 0 : index
    %c1369 = arith.constant 1369 : index
    %181 = vector.load %arg8[%c0_282, %c1369] : memref<3x1664xf32, #tpu.memory_space<vmem>>, vector<3x16xf32>
    tpu.vector_store %arg8[%c0_282, %c1369], %180 {strides = array<i32>} : memref<3x1664xf32, #tpu.memory_space<vmem>>, vector<3x16xf32>,
    %c0_283 = arith.constant 0 : index
    %c3_284 = arith.constant 3 : index
    %c0_285 = arith.constant 0 : index
    %c192_286 = arith.constant 192 : index
    %182 = vector.load %arg1[%c0_283, %c3_284, %c0_285, %c192_286] : memref<1x4x3x256xf32, #tpu.memory_space<vmem>>, vector<1x1x3x16xf32>
    %183 = vector.shape_cast %182 : vector<1x1x3x16xf32> to vector<3x16xf32>
    %c0_287 = arith.constant 0 : index
    %c1387 = arith.constant 1387 : index
    %184 = vector.load %arg8[%c0_287, %c1387] : memref<3x1664xf32, #tpu.memory_space<vmem>>, vector<3x16xf32>
    tpu.vector_store %arg8[%c0_287, %c1387], %183 {strides = array<i32>} : memref<3x1664xf32, #tpu.memory_space<vmem>>, vector<3x16xf32>,
    %c0_288 = arith.constant 0 : index
    %c3_289 = arith.constant 3 : index
    %c0_290 = arith.constant 0 : index
    %c208_291 = arith.constant 208 : index
    %185 = vector.load %arg1[%c0_288, %c3_289, %c0_290, %c208_291] : memref<1x4x3x256xf32, #tpu.memory_space<vmem>>, vector<1x1x3x16xf32>
    %186 = vector.shape_cast %185 : vector<1x1x3x16xf32> to vector<3x16xf32>
    %c0_292 = arith.constant 0 : index
    %c1405 = arith.constant 1405 : index
    %187 = vector.load %arg8[%c0_292, %c1405] : memref<3x1664xf32, #tpu.memory_space<vmem>>, vector<3x16xf32>
    tpu.vector_store %arg8[%c0_292, %c1405], %186 {strides = array<i32>} : memref<3x1664xf32, #tpu.memory_space<vmem>>, vector<3x16xf32>,
    %c0_293 = arith.constant 0 : index
    %c3_294 = arith.constant 3 : index
    %c0_295 = arith.constant 0 : index
    %c224_296 = arith.constant 224 : index
    %188 = vector.load %arg1[%c0_293, %c3_294, %c0_295, %c224_296] : memref<1x4x3x256xf32, #tpu.memory_space<vmem>>, vector<1x1x3x16xf32>
    %189 = vector.shape_cast %188 : vector<1x1x3x16xf32> to vector<3x16xf32>
    %c0_297 = arith.constant 0 : index
    %c1423 = arith.constant 1423 : index
    %190 = vector.load %arg8[%c0_297, %c1423] : memref<3x1664xf32, #tpu.memory_space<vmem>>, vector<3x16xf32>
    tpu.vector_store %arg8[%c0_297, %c1423], %189 {strides = array<i32>} : memref<3x1664xf32, #tpu.memory_space<vmem>>, vector<3x16xf32>,
    %c0_298 = arith.constant 0 : index
    %c3_299 = arith.constant 3 : index
    %c0_300 = arith.constant 0 : index
    %c240_301 = arith.constant 240 : index
    %191 = vector.load %arg1[%c0_298, %c3_299, %c0_300, %c240_301] : memref<1x4x3x256xf32, #tpu.memory_space<vmem>>, vector<1x1x3x16xf32>
    %192 = vector.shape_cast %191 : vector<1x1x3x16xf32> to vector<3x16xf32>
    %c0_302 = arith.constant 0 : index
    %c1441 = arith.constant 1441 : index
    %193 = vector.load %arg8[%c0_302, %c1441] : memref<3x1664xf32, #tpu.memory_space<vmem>>, vector<3x16xf32>
    tpu.vector_store %arg8[%c0_302, %c1441], %192 {strides = array<i32>} : memref<3x1664xf32, #tpu.memory_space<vmem>>, vector<3x16xf32>,
    %cst_303 = arith.constant 0.000000e+00 : f32
    %194 = vector.broadcast %cst_303 : f32 to vector<5x1536xf32>
    %c27 = arith.constant 27 : index
    %c0_304 = arith.constant 0 : index
    %195 = vector.load %arg9[%c27, %c0_304] : memref<32x1536xf32, #tpu.memory_space<vmem>>, vector<5x1536xf32>
    tpu.vector_store %arg9[%c27, %c0_304], %194 {strides = array<i32>} : memref<32x1536xf32, #tpu.memory_space<vmem>>, vector<5x1536xf32>,
    %c0_305 = arith.constant 0 : index
    %c0_306 = arith.constant 0 : index
    %196 = vector.load %arg8[%c0_305, %c0_306] : memref<3x1664xf32, #tpu.memory_space<vmem>>, vector<3x1536xf32>
    %c0_307 = arith.constant 0 : index
    %c0_308 = arith.constant 0 : index
    %197 = vector.load %arg9[%c0_307, %c0_308] : memref<32x1536xf32, #tpu.memory_space<vmem>>, vector<3x1536xf32>
    tpu.vector_store %arg9[%c0_307, %c0_308], %196 {strides = array<i32>} : memref<32x1536xf32, #tpu.memory_space<vmem>>, vector<3x1536xf32>,
    %c0_309 = arith.constant 0 : index
    %c1_310 = arith.constant 1 : index
    %198 = vector.load %arg8[%c0_309, %c1_310] : memref<3x1664xf32, #tpu.memory_space<vmem>>, vector<3x1536xf32>
    %c3_311 = arith.constant 3 : index
    %c0_312 = arith.constant 0 : index
    %199 = vector.load %arg9[%c3_311, %c0_312] : memref<32x1536xf32, #tpu.memory_space<vmem>>, vector<3x1536xf32>
    tpu.vector_store %arg9[%c3_311, %c0_312], %198 {strides = array<i32>} : memref<32x1536xf32, #tpu.memory_space<vmem>>, vector<3x1536xf32>,
    %c0_313 = arith.constant 0 : index
    %c2_314 = arith.constant 2 : index
    %200 = vector.load %arg8[%c0_313, %c2_314] : memref<3x1664xf32, #tpu.memory_space<vmem>>, vector<3x1536xf32>
    %c6 = arith.constant 6 : index
    %c0_315 = arith.constant 0 : index
    %201 = vector.load %arg9[%c6, %c0_315] : memref<32x1536xf32, #tpu.memory_space<vmem>>, vector<3x1536xf32>
    tpu.vector_store %arg9[%c6, %c0_315], %200 {strides = array<i32>} : memref<32x1536xf32, #tpu.memory_space<vmem>>, vector<3x1536xf32>,
    %c0_316 = arith.constant 0 : index
    %c18 = arith.constant 18 : index
    %202 = vector.load %arg8[%c0_316, %c18] : memref<3x1664xf32, #tpu.memory_space<vmem>>, vector<3x1536xf32>
    %c9 = arith.constant 9 : index
    %c0_317 = arith.constant 0 : index
    %203 = vector.load %arg9[%c9, %c0_317] : memref<32x1536xf32, #tpu.memory_space<vmem>>, vector<3x1536xf32>
    tpu.vector_store %arg9[%c9, %c0_317], %202 {strides = array<i32>} : memref<32x1536xf32, #tpu.memory_space<vmem>>, vector<3x1536xf32>,
    %c0_318 = arith.constant 0 : index
    %c19_319 = arith.constant 19 : index
    %204 = vector.load %arg8[%c0_318, %c19_319] : memref<3x1664xf32, #tpu.memory_space<vmem>>, vector<3x1536xf32>
    %c12 = arith.constant 12 : index
    %c0_320 = arith.constant 0 : index
    %205 = vector.load %arg9[%c12, %c0_320] : memref<32x1536xf32, #tpu.memory_space<vmem>>, vector<3x1536xf32>
    tpu.vector_store %arg9[%c12, %c0_320], %204 {strides = array<i32>} : memref<32x1536xf32, #tpu.memory_space<vmem>>, vector<3x1536xf32>,
    %c0_321 = arith.constant 0 : index
    %c20 = arith.constant 20 : index
    %206 = vector.load %arg8[%c0_321, %c20] : memref<3x1664xf32, #tpu.memory_space<vmem>>, vector<3x1536xf32>
    %c15 = arith.constant 15 : index
    %c0_322 = arith.constant 0 : index
    %207 = vector.load %arg9[%c15, %c0_322] : memref<32x1536xf32, #tpu.memory_space<vmem>>, vector<3x1536xf32>
    tpu.vector_store %arg9[%c15, %c0_322], %206 {strides = array<i32>} : memref<32x1536xf32, #tpu.memory_space<vmem>>, vector<3x1536xf32>,
    %c0_323 = arith.constant 0 : index
    %c36 = arith.constant 36 : index
    %208 = vector.load %arg8[%c0_323, %c36] : memref<3x1664xf32, #tpu.memory_space<vmem>>, vector<3x1536xf32>
    %c18_324 = arith.constant 18 : index
    %c0_325 = arith.constant 0 : index
    %209 = vector.load %arg9[%c18_324, %c0_325] : memref<32x1536xf32, #tpu.memory_space<vmem>>, vector<3x1536xf32>
    tpu.vector_store %arg9[%c18_324, %c0_325], %208 {strides = array<i32>} : memref<32x1536xf32, #tpu.memory_space<vmem>>, vector<3x1536xf32>,
    %c0_326 = arith.constant 0 : index
    %c37_327 = arith.constant 37 : index
    %210 = vector.load %arg8[%c0_326, %c37_327] : memref<3x1664xf32, #tpu.memory_space<vmem>>, vector<3x1536xf32>
    %c21 = arith.constant 21 : index
    %c0_328 = arith.constant 0 : index
    %211 = vector.load %arg9[%c21, %c0_328] : memref<32x1536xf32, #tpu.memory_space<vmem>>, vector<3x1536xf32>
    tpu.vector_store %arg9[%c21, %c0_328], %210 {strides = array<i32>} : memref<32x1536xf32, #tpu.memory_space<vmem>>, vector<3x1536xf32>,
    %c0_329 = arith.constant 0 : index
    %c38 = arith.constant 38 : index
    %212 = vector.load %arg8[%c0_329, %c38] : memref<3x1664xf32, #tpu.memory_space<vmem>>, vector<3x1536xf32>
    %c24 = arith.constant 24 : index
    %c0_330 = arith.constant 0 : index
    %213 = vector.load %arg9[%c24, %c0_330] : memref<32x1536xf32, #tpu.memory_space<vmem>>, vector<3x1536xf32>
    tpu.vector_store %arg9[%c24, %c0_330], %212 {strides = array<i32>} : memref<32x1536xf32, #tpu.memory_space<vmem>>, vector<3x1536xf32>,
    %c0_331 = arith.constant 0 : index
    %c0_332 = arith.constant 0 : index
    %214 = vector.load %arg2[%c0_331, %c0_332] : memref<16x32xbf16, #tpu.memory_space<vmem>>, vector<16x32xbf16>
    %c0_333 = arith.constant 0 : index
    %c0_334 = arith.constant 0 : index
    %215 = vector.load %arg9[%c0_333, %c0_334] : memref<32x1536xf32, #tpu.memory_space<vmem>>, vector<32x1536xf32>
    %216 = arith.truncf %215 : vector<32x1536xf32> to vector<32x1536xbf16>
    %cst_335 = arith.constant dense<0.000000e+00> : vector<16x1536xf32>
    %217 = tpu.matmul %214, %216, %cst_335 {dimension_numbers = #tpu.dot_dimension_numbers<[1], [0], [0], [1], [0, 0, 1, 1], [], []>} : vector<16x32xbf16>, vector<32x1536xbf16>, vector<16x1536xf32> -> vector<16x1536xf32>
    %c0_336 = arith.constant 0 : index
    %c0_337 = arith.constant 0 : index
    %218 = vector.load %arg3[%c0_336, %c0_337] : memref<16x1xf32, #tpu.memory_space<vmem>>, vector<16x1xf32>
    %219 = vector.broadcast %218 : vector<16x1xf32> to vector<16x1536xf32>
    %220 = arith.addf %217, %219 : vector<16x1536xf32>
    %cst_338 = arith.constant 0.000000e+00 : f32
    %221 = vector.broadcast %cst_338 : f32 to vector<16x1536xf32>
    %222 = arith.maximumf %220, %221 : vector<16x1536xf32>
    %c0_339 = arith.constant 0 : index
    %c0_340 = arith.constant 0 : index
    %223 = vector.load %arg4[%c0_339, %c0_340] : memref<1536x4xf32, #tpu.memory_space<vmem>>, vector<1536x4xf32>
    %cst_341 = arith.constant dense<0.000000e+00> : vector<16x4xf32>
    %224 = tpu.matmul %222, %223, %cst_341 {dimension_numbers = #tpu.dot_dimension_numbers<[1], [0], [0], [1], [0, 0, 1, 1], [], []>} : vector<16x1536xf32>, vector<1536x4xf32>, vector<16x4xf32> -> vector<16x4xf32>
    %c0_342 = arith.constant 0 : index
    %c0_343 = arith.constant 0 : index
    %225 = vector.load %arg5[%c0_342, %c0_343] : memref<10x16xf32, #tpu.memory_space<vmem>>, vector<10x16xf32>
    %cst_344 = arith.constant dense<0.000000e+00> : vector<10x4xf32>
    %226 = tpu.matmul %225, %224, %cst_344 {dimension_numbers = #tpu.dot_dimension_numbers<[1], [0], [0], [1], [0, 0, 1, 1], [], []>} : vector<10x16xf32>, vector<16x4xf32>, vector<10x4xf32> -> vector<10x4xf32>
    %c0_345 = arith.constant 0 : index
    %c0_346 = arith.constant 0 : index
    %227 = vector.load %arg6[%c0_345, %c0_346] : memref<10x1xf32, #tpu.memory_space<vmem>>, vector<10x1xf32>
    %228 = vector.broadcast %227 : vector<10x1xf32> to vector<10x4xf32>
    %229 = arith.addf %226, %228 : vector<10x4xf32>
    %c0_347 = arith.constant 0 : index
    %c0_348 = arith.constant 0 : index
    %c0_349 = arith.constant 0 : index
    %230 = vector.load %arg7[%c0_347, %c0_348, %c0_349] : memref<1x10x4xf32, #tpu.memory_space<vmem>>, vector<1x10x4xf32>
    %231 = vector.shape_cast %230 : vector<1x10x4xf32> to vector<10x4xf32>
    %232 = vector.shape_cast %229 : vector<10x4xf32> to vector<1x10x4xf32>
    tpu.vector_store %arg7[%c0_347, %c0_348, %c0_349], %232 {strides = array<i32>} : memref<1x10x4xf32, #tpu.memory_space<vmem>>, vector<1x10x4xf32>,
    return
  }
  func.func @transform_0(%arg0: i32) -> (i32, i32, i32, i32) {
    %c0_i32 = arith.constant 0 : i32
    %c0_i32_0 = arith.constant 0 : i32
    %c0_i32_1 = arith.constant 0 : i32
    %c0_i32_2 = arith.constant 0 : i32
    return %arg0, %c0_i32, %c0_i32_0, %c0_i32_1 : i32, i32, i32, i32
  }
  func.func @transform_1(%arg0: i32) -> (i32, i32) {
    %c0_i32 = arith.constant 0 : i32
    %c0_i32_0 = arith.constant 0 : i32
    %c0_i32_1 = arith.constant 0 : i32
    return %c0_i32, %c0_i32_0 : i32, i32
  }
  func.func @transform_2(%arg0: i32) -> (i32, i32) {
    %c0_i32 = arith.constant 0 : i32
    %c0_i32_0 = arith.constant 0 : i32
    %c0_i32_1 = arith.constant 0 : i32
    return %c0_i32, %c0_i32_0 : i32, i32
  }
  func.func @transform_3(%arg0: i32) -> (i32, i32) {
    %c0_i32 = arith.constant 0 : i32
    %c0_i32_0 = arith.constant 0 : i32
    %c0_i32_1 = arith.constant 0 : i32
    return %c0_i32, %c0_i32_0 : i32, i32
  }
  func.func @transform_4(%arg0: i32) -> (i32, i32) {
    %c0_i32 = arith.constant 0 : i32
    %c0_i32_0 = arith.constant 0 : i32
    %c0_i32_1 = arith.constant 0 : i32
    return %c0_i32, %c0_i32_0 : i32, i32
  }
  func.func @transform_5(%arg0: i32) -> (i32, i32) {
    %c0_i32 = arith.constant 0 : i32
    %c0_i32_0 = arith.constant 0 : i32
    %c0_i32_1 = arith.constant 0 : i32
    return %c0_i32, %c0_i32_0 : i32, i32
  }
  func.func @transform_6(%arg0: i32) -> (i32, i32, i32) {
    %c0_i32 = arith.constant 0 : i32
    %c0_i32_0 = arith.constant 0 : i32
    %c0_i32_1 = arith.constant 0 : i32
    return %arg0, %c0_i32, %c0_i32_0 : i32, i32, i32
  }
}

</mosaic_0001>

<llo_original>
// kernel: test_model_forward.1
$region0: #{test_model_forward.1}
  #allocation0 [shape = 'u32[]', space=smem, size = 0x4, offset = 0x4, fixed_abs, tag = 'smem constant byte address 0x4 - core index']
  #allocation1 [shape = 'u32[144,128]{1,0:T(1,128)}', space=vmem, size = 0x12000, scoped, tag = 'internal scratch']
  #allocation2 [shape = 'f32[3,1664]{1,0:T(4,128)}', space=vmem, size = 0x6800, scoped, tag = 'scratch operand']
  #allocation3 [shape = 'f32[32,1536]{1,0:T(8,128)}', space=vmem, size = 0x30000, scoped, tag = 'scratch operand']
  %s0 = inlined_call_operand.vmem [shape: f32[2,4,3,256], index: 0, kind: input, shape index: {}]
  %s1 = inlined_call_operand.vmem [shape: bf16[16,32], index: 1, kind: input, shape index: {}]
  %s2 = inlined_call_operand.vmem [shape: f32[16,1], index: 2, kind: input, shape index: {}]
  %s3 = inlined_call_operand.vmem [shape: f32[1536,4], index: 3, kind: input, shape index: {}]
  %s4 = inlined_call_operand.vmem [shape: f32[10,16], index: 4, kind: input, shape index: {}]
  %s5 = inlined_call_operand.vmem [shape: f32[10,1], index: 5, kind: input, shape index: {}]
  %s6 = inlined_call_operand.vmem [shape: f32[2,10,4], index: 6, kind: output, shape index: {}]
  %s7 = sld [smem:[#allocation0]]
  $region57: #{test_model_forward.1} parent=0
    _
  %s9 = ssub.s32 1, %s7
  %s10 = scalar_select 0, %s9, %s7
  loop: start=0, step=1, limit=4
  $region2: #{test_model_forward.1} parent=0 // loop_pre_header
    _
  $region3: #{test_model_forward.1} parent=0 // loop_header
    %s12 = sphi 0, %s16
    %p13 = scmp.ge.s32.totalorder %s12, 4
    %s22 = sphi 0, %s24
    %s25 = sphi 0, %s22
    %s26 = sphi 0, %s25
    %s42 = sphi 0, %s26
    %s46 = sphi 0, %s46
    %s48 = sphi 0, %s46
    %s49 = sphi 0, %s48
    %s63 = sphi 0, %s49
    %s67 = sphi 0, %s67
    %s69 = sphi 0, %s67
    %s70 = sphi 0, %s69
    %s84 = sphi 0, %s70
    %s88 = sphi 0, %s88
    %s90 = sphi 0, %s88
    %s91 = sphi 0, %s90
    %s105 = sphi 0, %s91
    %s109 = sphi 0, %s109
    %s111 = sphi 0, %s109
    %s112 = sphi 0, %s111
    %s126 = sphi 0, %s112
    %s130 = sphi 0, %s130
    %s132 = sphi 0, %s130
    %s133 = sphi 0, %s132
    %s147 = sphi 0, %s133
    %s153 = sphi 0, %s155
    %s156 = sphi 0, %s153
    %s157 = sphi 0, %s156
    %s173 = sphi 0, %s157
  $region4: #{test_model_forward.1} parent=0 // loop_header_branch
    %15 = sbr.rel (%p13) target = $region8
  $region5: #{test_model_forward.1} parent=0 // loop_body
    %s17 = ssub.s32 %s12, 1
    %s18 = ssub.s32 %s12, 2
    %s19 = sadd.s32 %s12, 1
    %s20 = ssub.s32 %s12, %s19
    %p21 = scmp.eq.s32.totalorder %s20, 0
    %s23 = sadd.s32 %s22, 1
    %s24 = scalar_select %p21, %s22, %s23
    %p27 = pneg %p21
    %p28 = scmp.eq.s32.totalorder %s12, 1
    %p29 = por %p27, %p28
    %p30 = scmp.ne.s32.totalorder %s22, %s25
    %p31 = scmp.eq.s32.totalorder %s12, 0
    %p32 = por %p30, %p31
    %p33 = scmp.ne.s32.totalorder %s22, %s25
    %p34 = scmp.eq.s32.totalorder %s17, 1
    %p35 = por %p33, %p34
    %p36 = scmp.ne.s32.totalorder %s25, %s26
    %p37 = scmp.eq.s32.totalorder %s17, 0
    %p38 = por %p36, %p37
    %p39 = scmp.ne.s32.totalorder %s25, %s26
    %p40 = scmp.eq.s32.totalorder %s18, 1
    %p41 = por %p39, %p40
    %p43 = scmp.ne.s32.totalorder %s26, %s42
    %p44 = scmp.eq.s32.totalorder %s18, 0
    %p45 = por %p43, %p44
    %s47 = sadd.s32 %s46, 1
    %p50 = scmp.eq.s32.totalorder %s12, 1
    %p51 = scmp.ne.s32.totalorder %s46, %s48
    %p52 = scmp.eq.s32.totalorder %s12, 0
    %p53 = por %p51, %p52
    %p54 = scmp.ne.s32.totalorder %s46, %s48
    %p55 = scmp.eq.s32.totalorder %s17, 1
    %p56 = por %p54, %p55
    %p57 = scmp.ne.s32.totalorder %s48, %s49
    %p58 = scmp.eq.s32.totalorder %s17, 0
    %p59 = por %p57, %p58
    %p60 = scmp.ne.s32.totalorder %s48, %s49
    %p61 = scmp.eq.s32.totalorder %s18, 1
    %p62 = por %p60, %p61
    %p64 = scmp.ne.s32.totalorder %s49, %s63
    %p65 = scmp.eq.s32.totalorder %s18, 0
    %p66 = por %p64, %p65
    %s68 = sadd.s32 %s67, 1
    %p71 = scmp.eq.s32.totalorder %s12, 1
    %p72 = scmp.ne.s32.totalorder %s67, %s69
    %p73 = scmp.eq.s32.totalorder %s12, 0
    %p74 = por %p72, %p73
    %p75 = scmp.ne.s32.totalorder %s67, %s69
    %p76 = scmp.eq.s32.totalorder %s17, 1
    %p77 = por %p75, %p76
    %p78 = scmp.ne.s32.totalorder %s69, %s70
    %p79 = scmp.eq.s32.totalorder %s17, 0
    %p80 = por %p78, %p79
    %p81 = scmp.ne.s32.totalorder %s69, %s70
    %p82 = scmp.eq.s32.totalorder %s18, 1
    %p83 = por %p81, %p82
    %p85 = scmp.ne.s32.totalorder %s70, %s84
    %p86 = scmp.eq.s32.totalorder %s18, 0
    %p87 = por %p85, %p86
    %s89 = sadd.s32 %s88, 1
    %p92 = scmp.eq.s32.totalorder %s12, 1
    %p93 = scmp.ne.s32.totalorder %s88, %s90
    %p94 = scmp.eq.s32.totalorder %s12, 0
    %p95 = por %p93, %p94
    %p96 = scmp.ne.s32.totalorder %s88, %s90
    %p97 = scmp.eq.s32.totalorder %s17, 1
    %p98 = por %p96, %p97
    %p99 = scmp.ne.s32.totalorder %s90, %s91
    %p100 = scmp.eq.s32.totalorder %s17, 0
    %p101 = por %p99, %p100
    %p102 = scmp.ne.s32.totalorder %s90, %s91
    %p103 = scmp.eq.s32.totalorder %s18, 1
    %p104 = por %p102, %p103
    %p106 = scmp.ne.s32.totalorder %s91, %s105
    %p107 = scmp.eq.s32.totalorder %s18, 0
    %p108 = por %p106, %p107
    %s110 = sadd.s32 %s109, 1
    %p113 = scmp.eq.s32.totalorder %s12, 1
    %p114 = scmp.ne.s32.totalorder %s109, %s111
    %p115 = scmp.eq.s32.totalorder %s12, 0
    %p116 = por %p114, %p115
    %p117 = scmp.ne.s32.totalorder %s109, %s111
    %p118 = scmp.eq.s32.totalorder %s17, 1
    %p119 = por %p117, %p118
    %p120 = scmp.ne.s32.totalorder %s111, %s112
    %p121 = scmp.eq.s32.totalorder %s17, 0
    %p122 = por %p120, %p121
    %p123 = scmp.ne.s32.totalorder %s111, %s112
    %p124 = scmp.eq.s32.totalorder %s18, 1
    %p125 = por %p123, %p124
    %p127 = scmp.ne.s32.totalorder %s112, %s126
    %p128 = scmp.eq.s32.totalorder %s18, 0
    %p129 = por %p127, %p128
    %s131 = sadd.s32 %s130, 1
    %p134 = scmp.eq.s32.totalorder %s12, 1
    %p135 = scmp.ne.s32.totalorder %s130, %s132
    %p136 = scmp.eq.s32.totalorder %s12, 0
    %p137 = por %p135, %p136
    %p138 = scmp.ne.s32.totalorder %s130, %s132
    %p139 = scmp.eq.s32.totalorder %s17, 1
    %p140 = por %p138, %p139
    %p141 = scmp.ne.s32.totalorder %s132, %s133
    %p142 = scmp.eq.s32.totalorder %s17, 0
    %p143 = por %p141, %p142
    %p144 = scmp.ne.s32.totalorder %s132, %s133
    %p145 = scmp.eq.s32.totalorder %s18, 1
    %p146 = por %p144, %p145
    %p148 = scmp.ne.s32.totalorder %s133, %s147
    %p149 = scmp.eq.s32.totalorder %s18, 0
    %p150 = por %p148, %p149
    %s151 = ssub.s32 %s12, %s19
    %p152 = scmp.eq.s32.totalorder %s151, 0
    %s154 = sadd.s32 %s153, 1
    %s155 = scalar_select %p152, %s153, %s154
    %p158 = pneg %p152
    %p159 = scmp.eq.s32.totalorder %s12, 1
    %p160 = por %p158, %p159
    %p161 = scmp.ne.s32.totalorder %s153, %s156
    %p162 = scmp.eq.s32.totalorder %s12, 0
    %p163 = por %p161, %p162
    %p164 = scmp.ne.s32.totalorder %s153, %s156
    %p165 = scmp.eq.s32.totalorder %s17, 1
    %p166 = por %p164, %p165
    %p167 = scmp.ne.s32.totalorder %s156, %s157
    %p168 = scmp.eq.s32.totalorder %s17, 0
    %p169 = por %p167, %p168
    %p170 = scmp.ne.s32.totalorder %s156, %s157
    %p171 = scmp.eq.s32.totalorder %s18, 1
    %p172 = por %p170, %p171
    %p174 = scmp.ne.s32.totalorder %s157, %s173
    %p175 = scmp.eq.s32.totalorder %s18, 0
    %p176 = por %p174, %p175
    %p177 = scmp.le.s32.totalorder 1, %s12
    %p178 = scmp.lt.s32.totalorder %s12, 3
    %p179 = pnand %p177, %p178
    %p180 = pneg %p179
    // Predicated region
    $region9: #{test_model_forward.1} parent=5 // pred_check
      _
    $region10: #{test_model_forward.1} parent=5 // pred_check_branch
      %182 = sbr.rel (%p179) target = $region12
    $region11: #{test_model_forward.1} parent=5 // pred_region
      %s183 = ssub.s32 %s12, 1
      // Predicated region
      $region13: #{test_model_forward.1} parent=11 // pred_check
        %p184 = pneg %p59
      $region14: #{test_model_forward.1} parent=11 // pred_check_branch
        %186 = sbr.rel (%p184) target = $region16
      $region15: #{test_model_forward.1} parent=11 // pred_region
        _
      $region16: #{test_model_forward.1} parent=11 // pred_fallthru
        _
      // Predicated region
      $region17: #{test_model_forward.1} parent=11 // pred_check
        %p187 = pneg %p80
      $region18: #{test_model_forward.1} parent=11 // pred_check_branch
        %189 = sbr.rel (%p187) target = $region20
      $region19: #{test_model_forward.1} parent=11 // pred_region
        _
      $region20: #{test_model_forward.1} parent=11 // pred_fallthru
        _
      // Predicated region
      $region21: #{test_model_forward.1} parent=11 // pred_check
        %p190 = pneg %p101
      $region22: #{test_model_forward.1} parent=11 // pred_check_branch
        %192 = sbr.rel (%p190) target = $region24
      $region23: #{test_model_forward.1} parent=11 // pred_region
        _
      $region24: #{test_model_forward.1} parent=11 // pred_fallthru
        _
      // Predicated region
      $region25: #{test_model_forward.1} parent=11 // pred_check
        %p193 = pneg %p122
      $region26: #{test_model_forward.1} parent=11 // pred_check_branch
        %195 = sbr.rel (%p193) target = $region28
      $region27: #{test_model_forward.1} parent=11 // pred_region
        _
      $region28: #{test_model_forward.1} parent=11 // pred_fallthru
        _
      // Predicated region
      $region29: #{test_model_forward.1} parent=11 // pred_check
        %p196 = pneg %p143
      $region30: #{test_model_forward.1} parent=11 // pred_check_branch
        %198 = sbr.rel (%p196) target = $region32
      $region31: #{test_model_forward.1} parent=11 // pred_region
        _
      $region32: #{test_model_forward.1} parent=11 // pred_fallthru
        _
    $region12: #{test_model_forward.1} parent=5 // pred_fallthru
      _
    %p199 = scmp.lt.s32.totalorder %s12, 2
    // Predicated region
    $region33: #{test_model_forward.1} parent=5 // pred_check
      %p200 = pneg %p199
    $region34: #{test_model_forward.1} parent=5 // pred_check_branch
      %202 = sbr.rel (%p200) target = $region36
    $region35: #{test_model_forward.1} parent=5 // pred_region
      // Predicated region
      $region37: #{test_model_forward.1} parent=35 // pred_check
        %p203 = pneg %p32
      $region38: #{test_model_forward.1} parent=35 // pred_check_branch
        %205 = sbr.rel (%p203) target = $region40
      $region39: #{test_model_forward.1} parent=35 // pred_region
        %p206 = scmp.lt.s32.totalorder %s12, 1
        %s207 = scalar_select %p206, %s12, 1
        %s208 = smul.addr %s207, 8
        %s209 = smul.addr %s208, 4
        %s210 = scalar_lea.vmem %s0, %s209
      $region40: #{test_model_forward.1} parent=35 // pred_fallthru
        _
    $region36: #{test_model_forward.1} parent=5 // pred_fallthru
      _
    %p211 = scmp.le.s32.totalorder 1, %s12
    %p212 = scmp.lt.s32.totalorder %s12, 3
    %p213 = pnand %p211, %p212
    %p214 = pneg %p213
    // Predicated region
    $region41: #{test_model_forward.1} parent=5 // pred_check
      _
    $region42: #{test_model_forward.1} parent=5 // pred_check_branch
      %216 = sbr.rel (%p213) target = $region44
    $region43: #{test_model_forward.1} parent=5 // pred_region
      %s217 = ssub.s32 %s12, 1
      %p218 = scmp.lt.s32.totalorder %s17, 1
      %s219 = scalar_select %p218, %s17, 1
      %s220 = smul.addr %s219, 8
      %s221 = smul.addr %s220, 4
      %s222 = scalar_lea.vmem %s0, %s221
      %p223 = pneg %p38
      %p224 = pneg %p35
      %p225 = pneg %p59
      %p226 = pneg %p56
      %p227 = pneg %p80
      %p228 = pneg %p77
      %p229 = pneg %p101
      %p230 = pneg %p98
      %p231 = pneg %p122
      %p232 = pneg %p119
      %p233 = pneg %p143
      %p234 = pneg %p140
      %p235 = pneg %p169
      %p236 = pneg %p166
      %p237 = scmp.lt.s32.totalorder %s17, 1
      %s238 = scalar_select %p237, %s17, 1
      %s239 = smul.addr %s238, 2
      %s240 = smul.addr %s239, 8
      %s241 = scalar_lea.vmem %s6, %s240
      %p242 = scmp.lt.s32.totalorder %s17, 1
      %s243 = scalar_select %p242, %s17, 1
      %s244 = smul.addr %s243, 8
      %s245 = smul.addr %s244, 4
      %s246 = scalar_lea.vmem %s0, %s245
      %p247 = scmp.lt.s32.totalorder %s17, 1
      %s248 = scalar_select %p247, %s17, 1
      %s249 = smul.addr %s248, 2
      %s250 = smul.addr %s249, 8
      %s251 = scalar_lea.vmem %s6, %s250
      %253 = vst [vmem:[#allocation2] sm:$0x77] 0.0
      %254 = vst [vmem:[#allocation2 + $0x8] sm:$0x77] 0.0
      %255 = vst [vmem:[#allocation2 + $0x10] sm:$0x77] 0.0
      %256 = vst [vmem:[#allocation2 + $0x18] sm:$0x77] 0.0
      %257 = vst [vmem:[#allocation2 + $0x20] sm:$0x77] 0.0
      %258 = vst [vmem:[#allocation2 + $0x28] sm:$0x77] 0.0
      %259 = vst [vmem:[#allocation2 + $0x30] sm:$0x7] 0.0
      %v260 = vld [vmem:[%s246] sm:$0x7]
      %262 = vrot.lane.b32.xlu0 %v260, 19
      %v263 = vpop.permute.xlu0 %262
      %vm265 = vcmask 280728
      %266 = vst.msk [vmem:[#allocation2] sm:$0x7] %vm265, %v263
      %v267 = vld [vmem:[%s246] sm:$0x7]
      %269 = vrot.lane.b32.xlu0 %v267, 21
      %v270 = vpop.permute.xlu0 %269
      %vm272 = vcmask 428328
      %273 = vst.msk [vmem:[#allocation2] sm:$0x7] %vm272, %v270
      %v274 = vld [vmem:[%s246] sm:$0x7]
      %276 = vrot.lane.b32.xlu0 %v274, 23
      %v277 = vpop.permute.xlu0 %276
      %vm279 = vcmask 575928
      %280 = vst.msk [vmem:[#allocation2] sm:$0x7] %vm279, %v277
      %v281 = vld [vmem:[%s246] sm:$0x7]
      %283 = vrot.lane.b32.xlu0 %v281, 25
      %v284 = vpop.permute.xlu0 %283
      %vm286 = vcmask 723528
      %287 = vst.msk [vmem:[#allocation2] sm:$0x7] %vm286, %v284
      %v288 = vld [vmem:[%s246] sm:$0x7]
      %290 = vrot.lane.b32.xlu0 %v288, 27
      %v291 = vpop.permute.xlu0 %290
      %vm293 = vcmask 871128
      %294 = vst.msk [vmem:[#allocation2] sm:$0x7] %vm293, %v291
      %v295 = vld [vmem:[%s246] sm:$0x7]
      %297 = vrot.lane.b32.xlu0 %v295, 29
      %v298 = vpop.permute.xlu0 %297
      %vm300 = vcmask 1018728
      %301 = vst.msk [vmem:[#allocation2] sm:$0x7] %vm300, %v298
      %v302 = vld [vmem:[%s246] sm:$0x7]
      %304 = vrot.lane.b32.xlu0 %v302, 31
      %v305 = vpop.permute.xlu0 %304
      %v306 = vrot.slane %v305, 4
      %vm307 = vcmask 252928
      %v308 = vsel %vm307, %v306, %v305
      %vm310 = vcmask 1043448
      %vm311 = vcmask 120836
      %vm312 = vmor %vm311, %vm310
      %313 = vst.msk [vmem:[#allocation2] sm:$0x77] %vm312, %v308
      %v314 = vld [vmem:[%s246] sm:$0x7]
      %316 = vrot.lane.b32.xlu0 %v314, 33
      %v317 = vpop.permute.xlu0 %316
      %vm319 = vcmask 264328
      %320 = vst.msk [vmem:[#allocation2 + $0x4] sm:$0x7] %vm319, %v317
      %v321 = vld [vmem:[%s246 + $0x4] sm:$0x7]
      %323 = vrot.lane.b32.xlu0 %v321, 35
      %v324 = vpop.permute.xlu0 %323
      %vm326 = vcmask 411928
      %327 = vst.msk [vmem:[#allocation2 + $0x4] sm:$0x7] %vm326, %v324
      %v328 = vld [vmem:[%s246 + $0x4] sm:$0x7]
      %330 = vrot.lane.b32.xlu0 %v328, 37
      %v331 = vpop.permute.xlu0 %330
      %vm333 = vcmask 559528
      %334 = vst.msk [vmem:[#allocation2 + $0x4] sm:$0x7] %vm333, %v331
      %v335 = vld [vmem:[%s246 + $0x4] sm:$0x7]
      %337 = vrot.lane.b32.xlu0 %v335, 39
      %v338 = vpop.permute.xlu0 %337
      %vm340 = vcmask 707128
      %341 = vst.msk [vmem:[#allocation2 + $0x4] sm:$0x7] %vm340, %v338
      %v342 = vld [vmem:[%s246 + $0x4] sm:$0x7]
      %344 = vrot.lane.b32.xlu0 %v342, 41
      %v345 = vpop.permute.xlu0 %344
      %vm347 = vcmask 854728
      %348 = vst.msk [vmem:[#allocation2 + $0x4] sm:$0x7] %vm347, %v345
      %v349 = vld [vmem:[%s246 + $0x4] sm:$0x7]
      %351 = vrot.lane.b32.xlu0 %v349, 43
      %v352 = vpop.permute.xlu0 %351
      %vm354 = vcmask 1002328
      %355 = vst.msk [vmem:[#allocation2 + $0x4] sm:$0x7] %vm354, %v352
      %v356 = vld [vmem:[%s246 + $0x4] sm:$0x7]
      %358 = vrot.lane.b32.xlu0 %v356, 45
      %v359 = vpop.permute.xlu0 %358
      %v360 = vrot.slane %v359, 4
      %vm361 = vcmask 367616
      %v362 = vsel %vm361, %v360, %v359
      %vm364 = vcmask 1043432
      %vm365 = vcmask 104452
      %vm366 = vmor %vm365, %vm364
      %367 = vst.msk [vmem:[#allocation2 + $0x4] sm:$0x77] %vm366, %v362
      %v368 = vld [vmem:[%s246 + $0x4] sm:$0x7]
      %370 = vrot.lane.b32.xlu0 %v368, 47
      %v371 = vpop.permute.xlu0 %370
      %vm373 = vcmask 247928
      %374 = vst.msk [vmem:[#allocation2 + $0x8] sm:$0x7] %vm373, %v371
      %v375 = vld [vmem:[%s246 + $0x4] sm:$0x7]
      %377 = vrot.lane.b32.xlu0 %v375, 49
      %v378 = vpop.permute.xlu0 %377
      %vm380 = vcmask 395528
      %381 = vst.msk [vmem:[#allocation2 + $0x8] sm:$0x7] %vm380, %v378
      %s382 = scalar_lea.vmem %s246, 8
      %v383 = vld [vmem:[%s382] sm:$0x7]
      %385 = vrot.lane.b32.xlu0 %v383, 19
      %v386 = vpop.permute.xlu0 %385
      %388 = vst.msk [vmem:[#allocation2 + $0xc] sm:$0x7] %vm265, %v386
      %v389 = vld [vmem:[%s382] sm:$0x7]
      %391 = vrot.lane.b32.xlu0 %v389, 21
      %v392 = vpop.permute.xlu0 %391
      %394 = vst.msk [vmem:[#allocation2 + $0xc] sm:$0x7] %vm272, %v392
      %v395 = vld [vmem:[%s382] sm:$0x7]
      %397 = vrot.lane.b32.xlu0 %v395, 23
      %v398 = vpop.permute.xlu0 %397
      %400 = vst.msk [vmem:[#allocation2 + $0xc] sm:$0x7] %vm279, %v398
      %v401 = vld [vmem:[%s382] sm:$0x7]
      %403 = vrot.lane.b32.xlu0 %v401, 25
      %v404 = vpop.permute.xlu0 %403
      %406 = vst.msk [vmem:[#allocation2 + $0xc] sm:$0x7] %vm286, %v404
      %v407 = vld [vmem:[%s382] sm:$0x7]
      %409 = vrot.lane.b32.xlu0 %v407, 27
      %v410 = vpop.permute.xlu0 %409
      %412 = vst.msk [vmem:[#allocation2 + $0xc] sm:$0x7] %vm293, %v410
      %v413 = vld [vmem:[%s382] sm:$0x7]
      %415 = vrot.lane.b32.xlu0 %v413, 29
      %v416 = vpop.permute.xlu0 %415
      %418 = vst.msk [vmem:[#allocation2 + $0xc] sm:$0x7] %vm300, %v416
      %v419 = vld [vmem:[%s382] sm:$0x7]
      %421 = vrot.lane.b32.xlu0 %v419, 31
      %v422 = vpop.permute.xlu0 %421
      %v423 = vrot.slane %v422, 4
      %v424 = vsel %vm307, %v423, %v422
      %426 = vst.msk [vmem:[#allocation2 + $0xc] sm:$0x77] %vm312, %v424
      %v427 = vld [vmem:[%s382] sm:$0x7]
      %429 = vrot.lane.b32.xlu0 %v427, 33
      %v430 = vpop.permute.xlu0 %429
      %432 = vst.msk [vmem:[#allocation2 + $0x10] sm:$0x7] %vm319, %v430
      %v433 = vld [vmem:[%s382 + $0x4] sm:$0x7]
      %435 = vrot.lane.b32.xlu0 %v433, 35
      %v436 = vpop.permute.xlu0 %435
      %438 = vst.msk [vmem:[#allocation2 + $0x10] sm:$0x7] %vm326, %v436
      %v439 = vld [vmem:[%s382 + $0x4] sm:$0x7]
      %441 = vrot.lane.b32.xlu0 %v439, 37
      %v442 = vpop.permute.xlu0 %441
      %444 = vst.msk [vmem:[#allocation2 + $0x10] sm:$0x7] %vm333, %v442
      %v445 = vld [vmem:[%s382 + $0x4] sm:$0x7]
      %447 = vrot.lane.b32.xlu0 %v445, 39
      %v448 = vpop.permute.xlu0 %447
      %450 = vst.msk [vmem:[#allocation2 + $0x10] sm:$0x7] %vm340, %v448
      %v451 = vld [vmem:[%s382 + $0x4] sm:$0x7]
      %453 = vrot.lane.b32.xlu0 %v451, 41
      %v454 = vpop.permute.xlu0 %453
      %456 = vst.msk [vmem:[#allocation2 + $0x10] sm:$0x7] %vm347, %v454
      %v457 = vld [vmem:[%s382 + $0x4] sm:$0x7]
      %459 = vrot.lane.b32.xlu0 %v457, 43
      %v460 = vpop.permute.xlu0 %459
      %462 = vst.msk [vmem:[#allocation2 + $0x10] sm:$0x7] %vm354, %v460
      %v463 = vld [vmem:[%s382 + $0x4] sm:$0x7]
      %465 = vrot.lane.b32.xlu0 %v463, 45
      %v466 = vpop.permute.xlu0 %465
      %v467 = vrot.slane %v466, 4
      %v468 = vsel %vm361, %v467, %v466
      %470 = vst.msk [vmem:[#allocation2 + $0x10] sm:$0x77] %vm366, %v468
      %v471 = vld [vmem:[%s382 + $0x4] sm:$0x7]
      %473 = vrot.lane.b32.xlu0 %v471, 47
      %v474 = vpop.permute.xlu0 %473
      %476 = vst.msk [vmem:[#allocation2 + $0x14] sm:$0x7] %vm373, %v474
      %v477 = vld [vmem:[%s382 + $0x4] sm:$0x7]
      %479 = vrot.lane.b32.xlu0 %v477, 49
      %v480 = vpop.permute.xlu0 %479
      %482 = vst.msk [vmem:[#allocation2 + $0x14] sm:$0x7] %vm380, %v480
      %s483 = scalar_lea.vmem %s246, 16
      %v484 = vld [vmem:[%s483] sm:$0x7]
      %486 = vrot.lane.b32.xlu0 %v484, 19
      %v487 = vpop.permute.xlu0 %486
      %489 = vst.msk [vmem:[#allocation2 + $0x18] sm:$0x7] %vm265, %v487
      %v490 = vld [vmem:[%s483] sm:$0x7]
      %492 = vrot.lane.b32.xlu0 %v490, 21
      %v493 = vpop.permute.xlu0 %492
      %495 = vst.msk [vmem:[#allocation2 + $0x18] sm:$0x7] %vm272, %v493
      %v496 = vld [vmem:[%s483] sm:$0x7]
      %498 = vrot.lane.b32.xlu0 %v496, 23
      %v499 = vpop.permute.xlu0 %498
      %501 = vst.msk [vmem:[#allocation2 + $0x18] sm:$0x7] %vm279, %v499
      %v502 = vld [vmem:[%s483] sm:$0x7]
      %504 = vrot.lane.b32.xlu0 %v502, 25
      %v505 = vpop.permute.xlu0 %504
      %507 = vst.msk [vmem:[#allocation2 + $0x18] sm:$0x7] %vm286, %v505
      %v508 = vld [vmem:[%s483] sm:$0x7]
      %510 = vrot.lane.b32.xlu0 %v508, 27
      %v511 = vpop.permute.xlu0 %510
      %513 = vst.msk [vmem:[#allocation2 + $0x18] sm:$0x7] %vm293, %v511
      %v514 = vld [vmem:[%s483] sm:$0x7]
      %516 = vrot.lane.b32.xlu0 %v514, 29
      %v517 = vpop.permute.xlu0 %516
      %519 = vst.msk [vmem:[#allocation2 + $0x18] sm:$0x7] %vm300, %v517
      %v520 = vld [vmem:[%s483] sm:$0x7]
      %522 = vrot.lane.b32.xlu0 %v520, 31
      %v523 = vpop.permute.xlu0 %522
      %v524 = vrot.slane %v523, 4
      %v525 = vsel %vm307, %v524, %v523
      %527 = vst.msk [vmem:[#allocation2 + $0x18] sm:$0x77] %vm312, %v525
      %v528 = vld [vmem:[%s483] sm:$0x7]
      %530 = vrot.lane.b32.xlu0 %v528, 33
      %v531 = vpop.permute.xlu0 %530
      %533 = vst.msk [vmem:[#allocation2 + $0x1c] sm:$0x7] %vm319, %v531
      %v534 = vld [vmem:[%s483 + $0x4] sm:$0x7]
      %536 = vrot.lane.b32.xlu0 %v534, 35
      %v537 = vpop.permute.xlu0 %536
      %539 = vst.msk [vmem:[#allocation2 + $0x1c] sm:$0x7] %vm326, %v537
      %v540 = vld [vmem:[%s483 + $0x4] sm:$0x7]
      %542 = vrot.lane.b32.xlu0 %v540, 37
      %v543 = vpop.permute.xlu0 %542
      %545 = vst.msk [vmem:[#allocation2 + $0x1c] sm:$0x7] %vm333, %v543
      %v546 = vld [vmem:[%s483 + $0x4] sm:$0x7]
      %548 = vrot.lane.b32.xlu0 %v546, 39
      %v549 = vpop.permute.xlu0 %548
      %551 = vst.msk [vmem:[#allocation2 + $0x1c] sm:$0x7] %vm340, %v549
      %v552 = vld [vmem:[%s483 + $0x4] sm:$0x7]
      %554 = vrot.lane.b32.xlu0 %v552, 41
      %v555 = vpop.permute.xlu0 %554
      %557 = vst.msk [vmem:[#allocation2 + $0x1c] sm:$0x7] %vm347, %v555
      %v558 = vld [vmem:[%s483 + $0x4] sm:$0x7]
      %560 = vrot.lane.b32.xlu0 %v558, 43
      %v561 = vpop.permute.xlu0 %560
      %563 = vst.msk [vmem:[#allocation2 + $0x1c] sm:$0x7] %vm354, %v561
      %v564 = vld [vmem:[%s483 + $0x4] sm:$0x7]
      %566 = vrot.lane.b32.xlu0 %v564, 45
      %v567 = vpop.permute.xlu0 %566
      %v568 = vrot.slane %v567, 4
      %v569 = vsel %vm361, %v568, %v567
      %571 = vst.msk [vmem:[#allocation2 + $0x1c] sm:$0x77] %vm366, %v569
      %v572 = vld [vmem:[%s483 + $0x4] sm:$0x7]
      %574 = vrot.lane.b32.xlu0 %v572, 47
      %v575 = vpop.permute.xlu0 %574
      %577 = vst.msk [vmem:[#allocation2 + $0x20] sm:$0x7] %vm373, %v575
      %v578 = vld [vmem:[%s483 + $0x4] sm:$0x7]
      %580 = vrot.lane.b32.xlu0 %v578, 49
      %v581 = vpop.permute.xlu0 %580
      %583 = vst.msk [vmem:[#allocation2 + $0x20] sm:$0x7] %vm380, %v581
      %s584 = scalar_lea.vmem %s246, 24
      %v585 = vld [vmem:[%s584] sm:$0x7]
      %587 = vrot.lane.b32.xlu0 %v585, 19
      %v588 = vpop.permute.xlu0 %587
      %590 = vst.msk [vmem:[#allocation2 + $0x24] sm:$0x7] %vm265, %v588
      %v591 = vld [vmem:[%s584] sm:$0x7]
      %593 = vrot.lane.b32.xlu0 %v591, 21
      %v594 = vpop.permute.xlu0 %593
      %596 = vst.msk [vmem:[#allocation2 + $0x24] sm:$0x7] %vm272, %v594
      %v597 = vld [vmem:[%s584] sm:$0x7]
      %599 = vrot.lane.b32.xlu0 %v597, 23
      %v600 = vpop.permute.xlu0 %599
      %602 = vst.msk [vmem:[#allocation2 + $0x24] sm:$0x7] %vm279, %v600
      %v603 = vld [vmem:[%s584] sm:$0x7]
      %605 = vrot.lane.b32.xlu0 %v603, 25
      %v606 = vpop.permute.xlu0 %605
      %608 = vst.msk [vmem:[#allocation2 + $0x24] sm:$0x7] %vm286, %v606
      %v609 = vld [vmem:[%s584] sm:$0x7]
      %611 = vrot.lane.b32.xlu0 %v609, 27
      %v612 = vpop.permute.xlu0 %611
      %614 = vst.msk [vmem:[#allocation2 + $0x24] sm:$0x7] %vm293, %v612
      %v615 = vld [vmem:[%s584] sm:$0x7]
      %617 = vrot.lane.b32.xlu0 %v615, 29
      %v618 = vpop.permute.xlu0 %617
      %620 = vst.msk [vmem:[#allocation2 + $0x24] sm:$0x7] %vm300, %v618
      %v621 = vld [vmem:[%s584] sm:$0x7]
      %623 = vrot.lane.b32.xlu0 %v621, 31
      %v624 = vpop.permute.xlu0 %623
      %v625 = vrot.slane %v624, 4
      %v626 = vsel %vm307, %v625, %v624
      %628 = vst.msk [vmem:[#allocation2 + $0x24] sm:$0x77] %vm312, %v626
      %v629 = vld [vmem:[%s584] sm:$0x7]
      %631 = vrot.lane.b32.xlu0 %v629, 33
      %v632 = vpop.permute.xlu0 %631
      %634 = vst.msk [vmem:[#allocation2 + $0x28] sm:$0x7] %vm319, %v632
      %v635 = vld [vmem:[%s584 + $0x4] sm:$0x7]
      %637 = vrot.lane.b32.xlu0 %v635, 35
      %v638 = vpop.permute.xlu0 %637
      %640 = vst.msk [vmem:[#allocation2 + $0x28] sm:$0x7] %vm326, %v638
      %v641 = vld [vmem:[%s584 + $0x4] sm:$0x7]
      %643 = vrot.lane.b32.xlu0 %v641, 37
      %v644 = vpop.permute.xlu0 %643
      %646 = vst.msk [vmem:[#allocation2 + $0x28] sm:$0x7] %vm333, %v644
      %v647 = vld [vmem:[%s584 + $0x4] sm:$0x7]
      %649 = vrot.lane.b32.xlu0 %v647, 39
      %v650 = vpop.permute.xlu0 %649
      %652 = vst.msk [vmem:[#allocation2 + $0x28] sm:$0x7] %vm340, %v650
      %v653 = vld [vmem:[%s584 + $0x4] sm:$0x7]
      %655 = vrot.lane.b32.xlu0 %v653, 41
      %v656 = vpop.permute.xlu0 %655
      %658 = vst.msk [vmem:[#allocation2 + $0x28] sm:$0x7] %vm347, %v656
      %v659 = vld [vmem:[%s584 + $0x4] sm:$0x7]
      %661 = vrot.lane.b32.xlu0 %v659, 43
      %v662 = vpop.permute.xlu0 %661
      %664 = vst.msk [vmem:[#allocation2 + $0x28] sm:$0x7] %vm354, %v662
      %v665 = vld [vmem:[%s584 + $0x4] sm:$0x7]
      %667 = vrot.lane.b32.xlu0 %v665, 45
      %v668 = vpop.permute.xlu0 %667
      %v669 = vrot.slane %v668, 4
      %v670 = vsel %vm361, %v669, %v668
      %672 = vst.msk [vmem:[#allocation2 + $0x28] sm:$0x77] %vm366, %v670
      %v673 = vld [vmem:[%s584 + $0x4] sm:$0x7]
      %675 = vrot.lane.b32.xlu0 %v673, 47
      %v676 = vpop.permute.xlu0 %675
      %678 = vst.msk [vmem:[#allocation2 + $0x2c] sm:$0x7] %vm373, %v676
      %v679 = vld [vmem:[%s584 + $0x4] sm:$0x7]
      %681 = vrot.lane.b32.xlu0 %v679, 49
      %v682 = vpop.permute.xlu0 %681
      %684 = vst.msk [vmem:[#allocation2 + $0x2c] sm:$0x7] %vm380, %v682
      %685 = vst [vmem:[#allocation3 + $0x120] sm:$0xf8] 0.0
      %686 = vst [vmem:[#allocation3 + $0x128] sm:$0xf8] 0.0
      %687 = vst [vmem:[#allocation3 + $0x130] sm:$0xf8] 0.0
      %688 = vst [vmem:[#allocation3 + $0x138] sm:$0xf8] 0.0
      %689 = vst [vmem:[#allocation3 + $0x140] sm:$0xf8] 0.0
      %690 = vst [vmem:[#allocation3 + $0x148] sm:$0xf8] 0.0
      %691 = vst [vmem:[#allocation3 + $0x150] sm:$0xf8] 0.0
      %692 = vst [vmem:[#allocation3 + $0x158] sm:$0xf8] 0.0
      %693 = vst [vmem:[#allocation3 + $0x160] sm:$0xf8] 0.0
      %694 = vst [vmem:[#allocation3 + $0x168] sm:$0xf8] 0.0
      %695 = vst [vmem:[#allocation3 + $0x170] sm:$0xf8] 0.0
      %696 = vst [vmem:[#allocation3 + $0x178] sm:$0xf8] 0.0
      %v697 = vld [vmem:[#allocation2] sm:$0x77]
      %v698 = vld [vmem:[#allocation2 + $0x8] sm:$0x77]
      %v699 = vld [vmem:[#allocation2 + $0x10] sm:$0x77]
      %v700 = vld [vmem:[#allocation2 + $0x18] sm:$0x77]
      %v701 = vld [vmem:[#allocation2 + $0x20] sm:$0x77]
      %v702 = vld [vmem:[#allocation2 + $0x28] sm:$0x77]
      %v709 = vcombine.high %v697, %v697
      %v710 = vcombine.high %v698, %v698
      %v711 = vcombine.high %v699, %v699
      %v712 = vcombine.high %v700, %v700
      %v713 = vcombine.high %v701, %v701
      %v714 = vcombine.high %v702, %v702
      %721 = vst [vmem:[#allocation3] sm:$0x7] %v697
      %722 = vst [vmem:[#allocation3 + $0x8] sm:$0x7] %v709
      %723 = vst [vmem:[#allocation3 + $0x10] sm:$0x7] %v698
      %724 = vst [vmem:[#allocation3 + $0x18] sm:$0x7] %v710
      %725 = vst [vmem:[#allocation3 + $0x20] sm:$0x7] %v699
      %726 = vst [vmem:[#allocation3 + $0x28] sm:$0x7] %v711
      %727 = vst [vmem:[#allocation3 + $0x30] sm:$0x7] %v700
      %728 = vst [vmem:[#allocation3 + $0x38] sm:$0x7] %v712
      %729 = vst [vmem:[#allocation3 + $0x40] sm:$0x7] %v701
      %730 = vst [vmem:[#allocation3 + $0x48] sm:$0x7] %v713
      %731 = vst [vmem:[#allocation3 + $0x50] sm:$0x7] %v702
      %732 = vst [vmem:[#allocation3 + $0x58] sm:$0x7] %v714
      %v733 = vld [vmem:[#allocation2] sm:$0x77]
      %v734 = vld [vmem:[#allocation2 + $0x8] sm:$0x77]
      %v735 = vld [vmem:[#allocation2 + $0x10] sm:$0x77]
      %v736 = vld [vmem:[#allocation2 + $0x18] sm:$0x77]
      %v737 = vld [vmem:[#allocation2 + $0x20] sm:$0x77]
      %v738 = vld [vmem:[#allocation2 + $0x28] sm:$0x77]
      %v739 = vld [vmem:[#allocation2 + $0x30] sm:$0x7]
      %v747 = vcombine.high %v733, %v733
      %v748 = vcombine.high %v734, %v734
      %v749 = vcombine.high %v735, %v735
      %v750 = vcombine.high %v736, %v736
      %v751 = vcombine.high %v737, %v737
      %v752 = vcombine.high %v738, %v738
      %v753 = vrot.slane %v733, 5
      %v754 = vrot.slane %v747, 5
      %v755 = vrot.slane %v734, 5
      %v756 = vrot.slane %v748, 5
      %v757 = vrot.slane %v735, 5
      %v758 = vrot.slane %v749, 5
      %v759 = vrot.slane %v736, 5
      %v760 = vrot.slane %v750, 5
      %v761 = vrot.slane %v737, 5
      %v762 = vrot.slane %v751, 5
      %v763 = vrot.slane %v738, 5
      %v764 = vrot.slane %v752, 5
      %v765 = vrot.slane %v739, 5
      %766 = vrot.lane.b32.xlu0 %v753, 127
      %v767 = vpop.permute.xlu0 %766
      %768 = vrot.lane.b32.xlu0 %v754, 127
      %v769 = vpop.permute.xlu0 %768
      %770 = vrot.lane.b32.xlu0 %v755, 127
      %v771 = vpop.permute.xlu0 %770
      %772 = vrot.lane.b32.xlu0 %v756, 127
      %v773 = vpop.permute.xlu0 %772
      %774 = vrot.lane.b32.xlu0 %v757, 127
      %v775 = vpop.permute.xlu0 %774
      %776 = vrot.lane.b32.xlu0 %v758, 127
      %v777 = vpop.permute.xlu0 %776
      %778 = vrot.lane.b32.xlu0 %v759, 127
      %v779 = vpop.permute.xlu0 %778
      %780 = vrot.lane.b32.xlu0 %v760, 127
      %v781 = vpop.permute.xlu0 %780
      %782 = vrot.lane.b32.xlu0 %v761, 127
      %v783 = vpop.permute.xlu0 %782
      %784 = vrot.lane.b32.xlu0 %v762, 127
      %v785 = vpop.permute.xlu0 %784
      %786 = vrot.lane.b32.xlu0 %v763, 127
      %v787 = vpop.permute.xlu0 %786
      %788 = vrot.lane.b32.xlu0 %v764, 127
      %v789 = vpop.permute.xlu0 %788
      %790 = vrot.lane.b32.xlu0 %v765, 127
      %v791 = vpop.permute.xlu0 %790
      %vm792 = vcmask 1039360
      %v793 = vsel %vm792, %v767, %v769
      %v794 = vsel %vm792, %v769, %v771
      %v795 = vsel %vm792, %v771, %v773
      %v796 = vsel %vm792, %v773, %v775
      %v797 = vsel %vm792, %v775, %v777
      %v798 = vsel %vm792, %v777, %v779
      %v799 = vsel %vm792, %v779, %v781
      %v800 = vsel %vm792, %v781, %v783
      %v801 = vsel %vm792, %v783, %v785
      %v802 = vsel %vm792, %v785, %v787
      %v803 = vsel %vm792, %v787, %v789
      %v804 = vsel %vm792, %v789, %v791
      %817 = vst [vmem:[#allocation3] sm:$0x38] %v793
      %818 = vst [vmem:[#allocation3 + $0x8] sm:$0x38] %v794
      %819 = vst [vmem:[#allocation3 + $0x10] sm:$0x38] %v795
      %820 = vst [vmem:[#allocation3 + $0x18] sm:$0x38] %v796
      %821 = vst [vmem:[#allocation3 + $0x20] sm:$0x38] %v797
      %822 = vst [vmem:[#allocation3 + $0x28] sm:$0x38] %v798
      %823 = vst [vmem:[#allocation3 + $0x30] sm:$0x38] %v799
      %824 = vst [vmem:[#allocation3 + $0x38] sm:$0x38] %v800
      %825 = vst [vmem:[#allocation3 + $0x40] sm:$0x38] %v801
      %826 = vst [vmem:[#allocation3 + $0x48] sm:$0x38] %v802
      %827 = vst [vmem:[#allocation3 + $0x50] sm:$0x38] %v803
      %828 = vst [vmem:[#allocation3 + $0x58] sm:$0x38] %v804
      %v829 = vld [vmem:[#allocation2] sm:$0x77]
      %v830 = vld [vmem:[#allocation2 + $0x8] sm:$0x77]
      %v831 = vld [vmem:[#allocation2 + $0x10] sm:$0x77]
      %v832 = vld [vmem:[#allocation2 + $0x18] sm:$0x77]
      %v833 = vld [vmem:[#allocation2 + $0x20] sm:$0x77]
      %v834 = vld [vmem:[#allocation2 + $0x28] sm:$0x77]
      %v835 = vld [vmem:[#allocation2 + $0x30] sm:$0x7]
      %v843 = vcombine.high %v829, %v829
      %v844 = vcombine.high %v830, %v830
      %v845 = vcombine.high %v831, %v831
      %v846 = vcombine.high %v832, %v832
      %v847 = vcombine.high %v833, %v833
      %v848 = vcombine.high %v834, %v834
      %v849 = vrot.slane %v829, 2
      %v850 = vrot.slane %v843, 2
      %v851 = vrot.slane %v830, 2
      %v852 = vrot.slane %v844, 2
      %v853 = vrot.slane %v831, 2
      %v854 = vrot.slane %v845, 2
      %v855 = vrot.slane %v832, 2
      %v856 = vrot.slane %v846, 2
      %v857 = vrot.slane %v833, 2
      %v858 = vrot.slane %v847, 2
      %v859 = vrot.slane %v834, 2
      %v860 = vrot.slane %v848, 2
      %v861 = vrot.slane %v835, 2
      %862 = vrot.lane.b32.xlu0 %v849, 126
      %v863 = vpop.permute.xlu0 %862
      %864 = vrot.lane.b32.xlu0 %v850, 126
      %v865 = vpop.permute.xlu0 %864
      %866 = vrot.lane.b32.xlu0 %v851, 126
      %v867 = vpop.permute.xlu0 %866
      %868 = vrot.lane.b32.xlu0 %v852, 126
      %v869 = vpop.permute.xlu0 %868
      %870 = vrot.lane.b32.xlu0 %v853, 126
      %v871 = vpop.permute.xlu0 %870
      %872 = vrot.lane.b32.xlu0 %v854, 126
      %v873 = vpop.permute.xlu0 %872
      %874 = vrot.lane.b32.xlu0 %v855, 126
      %v875 = vpop.permute.xlu0 %874
      %876 = vrot.lane.b32.xlu0 %v856, 126
      %v877 = vpop.permute.xlu0 %876
      %878 = vrot.lane.b32.xlu0 %v857, 126
      %v879 = vpop.permute.xlu0 %878
      %880 = vrot.lane.b32.xlu0 %v858, 126
      %v881 = vpop.permute.xlu0 %880
      %882 = vrot.lane.b32.xlu0 %v859, 126
      %v883 = vpop.permute.xlu0 %882
      %884 = vrot.lane.b32.xlu0 %v860, 126
      %v885 = vpop.permute.xlu0 %884
      %886 = vrot.lane.b32.xlu0 %v861, 126
      %v887 = vpop.permute.xlu0 %886
      %vm888 = vcmask 1031168
      %v889 = vsel %vm888, %v863, %v865
      %v890 = vsel %vm888, %v865, %v867
      %v891 = vsel %vm888, %v867, %v869
      %v892 = vsel %vm888, %v869, %v871
      %v893 = vsel %vm888, %v871, %v873
      %v894 = vsel %vm888, %v873, %v875
      %v895 = vsel %vm888, %v875, %v877
      %v896 = vsel %vm888, %v877, %v879
      %v897 = vsel %vm888, %v879, %v881
      %v898 = vsel %vm888, %v881, %v883
      %v899 = vsel %vm888, %v883, %v885
      %v900 = vsel %vm888, %v885, %v887
      %913 = vst [vmem:[#allocation3] sm:$0xc0] %v889
      %914 = vst [vmem:[#allocation3 + $0x8] sm:$0xc0] %v890
      %915 = vst [vmem:[#allocation3 + $0x10] sm:$0xc0] %v891
      %916 = vst [vmem:[#allocation3 + $0x18] sm:$0xc0] %v892
      %917 = vst [vmem:[#allocation3 + $0x20] sm:$0xc0] %v893
      %918 = vst [vmem:[#allocation3 + $0x28] sm:$0xc0] %v894
      %919 = vst [vmem:[#allocation3 + $0x30] sm:$0xc0] %v895
      %920 = vst [vmem:[#allocation3 + $0x38] sm:$0xc0] %v896
      %921 = vst [vmem:[#allocation3 + $0x40] sm:$0xc0] %v897
      %922 = vst [vmem:[#allocation3 + $0x48] sm:$0xc0] %v898
      %923 = vst [vmem:[#allocation3 + $0x50] sm:$0xc0] %v899
      %924 = vst [vmem:[#allocation3 + $0x58] sm:$0xc0] %v900
      %925 = vst [vmem:[#allocation3 + $0x60] sm:$0x1] %v889
      %926 = vst [vmem:[#allocation3 + $0x68] sm:$0x1] %v890
      %927 = vst [vmem:[#allocation3 + $0x70] sm:$0x1] %v891
      %928 = vst [vmem:[#allocation3 + $0x78] sm:$0x1] %v892
      %929 = vst [vmem:[#allocation3 + $0x80] sm:$0x1] %v893
      %930 = vst [vmem:[#allocation3 + $0x88] sm:$0x1] %v894
      %931 = vst [vmem:[#allocation3 + $0x90] sm:$0x1] %v895
      %932 = vst [vmem:[#allocation3 + $0x98] sm:$0x1] %v896
      %933 = vst [vmem:[#allocation3 + $0xa0] sm:$0x1] %v897
      %934 = vst [vmem:[#allocation3 + $0xa8] sm:$0x1] %v898
      %935 = vst [vmem:[#allocation3 + $0xb0] sm:$0x1] %v899
      %936 = vst [vmem:[#allocation3 + $0xb8] sm:$0x1] %v900
      %v937 = vld [vmem:[#allocation2] sm:$0x77]
      %v938 = vld [vmem:[#allocation2 + $0x8] sm:$0x77]
      %v939 = vld [vmem:[#allocation2 + $0x10] sm:$0x77]
      %v940 = vld [vmem:[#allocation2 + $0x18] sm:$0x77]
      %v941 = vld [vmem:[#allocation2 + $0x20] sm:$0x77]
      %v942 = vld [vmem:[#allocation2 + $0x28] sm:$0x77]
      %v943 = vld [vmem:[#allocation2 + $0x30] sm:$0x7]
      %v951 = vcombine.high %v937, %v937
      %v952 = vcombine.high %v938, %v938
      %v953 = vcombine.high %v939, %v939
      %v954 = vcombine.high %v940, %v940
      %v955 = vcombine.high %v941, %v941
      %v956 = vcombine.high %v942, %v942
      %v957 = vrot.slane %v937, 7
      %v958 = vrot.slane %v951, 7
      %v959 = vrot.slane %v938, 7
      %v960 = vrot.slane %v952, 7
      %v961 = vrot.slane %v939, 7
      %v962 = vrot.slane %v953, 7
      %v963 = vrot.slane %v940, 7
      %v964 = vrot.slane %v954, 7
      %v965 = vrot.slane %v941, 7
      %v966 = vrot.slane %v955, 7
      %v967 = vrot.slane %v942, 7
      %v968 = vrot.slane %v956, 7
      %v969 = vrot.slane %v943, 7
      %970 = vrot.lane.b32.xlu0 %v957, 110
      %v971 = vpop.permute.xlu0 %970
      %972 = vrot.lane.b32.xlu0 %v958, 110
      %v973 = vpop.permute.xlu0 %972
      %974 = vrot.lane.b32.xlu0 %v959, 110
      %v975 = vpop.permute.xlu0 %974
      %976 = vrot.lane.b32.xlu0 %v960, 110
      %v977 = vpop.permute.xlu0 %976
      %978 = vrot.lane.b32.xlu0 %v961, 110
      %v979 = vpop.permute.xlu0 %978
      %980 = vrot.lane.b32.xlu0 %v962, 110
      %v981 = vpop.permute.xlu0 %980
      %982 = vrot.lane.b32.xlu0 %v963, 110
      %v983 = vpop.permute.xlu0 %982
      %984 = vrot.lane.b32.xlu0 %v964, 110
      %v985 = vpop.permute.xlu0 %984
      %986 = vrot.lane.b32.xlu0 %v965, 110
      %v987 = vpop.permute.xlu0 %986
      %988 = vrot.lane.b32.xlu0 %v966, 110
      %v989 = vpop.permute.xlu0 %988
      %990 = vrot.lane.b32.xlu0 %v967, 110
      %v991 = vpop.permute.xlu0 %990
      %992 = vrot.lane.b32.xlu0 %v968, 110
      %v993 = vpop.permute.xlu0 %992
      %994 = vrot.lane.b32.xlu0 %v969, 110
      %v995 = vpop.permute.xlu0 %994
      %vm996 = vcmask 900096
      %v997 = vsel %vm996, %v971, %v973
      %v998 = vsel %vm996, %v973, %v975
      %v999 = vsel %vm996, %v975, %v977
      %v1000 = vsel %vm996, %v977, %v979
      %v1001 = vsel %vm996, %v979, %v981
      %v1002 = vsel %vm996, %v981, %v983
      %v1003 = vsel %vm996, %v983, %v985
      %v1004 = vsel %vm996, %v985, %v987
      %v1005 = vsel %vm996, %v987, %v989
      %v1006 = vsel %vm996, %v989, %v991
      %v1007 = vsel %vm996, %v991, %v993
      %v1008 = vsel %vm996, %v993, %v995
      %1021 = vst [vmem:[#allocation3 + $0x60] sm:$0xe] %v997
      %1022 = vst [vmem:[#allocation3 + $0x68] sm:$0xe] %v998
      %1023 = vst [vmem:[#allocation3 + $0x70] sm:$0xe] %v999
      %1024 = vst [vmem:[#allocation3 + $0x78] sm:$0xe] %v1000
      %1025 = vst [vmem:[#allocation3 + $0x80] sm:$0xe] %v1001
      %1026 = vst [vmem:[#allocation3 + $0x88] sm:$0xe] %v1002
      %1027 = vst [vmem:[#allocation3 + $0x90] sm:$0xe] %v1003
      %1028 = vst [vmem:[#allocation3 + $0x98] sm:$0xe] %v1004
      %1029 = vst [vmem:[#allocation3 + $0xa0] sm:$0xe] %v1005
      %1030 = vst [vmem:[#allocation3 + $0xa8] sm:$0xe] %v1006
      %1031 = vst [vmem:[#allocation3 + $0xb0] sm:$0xe] %v1007
      %1032 = vst [vmem:[#allocation3 + $0xb8] sm:$0xe] %v1008
      %v1033 = vld [vmem:[#allocation2] sm:$0x77]
      %v1034 = vld [vmem:[#allocation2 + $0x8] sm:$0x77]
      %v1035 = vld [vmem:[#allocation2 + $0x10] sm:$0x77]
      %v1036 = vld [vmem:[#allocation2 + $0x18] sm:$0x77]
      %v1037 = vld [vmem:[#allocation2 + $0x20] sm:$0x77]
      %v1038 = vld [vmem:[#allocation2 + $0x28] sm:$0x77]
      %v1039 = vld [vmem:[#allocation2 + $0x30] sm:$0x7]
      %v1047 = vcombine.low %v1033, %v1033
      %v1048 = vcombine.low %v1034, %v1034
      %v1049 = vcombine.low %v1035, %v1035
      %v1050 = vcombine.low %v1036, %v1036
      %v1051 = vcombine.low %v1037, %v1037
      %v1052 = vcombine.low %v1038, %v1038
      %v1053 = vcombine.low %v1039, %v1039
      %1054 = vrot.lane.b32.xlu0 %v1047, 109
      %v1055 = vpop.permute.xlu0 %1054
      %1056 = vrot.lane.b32.xlu0 %v1033, 109
      %v1057 = vpop.permute.xlu0 %1056
      %1058 = vrot.lane.b32.xlu0 %v1048, 109
      %v1059 = vpop.permute.xlu0 %1058
      %1060 = vrot.lane.b32.xlu0 %v1034, 109
      %v1061 = vpop.permute.xlu0 %1060
      %1062 = vrot.lane.b32.xlu0 %v1049, 109
      %v1063 = vpop.permute.xlu0 %1062
      %1064 = vrot.lane.b32.xlu0 %v1035, 109
      %v1065 = vpop.permute.xlu0 %1064
      %1066 = vrot.lane.b32.xlu0 %v1050, 109
      %v1067 = vpop.permute.xlu0 %1066
      %1068 = vrot.lane.b32.xlu0 %v1036, 109
      %v1069 = vpop.permute.xlu0 %1068
      %1070 = vrot.lane.b32.xlu0 %v1051, 109
      %v1071 = vpop.permute.xlu0 %1070
      %1072 = vrot.lane.b32.xlu0 %v1037, 109
      %v1073 = vpop.permute.xlu0 %1072
      %1074 = vrot.lane.b32.xlu0 %v1052, 109
      %v1075 = vpop.permute.xlu0 %1074
      %1076 = vrot.lane.b32.xlu0 %v1038, 109
      %v1077 = vpop.permute.xlu0 %1076
      %1078 = vrot.lane.b32.xlu0 %v1053, 109
      %v1079 = vpop.permute.xlu0 %1078
      %vm1080 = vcmask 891904
      %v1081 = vsel %vm1080, %v1055, %v1057
      %v1082 = vsel %vm1080, %v1057, %v1059
      %v1083 = vsel %vm1080, %v1059, %v1061
      %v1084 = vsel %vm1080, %v1061, %v1063
      %v1085 = vsel %vm1080, %v1063, %v1065
      %v1086 = vsel %vm1080, %v1065, %v1067
      %v1087 = vsel %vm1080, %v1067, %v1069
      %v1088 = vsel %vm1080, %v1069, %v1071
      %v1089 = vsel %vm1080, %v1071, %v1073
      %v1090 = vsel %vm1080, %v1073, %v1075
      %v1091 = vsel %vm1080, %v1075, %v1077
      %v1092 = vsel %vm1080, %v1077, %v1079
      %1105 = vst [vmem:[#allocation3 + $0x60] sm:$0x70] %v1081
      %1106 = vst [vmem:[#allocation3 + $0x68] sm:$0x70] %v1082
      %1107 = vst [vmem:[#allocation3 + $0x70] sm:$0x70] %v1083
      %1108 = vst [vmem:[#allocation3 + $0x78] sm:$0x70] %v1084
      %1109 = vst [vmem:[#allocation3 + $0x80] sm:$0x70] %v1085
      %1110 = vst [vmem:[#allocation3 + $0x88] sm:$0x70] %v1086
      %1111 = vst [vmem:[#allocation3 + $0x90] sm:$0x70] %v1087
      %1112 = vst [vmem:[#allocation3 + $0x98] sm:$0x70] %v1088
      %1113 = vst [vmem:[#allocation3 + $0xa0] sm:$0x70] %v1089
      %1114 = vst [vmem:[#allocation3 + $0xa8] sm:$0x70] %v1090
      %1115 = vst [vmem:[#allocation3 + $0xb0] sm:$0x70] %v1091
      %1116 = vst [vmem:[#allocation3 + $0xb8] sm:$0x70] %v1092
      %v1117 = vld [vmem:[#allocation2] sm:$0x77]
      %v1118 = vld [vmem:[#allocation2 + $0x8] sm:$0x77]
      %v1119 = vld [vmem:[#allocation2 + $0x10] sm:$0x77]
      %v1120 = vld [vmem:[#allocation2 + $0x18] sm:$0x77]
      %v1121 = vld [vmem:[#allocation2 + $0x20] sm:$0x77]
      %v1122 = vld [vmem:[#allocation2 + $0x28] sm:$0x77]
      %v1123 = vld [vmem:[#allocation2 + $0x30] sm:$0x7]
      %v1131 = vcombine.high %v1117, %v1117
      %v1132 = vcombine.high %v1118, %v1118
      %v1133 = vcombine.high %v1119, %v1119
      %v1134 = vcombine.high %v1120, %v1120
      %v1135 = vcombine.high %v1121, %v1121
      %v1136 = vcombine.high %v1122, %v1122
      %v1137 = vrot.slane %v1117, 1
      %v1138 = vrot.slane %v1131, 1
      %v1139 = vrot.slane %v1118, 1
      %v1140 = vrot.slane %v1132, 1
      %v1141 = vrot.slane %v1119, 1
      %v1142 = vrot.slane %v1133, 1
      %v1143 = vrot.slane %v1120, 1
      %v1144 = vrot.slane %v1134, 1
      %v1145 = vrot.slane %v1121, 1
      %v1146 = vrot.slane %v1135, 1
      %v1147 = vrot.slane %v1122, 1
      %v1148 = vrot.slane %v1136, 1
      %v1149 = vrot.slane %v1123, 1
      %1150 = vrot.lane.b32.xlu0 %v1137, 108
      %v1151 = vpop.permute.xlu0 %1150
      %1152 = vrot.lane.b32.xlu0 %v1138, 108
      %v1153 = vpop.permute.xlu0 %1152
      %1154 = vrot.lane.b32.xlu0 %v1139, 108
      %v1155 = vpop.permute.xlu0 %1154
      %1156 = vrot.lane.b32.xlu0 %v1140, 108
      %v1157 = vpop.permute.xlu0 %1156
      %1158 = vrot.lane.b32.xlu0 %v1141, 108
      %v1159 = vpop.permute.xlu0 %1158
      %1160 = vrot.lane.b32.xlu0 %v1142, 108
      %v1161 = vpop.permute.xlu0 %1160
      %1162 = vrot.lane.b32.xlu0 %v1143, 108
      %v1163 = vpop.permute.xlu0 %1162
      %1164 = vrot.lane.b32.xlu0 %v1144, 108
      %v1165 = vpop.permute.xlu0 %1164
      %1166 = vrot.lane.b32.xlu0 %v1145, 108
      %v1167 = vpop.permute.xlu0 %1166
      %1168 = vrot.lane.b32.xlu0 %v1146, 108
      %v1169 = vpop.permute.xlu0 %1168
      %1170 = vrot.lane.b32.xlu0 %v1147, 108
      %v1171 = vpop.permute.xlu0 %1170
      %1172 = vrot.lane.b32.xlu0 %v1148, 108
      %v1173 = vpop.permute.xlu0 %1172
      %1174 = vrot.lane.b32.xlu0 %v1149, 108
      %v1175 = vpop.permute.xlu0 %1174
      %vm1176 = vcmask 883712
      %v1177 = vsel %vm1176, %v1151, %v1153
      %v1178 = vsel %vm1176, %v1153, %v1155
      %v1179 = vsel %vm1176, %v1155, %v1157
      %v1180 = vsel %vm1176, %v1157, %v1159
      %v1181 = vsel %vm1176, %v1159, %v1161
      %v1182 = vsel %vm1176, %v1161, %v1163
      %v1183 = vsel %vm1176, %v1163, %v1165
      %v1184 = vsel %vm1176, %v1165, %v1167
      %v1185 = vsel %vm1176, %v1167, %v1169
      %v1186 = vsel %vm1176, %v1169, %v1171
      %v1187 = vsel %vm1176, %v1171, %v1173
      %v1188 = vsel %vm1176, %v1173, %v1175
      %1201 = vst [vmem:[#allocation3 + $0x60] sm:$0x80] %v1177
      %1202 = vst [vmem:[#allocation3 + $0x68] sm:$0x80] %v1178
      %1203 = vst [vmem:[#allocation3 + $0x70] sm:$0x80] %v1179
      %1204 = vst [vmem:[#allocation3 + $0x78] sm:$0x80] %v1180
      %1205 = vst [vmem:[#allocation3 + $0x80] sm:$0x80] %v1181
      %1206 = vst [vmem:[#allocation3 + $0x88] sm:$0x80] %v1182
      %1207 = vst [vmem:[#allocation3 + $0x90] sm:$0x80] %v1183
      %1208 = vst [vmem:[#allocation3 + $0x98] sm:$0x80] %v1184
      %1209 = vst [vmem:[#allocation3 + $0xa0] sm:$0x80] %v1185
      %1210 = vst [vmem:[#allocation3 + $0xa8] sm:$0x80] %v1186
      %1211 = vst [vmem:[#allocation3 + $0xb0] sm:$0x80] %v1187
      %1212 = vst [vmem:[#allocation3 + $0xb8] sm:$0x80] %v1188
      %1213 = vst [vmem:[#allocation3 + $0xc0] sm:$0x3] %v1177
      %1214 = vst [vmem:[#allocation3 + $0xc8] sm:$0x3] %v1178
      %1215 = vst [vmem:[#allocation3 + $0xd0] sm:$0x3] %v1179
      %1216 = vst [vmem:[#allocation3 + $0xd8] sm:$0x3] %v1180
      %1217 = vst [vmem:[#allocation3 + $0xe0] sm:$0x3] %v1181
      %1218 = vst [vmem:[#allocation3 + $0xe8] sm:$0x3] %v1182
      %1219 = vst [vmem:[#allocation3 + $0xf0] sm:$0x3] %v1183
      %1220 = vst [vmem:[#allocation3 + $0xf8] sm:$0x3] %v1184
      %1221 = vst [vmem:[#allocation3 + $0x100] sm:$0x3] %v1185
      %1222 = vst [vmem:[#allocation3 + $0x108] sm:$0x3] %v1186
      %1223 = vst [vmem:[#allocation3 + $0x110] sm:$0x3] %v1187
      %1224 = vst [vmem:[#allocation3 + $0x118] sm:$0x3] %v1188
      %v1225 = vld [vmem:[#allocation2] sm:$0x77]
      %v1226 = vld [vmem:[#allocation2 + $0x8] sm:$0x77]
      %v1227 = vld [vmem:[#allocation2 + $0x10] sm:$0x77]
      %v1228 = vld [vmem:[#allocation2 + $0x18] sm:$0x77]
      %v1229 = vld [vmem:[#allocation2 + $0x20] sm:$0x77]
      %v1230 = vld [vmem:[#allocation2 + $0x28] sm:$0x77]
      %v1231 = vld [vmem:[#allocation2 + $0x30] sm:$0x7]
      %v1239 = vcombine.high %v1225, %v1225
      %v1240 = vcombine.high %v1226, %v1226
      %v1241 = vcombine.high %v1227, %v1227
      %v1242 = vcombine.high %v1228, %v1228
      %v1243 = vcombine.high %v1229, %v1229
      %v1244 = vcombine.high %v1230, %v1230
      %v1245 = vrot.slane %v1225, 6
      %v1246 = vrot.slane %v1239, 6
      %v1247 = vrot.slane %v1226, 6
      %v1248 = vrot.slane %v1240, 6
      %v1249 = vrot.slane %v1227, 6
      %v1250 = vrot.slane %v1241, 6
      %v1251 = vrot.slane %v1228, 6
      %v1252 = vrot.slane %v1242, 6
      %v1253 = vrot.slane %v1229, 6
      %v1254 = vrot.slane %v1243, 6
      %v1255 = vrot.slane %v1230, 6
      %v1256 = vrot.slane %v1244, 6
      %v1257 = vrot.slane %v1231, 6
      %1258 = vrot.lane.b32.xlu0 %v1245, 92
      %v1259 = vpop.permute.xlu0 %1258
      %1260 = vrot.lane.b32.xlu0 %v1246, 92
      %v1261 = vpop.permute.xlu0 %1260
      %1262 = vrot.lane.b32.xlu0 %v1247, 92
      %v1263 = vpop.permute.xlu0 %1262
      %1264 = vrot.lane.b32.xlu0 %v1248, 92
      %v1265 = vpop.permute.xlu0 %1264
      %1266 = vrot.lane.b32.xlu0 %v1249, 92
      %v1267 = vpop.permute.xlu0 %1266
      %1268 = vrot.lane.b32.xlu0 %v1250, 92
      %v1269 = vpop.permute.xlu0 %1268
      %1270 = vrot.lane.b32.xlu0 %v1251, 92
      %v1271 = vpop.permute.xlu0 %1270
      %1272 = vrot.lane.b32.xlu0 %v1252, 92
      %v1273 = vpop.permute.xlu0 %1272
      %1274 = vrot.lane.b32.xlu0 %v1253, 92
      %v1275 = vpop.permute.xlu0 %1274
      %1276 = vrot.lane.b32.xlu0 %v1254, 92
      %v1277 = vpop.permute.xlu0 %1276
      %1278 = vrot.lane.b32.xlu0 %v1255, 92
      %v1279 = vpop.permute.xlu0 %1278
      %1280 = vrot.lane.b32.xlu0 %v1256, 92
      %v1281 = vpop.permute.xlu0 %1280
      %1282 = vrot.lane.b32.xlu0 %v1257, 92
      %v1283 = vpop.permute.xlu0 %1282
      %vm1284 = vcmask 752640
      %v1285 = vsel %vm1284, %v1259, %v1261
      %v1286 = vsel %vm1284, %v1261, %v1263
      %v1287 = vsel %vm1284, %v1263, %v1265
      %v1288 = vsel %vm1284, %v1265, %v1267
      %v1289 = vsel %vm1284, %v1267, %v1269
      %v1290 = vsel %vm1284, %v1269, %v1271
      %v1291 = vsel %vm1284, %v1271, %v1273
      %v1292 = vsel %vm1284, %v1273, %v1275
      %v1293 = vsel %vm1284, %v1275, %v1277
      %v1294 = vsel %vm1284, %v1277, %v1279
      %v1295 = vsel %vm1284, %v1279, %v1281
      %v1296 = vsel %vm1284, %v1281, %v1283
      %1309 = vst [vmem:[#allocation3 + $0xc0] sm:$0x1c] %v1285
      %1310 = vst [vmem:[#allocation3 + $0xc8] sm:$0x1c] %v1286
      %1311 = vst [vmem:[#allocation3 + $0xd0] sm:$0x1c] %v1287
      %1312 = vst [vmem:[#allocation3 + $0xd8] sm:$0x1c] %v1288
      %1313 = vst [vmem:[#allocation3 + $0xe0] sm:$0x1c] %v1289
      %1314 = vst [vmem:[#allocation3 + $0xe8] sm:$0x1c] %v1290
      %1315 = vst [vmem:[#allocation3 + $0xf0] sm:$0x1c] %v1291
      %1316 = vst [vmem:[#allocation3 + $0xf8] sm:$0x1c] %v1292
      %1317 = vst [vmem:[#allocation3 + $0x100] sm:$0x1c] %v1293
      %1318 = vst [vmem:[#allocation3 + $0x108] sm:$0x1c] %v1294
      %1319 = vst [vmem:[#allocation3 + $0x110] sm:$0x1c] %v1295
      %1320 = vst [vmem:[#allocation3 + $0x118] sm:$0x1c] %v1296
      %v1321 = vld [vmem:[#allocation2] sm:$0x77]
      %v1322 = vld [vmem:[#allocation2 + $0x8] sm:$0x77]
      %v1323 = vld [vmem:[#allocation2 + $0x10] sm:$0x77]
      %v1324 = vld [vmem:[#allocation2 + $0x18] sm:$0x77]
      %v1325 = vld [vmem:[#allocation2 + $0x20] sm:$0x77]
      %v1326 = vld [vmem:[#allocation2 + $0x28] sm:$0x77]
      %v1327 = vld [vmem:[#allocation2 + $0x30] sm:$0x7]
      %v1335 = vcombine.high %v1321, %v1321
      %v1336 = vcombine.high %v1322, %v1322
      %v1337 = vcombine.high %v1323, %v1323
      %v1338 = vcombine.high %v1324, %v1324
      %v1339 = vcombine.high %v1325, %v1325
      %v1340 = vcombine.high %v1326, %v1326
      %v1341 = vrot.slane %v1321, 3
      %v1342 = vrot.slane %v1335, 3
      %v1343 = vrot.slane %v1322, 3
      %v1344 = vrot.slane %v1336, 3
      %v1345 = vrot.slane %v1323, 3
      %v1346 = vrot.slane %v1337, 3
      %v1347 = vrot.slane %v1324, 3
      %v1348 = vrot.slane %v1338, 3
      %v1349 = vrot.slane %v1325, 3
      %v1350 = vrot.slane %v1339, 3
      %v1351 = vrot.slane %v1326, 3
      %v1352 = vrot.slane %v1340, 3
      %v1353 = vrot.slane %v1327, 3
      %1354 = vrot.lane.b32.xlu0 %v1341, 91
      %v1355 = vpop.permute.xlu0 %1354
      %1356 = vrot.lane.b32.xlu0 %v1342, 91
      %v1357 = vpop.permute.xlu0 %1356
      %1358 = vrot.lane.b32.xlu0 %v1343, 91
      %v1359 = vpop.permute.xlu0 %1358
      %1360 = vrot.lane.b32.xlu0 %v1344, 91
      %v1361 = vpop.permute.xlu0 %1360
      %1362 = vrot.lane.b32.xlu0 %v1345, 91
      %v1363 = vpop.permute.xlu0 %1362
      %1364 = vrot.lane.b32.xlu0 %v1346, 91
      %v1365 = vpop.permute.xlu0 %1364
      %1366 = vrot.lane.b32.xlu0 %v1347, 91
      %v1367 = vpop.permute.xlu0 %1366
      %1368 = vrot.lane.b32.xlu0 %v1348, 91
      %v1369 = vpop.permute.xlu0 %1368
      %1370 = vrot.lane.b32.xlu0 %v1349, 91
      %v1371 = vpop.permute.xlu0 %1370
      %1372 = vrot.lane.b32.xlu0 %v1350, 91
      %v1373 = vpop.permute.xlu0 %1372
      %1374 = vrot.lane.b32.xlu0 %v1351, 91
      %v1375 = vpop.permute.xlu0 %1374
      %1376 = vrot.lane.b32.xlu0 %v1352, 91
      %v1377 = vpop.permute.xlu0 %1376
      %1378 = vrot.lane.b32.xlu0 %v1353, 91
      %v1379 = vpop.permute.xlu0 %1378
      %vm1380 = vcmask 744448
      %v1381 = vsel %vm1380, %v1355, %v1357
      %v1382 = vsel %vm1380, %v1357, %v1359
      %v1383 = vsel %vm1380, %v1359, %v1361
      %v1384 = vsel %vm1380, %v1361, %v1363
      %v1385 = vsel %vm1380, %v1363, %v1365
      %v1386 = vsel %vm1380, %v1365, %v1367
      %v1387 = vsel %vm1380, %v1367, %v1369
      %v1388 = vsel %vm1380, %v1369, %v1371
      %v1389 = vsel %vm1380, %v1371, %v1373
      %v1390 = vsel %vm1380, %v1373, %v1375
      %v1391 = vsel %vm1380, %v1375, %v1377
      %v1392 = vsel %vm1380, %v1377, %v1379
      %1405 = vst [vmem:[#allocation3 + $0xc0] sm:$0xe0] %v1381
      %1406 = vst [vmem:[#allocation3 + $0xc8] sm:$0xe0] %v1382
      %1407 = vst [vmem:[#allocation3 + $0xd0] sm:$0xe0] %v1383
      %1408 = vst [vmem:[#allocation3 + $0xd8] sm:$0xe0] %v1384
      %1409 = vst [vmem:[#allocation3 + $0xe0] sm:$0xe0] %v1385
      %1410 = vst [vmem:[#allocation3 + $0xe8] sm:$0xe0] %v1386
      %1411 = vst [vmem:[#allocation3 + $0xf0] sm:$0xe0] %v1387
      %1412 = vst [vmem:[#allocation3 + $0xf8] sm:$0xe0] %v1388
      %1413 = vst [vmem:[#allocation3 + $0x100] sm:$0xe0] %v1389
      %1414 = vst [vmem:[#allocation3 + $0x108] sm:$0xe0] %v1390
      %1415 = vst [vmem:[#allocation3 + $0x110] sm:$0xe0] %v1391
      %1416 = vst [vmem:[#allocation3 + $0x118] sm:$0xe0] %v1392
      %v1417 = vld [vmem:[#allocation2] sm:$0x77]
      %v1418 = vld [vmem:[#allocation2 + $0x8] sm:$0x77]
      %v1419 = vld [vmem:[#allocation2 + $0x10] sm:$0x77]
      %v1420 = vld [vmem:[#allocation2 + $0x18] sm:$0x77]
      %v1421 = vld [vmem:[#allocation2 + $0x20] sm:$0x77]
      %v1422 = vld [vmem:[#allocation2 + $0x28] sm:$0x77]
      %v1423 = vld [vmem:[#allocation2 + $0x30] sm:$0x7]
      %v1431 = vcombine.high %v1417, %v1417
      %v1432 = vcombine.high %v1418, %v1418
      %v1433 = vcombine.high %v1419, %v1419
      %v1434 = vcombine.high %v1420, %v1420
      %v1435 = vcombine.high %v1421, %v1421
      %v1436 = vcombine.high %v1422, %v1422
      %1437 = vrot.lane.b32.xlu0 %v1417, 90
      %v1438 = vpop.permute.xlu0 %1437
      %1439 = vrot.lane.b32.xlu0 %v1431, 90
      %v1440 = vpop.permute.xlu0 %1439
      %1441 = vrot.lane.b32.xlu0 %v1418, 90
      %v1442 = vpop.permute.xlu0 %1441
      %1443 = vrot.lane.b32.xlu0 %v1432, 90
      %v1444 = vpop.permute.xlu0 %1443
      %1445 = vrot.lane.b32.xlu0 %v1419, 90
      %v1446 = vpop.permute.xlu0 %1445
      %1447 = vrot.lane.b32.xlu0 %v1433, 90
      %v1448 = vpop.permute.xlu0 %1447
      %1449 = vrot.lane.b32.xlu0 %v1420, 90
      %v1450 = vpop.permute.xlu0 %1449
      %1451 = vrot.lane.b32.xlu0 %v1434, 90
      %v1452 = vpop.permute.xlu0 %1451
      %1453 = vrot.lane.b32.xlu0 %v1421, 90
      %v1454 = vpop.permute.xlu0 %1453
      %1455 = vrot.lane.b32.xlu0 %v1435, 90
      %v1456 = vpop.permute.xlu0 %1455
      %1457 = vrot.lane.b32.xlu0 %v1422, 90
      %v1458 = vpop.permute.xlu0 %1457
      %1459 = vrot.lane.b32.xlu0 %v1436, 90
      %v1460 = vpop.permute.xlu0 %1459
      %1461 = vrot.lane.b32.xlu0 %v1423, 90
      %v1462 = vpop.permute.xlu0 %1461
      %vm1463 = vcmask 736256
      %v1464 = vsel %vm1463, %v1438, %v1440
      %v1465 = vsel %vm1463, %v1440, %v1442
      %v1466 = vsel %vm1463, %v1442, %v1444
      %v1467 = vsel %vm1463, %v1444, %v1446
      %v1468 = vsel %vm1463, %v1446, %v1448
      %v1469 = vsel %vm1463, %v1448, %v1450
      %v1470 = vsel %vm1463, %v1450, %v1452
      %v1471 = vsel %vm1463, %v1452, %v1454
      %v1472 = vsel %vm1463, %v1454, %v1456
      %v1473 = vsel %vm1463, %v1456, %v1458
      %v1474 = vsel %vm1463, %v1458, %v1460
      %v1475 = vsel %vm1463, %v1460, %v1462
      %1488 = vst [vmem:[#allocation3 + $0x120] sm:$0x7] %v1464
      %1489 = vst [vmem:[#allocation3 + $0x128] sm:$0x7] %v1465
      %1490 = vst [vmem:[#allocation3 + $0x130] sm:$0x7] %v1466
      %1491 = vst [vmem:[#allocation3 + $0x138] sm:$0x7] %v1467
      %1492 = vst [vmem:[#allocation3 + $0x140] sm:$0x7] %v1468
      %1493 = vst [vmem:[#allocation3 + $0x148] sm:$0x7] %v1469
      %1494 = vst [vmem:[#allocation3 + $0x150] sm:$0x7] %v1470
      %1495 = vst [vmem:[#allocation3 + $0x158] sm:$0x7] %v1471
      %1496 = vst [vmem:[#allocation3 + $0x160] sm:$0x7] %v1472
      %1497 = vst [vmem:[#allocation3 + $0x168] sm:$0x7] %v1473
      %1498 = vst [vmem:[#allocation3 + $0x170] sm:$0x7] %v1474
      %1499 = vst [vmem:[#allocation3 + $0x178] sm:$0x7] %v1475
      %v1500 = vld [vmem:[%s1] sm:$0xf]
      %v1501 = vld [vmem:[%s1 + $0x4] sm:$0xf]
      %v1502 = vld [vmem:[#allocation3] sm:$0xff]
      %v1503 = vld [vmem:[#allocation3 + $0x8] sm:$0xff]
      %v1504 = vld [vmem:[#allocation3 + $0x10] sm:$0xff]
      %v1505 = vld [vmem:[#allocation3 + $0x18] sm:$0xff]
      %v1506 = vld [vmem:[#allocation3 + $0x20] sm:$0xff]
      %v1507 = vld [vmem:[#allocation3 + $0x28] sm:$0xff]
      %v1508 = vld [vmem:[#allocation3 + $0x30] sm:$0xff]
      %v1509 = vld [vmem:[#allocation3 + $0x38] sm:$0xff]
      %v1510 = vld [vmem:[#allocation3 + $0x40] sm:$0xff]
      %v1511 = vld [vmem:[#allocation3 + $0x48] sm:$0xff]
      %v1512 = vld [vmem:[#allocation3 + $0x50] sm:$0xff]
      %v1513 = vld [vmem:[#allocation3 + $0x58] sm:$0xff]
      %v1514 = vld [vmem:[#allocation3 + $0x60] sm:$0xff]
      %v1515 = vld [vmem:[#allocation3 + $0x68] sm:$0xff]
      %v1516 = vld [vmem:[#allocation3 + $0x70] sm:$0xff]
      %v1517 = vld [vmem:[#allocation3 + $0x78] sm:$0xff]
      %v1518 = vld [vmem:[#allocation3 + $0x80] sm:$0xff]
      %v1519 = vld [vmem:[#allocation3 + $0x88] sm:$0xff]
      %v1520 = vld [vmem:[#allocation3 + $0x90] sm:$0xff]
      %v1521 = vld [vmem:[#allocation3 + $0x98] sm:$0xff]
      %v1522 = vld [vmem:[#allocation3 + $0xa0] sm:$0xff]
      %v1523 = vld [vmem:[#allocation3 + $0xa8] sm:$0xff]
      %v1524 = vld [vmem:[#allocation3 + $0xb0] sm:$0xff]
      %v1525 = vld [vmem:[#allocation3 + $0xb8] sm:$0xff]
      %v1526 = vld [vmem:[#allocation3 + $0xc0] sm:$0xff]
      %v1527 = vld [vmem:[#allocation3 + $0xc8] sm:$0xff]
      %v1528 = vld [vmem:[#allocation3 + $0xd0] sm:$0xff]
      %v1529 = vld [vmem:[#allocation3 + $0xd8] sm:$0xff]
      %v1530 = vld [vmem:[#allocation3 + $0xe0] sm:$0xff]
      %v1531 = vld [vmem:[#allocation3 + $0xe8] sm:$0xff]
      %v1532 = vld [vmem:[#allocation3 + $0xf0] sm:$0xff]
      %v1533 = vld [vmem:[#allocation3 + $0xf8] sm:$0xff]
      %v1534 = vld [vmem:[#allocation3 + $0x100] sm:$0xff]
      %v1535 = vld [vmem:[#allocation3 + $0x108] sm:$0xff]
      %v1536 = vld [vmem:[#allocation3 + $0x110] sm:$0xff]
      %v1537 = vld [vmem:[#allocation3 + $0x118] sm:$0xff]
      %v1538 = vld [vmem:[#allocation3 + $0x120] sm:$0xff]
      %v1539 = vld [vmem:[#allocation3 + $0x128] sm:$0xff]
      %v1540 = vld [vmem:[#allocation3 + $0x130] sm:$0xff]
      %v1541 = vld [vmem:[#allocation3 + $0x138] sm:$0xff]
      %v1542 = vld [vmem:[#allocation3 + $0x140] sm:$0xff]
      %v1543 = vld [vmem:[#allocation3 + $0x148] sm:$0xff]
      %v1544 = vld [vmem:[#allocation3 + $0x150] sm:$0xff]
      %v1545 = vld [vmem:[#allocation3 + $0x158] sm:$0xff]
      %v1546 = vld [vmem:[#allocation3 + $0x160] sm:$0xff]
      %v1547 = vld [vmem:[#allocation3 + $0x168] sm:$0xff]
      %v1548 = vld [vmem:[#allocation3 + $0x170] sm:$0xff]
      %v1549 = vld [vmem:[#allocation3 + $0x178] sm:$0xff]
      %v1550 = vpack.c.bf16 %v1514, %v1502
      %v1551 = vpack.c.bf16 %v1515, %v1503
      %v1552 = vpack.c.bf16 %v1516, %v1504
      %v1553 = vpack.c.bf16 %v1517, %v1505
      %v1554 = vpack.c.bf16 %v1518, %v1506
      %v1555 = vpack.c.bf16 %v1519, %v1507
      %v1556 = vpack.c.bf16 %v1520, %v1508
      %v1557 = vpack.c.bf16 %v1521, %v1509
      %v1558 = vpack.c.bf16 %v1522, %v1510
      %v1559 = vpack.c.bf16 %v1523, %v1511
      %v1560 = vpack.c.bf16 %v1524, %v1512
      %v1561 = vpack.c.bf16 %v1525, %v1513
      %v1562 = vpack.c.bf16 %v1538, %v1526
      %v1563 = vpack.c.bf16 %v1539, %v1527
      %v1564 = vpack.c.bf16 %v1540, %v1528
      %v1565 = vpack.c.bf16 %v1541, %v1529
      %v1566 = vpack.c.bf16 %v1542, %v1530
      %v1567 = vpack.c.bf16 %v1543, %v1531
      %v1568 = vpack.c.bf16 %v1544, %v1532
      %v1569 = vpack.c.bf16 %v1545, %v1533
      %v1570 = vpack.c.bf16 %v1546, %v1534
      %v1571 = vpack.c.bf16 %v1547, %v1535
      %v1572 = vpack.c.bf16 %v1548, %v1536
      %v1573 = vpack.c.bf16 %v1549, %v1537
      %v1574 = vld [vmem:[%s2] sm:$0xff]
      %v1575 = vld [vmem:[%s2 + $0x8] sm:$0xff]
      %1577 = vset.pattern.permute.xlu0 0
      %1578 = vperm.xlu0 %1577, %v1574
      %v1579 = vpop.permute.xlu0 %1578
      %1582 = vset.pattern.permute.xlu0 0
      %1583 = vperm.xlu0 %1582, %v1575
      %v1584 = vpop.permute.xlu0 %1583
      %v1588 = vunpack.c.l.b16 %v1500
      %v1589 = vunpack.c.l.b16 %v1501
      %v1590 = vpack.c.b16 %v1589, %v1588
      %vm1591 = vcmask 261120
      %v1593 = vsel %vm1591, %v1590, 0
      %1595 = vmatprep.subr.bf16.mxu0 %v1551
      %1596 = vmatpush1.bf16.msra.mxu0 %v1550
      %1597 = vmatprep.subr.bf16.mxu0 %v1563
      %1598 = vmatpush1.bf16.msra.mxu0 %v1562
      %1599 = vmatprep.subr.bf16.mxu0 0
      %1600 = vmatpush1.bf16.msra.mxu0 0
      %1601 = vmatprep.subr.bf16.mxu0 0
      %1602 = vmatpush1.bf16.msra.mxu0 0
      %1603 = vmatprep.subr.bf16.mxu0 0
      %1604 = vmatpush1.bf16.msra.mxu0 0
      %1605 = vmatprep.subr.bf16.mxu0 0
      %1606 = vmatpush1.bf16.msra.mxu0 0
      %1607 = vmatprep.subr.bf16.mxu0 0
      %1608 = vmatpush1.bf16.msra.mxu0 0
      %1609 = vmatprep.subr.bf16.mxu0 0
      %1610 = vmatpush1.bf16.msra.mxu0 0
      %1611 = vmatprep.subr.bf16.mxu0 0
      %1612 = vmatpush1.bf16.msra.mxu0 0
      %1613 = vmatprep.subr.bf16.mxu0 0
      %1614 = vmatpush1.bf16.msra.mxu0 0
      %1615 = vmatprep.subr.bf16.mxu0 0
      %1616 = vmatpush1.bf16.msra.mxu0 0
      %1617 = vmatprep.subr.bf16.mxu0 0
      %1618 = vmatpush1.bf16.msra.mxu0 0
      %1619 = vmatprep.subr.bf16.mxu0 0
      %1620 = vmatpush1.bf16.msra.mxu0 0
      %1621 = vmatprep.subr.bf16.mxu0 0
      %1622 = vmatpush1.bf16.msra.mxu0 0
      %1623 = vmatprep.subr.bf16.mxu0 0
      %1624 = vmatpush1.bf16.msra.mxu0 0
      %1625 = vmatprep.subr.bf16.mxu0 0
      %1626 = vmatpush1.bf16.msra.mxu0 0
      %1627 = vmatprep.mubr.bf16.mxu0 0
      %1628 = vmatmul.mubr.bf16.gmra.mrb[0].mxu0 %v1593
      %v1629 = vpop.f32.mrb[0].mxu0
      %v1630 = vadd.f32 %v1579, %v1629
      %v1631 = vpop.f32.mrb[0].mxu0
      %v1632 = vadd.f32 %v1579, %v1631
      %v1633 = vpop.f32.mrb[0].mxu0
      %v1634 = vadd.f32 %v1584, %v1633
      %v1635 = vpop.f32.mrb[0].mxu0
      %v1636 = vadd.f32 %v1584, %v1635
      %1637 = vdwg.mxu0
      %1638 = vmatprep.subr.bf16.mxu0 %v1553
      %1639 = vmatpush1.bf16.msra.mxu0 %v1552
      %1640 = vmatprep.subr.bf16.mxu0 %v1565
      %1641 = vmatpush1.bf16.msra.mxu0 %v1564
      %1642 = vmatprep.subr.bf16.mxu0 0
      %1643 = vmatpush1.bf16.msra.mxu0 0
      %1644 = vmatprep.subr.bf16.mxu0 0
      %1645 = vmatpush1.bf16.msra.mxu0 0
      %1646 = vmatprep.subr.bf16.mxu0 0
      %1647 = vmatpush1.bf16.msra.mxu0 0
      %1648 = vmatprep.subr.bf16.mxu0 0
      %1649 = vmatpush1.bf16.msra.mxu0 0
      %1650 = vmatprep.subr.bf16.mxu0 0
      %1651 = vmatpush1.bf16.msra.mxu0 0
      %1652 = vmatprep.subr.bf16.mxu0 0
      %1653 = vmatpush1.bf16.msra.mxu0 0
      %1654 = vmatprep.subr.bf16.mxu0 0
      %1655 = vmatpush1.bf16.msra.mxu0 0
      %1656 = vmatprep.subr.bf16.mxu0 0
      %1657 = vmatpush1.bf16.msra.mxu0 0
      %1658 = vmatprep.subr.bf16.mxu0 0
      %1659 = vmatpush1.bf16.msra.mxu0 0
      %1660 = vmatprep.subr.bf16.mxu0 0
      %1661 = vmatpush1.bf16.msra.mxu0 0
      %1662 = vmatprep.subr.bf16.mxu0 0
      %1663 = vmatpush1.bf16.msra.mxu0 0
      %1664 = vmatprep.subr.bf16.mxu0 0
      %1665 = vmatpush1.bf16.msra.mxu0 0
      %1666 = vmatprep.subr.bf16.mxu0 0
      %1667 = vmatpush1.bf16.msra.mxu0 0
      %1668 = vmatprep.subr.bf16.mxu0 0
      %1669 = vmatpush1.bf16.msra.mxu0 0
      %1670 = vmatprep.mubr.bf16.mxu0 0
      %1671 = vmatmul.mubr.bf16.gmra.mrb[0].mxu0 %v1593
      %v1672 = vpop.f32.mrb[0].mxu0
      %v1673 = vadd.f32 %v1579, %v1672
      %v1674 = vpop.f32.mrb[0].mxu0
      %v1675 = vadd.f32 %v1579, %v1674
      %v1676 = vpop.f32.mrb[0].mxu0
      %v1677 = vadd.f32 %v1584, %v1676
      %v1678 = vpop.f32.mrb[0].mxu0
      %v1679 = vadd.f32 %v1584, %v1678
      %1680 = vdwg.mxu0
      %1681 = vmatprep.subr.bf16.mxu0 %v1555
      %1682 = vmatpush1.bf16.msra.mxu0 %v1554
      %1683 = vmatprep.subr.bf16.mxu0 %v1567
      %1684 = vmatpush1.bf16.msra.mxu0 %v1566
      %1685 = vmatprep.subr.bf16.mxu0 0
      %1686 = vmatpush1.bf16.msra.mxu0 0
      %1687 = vmatprep.subr.bf16.mxu0 0
      %1688 = vmatpush1.bf16.msra.mxu0 0
      %1689 = vmatprep.subr.bf16.mxu0 0
      %1690 = vmatpush1.bf16.msra.mxu0 0
      %1691 = vmatprep.subr.bf16.mxu0 0
      %1692 = vmatpush1.bf16.msra.mxu0 0
      %1693 = vmatprep.subr.bf16.mxu0 0
      %1694 = vmatpush1.bf16.msra.mxu0 0
      %1695 = vmatprep.subr.bf16.mxu0 0
      %1696 = vmatpush1.bf16.msra.mxu0 0
      %1697 = vmatprep.subr.bf16.mxu0 0
      %1698 = vmatpush1.bf16.msra.mxu0 0
      %1699 = vmatprep.subr.bf16.mxu0 0
      %1700 = vmatpush1.bf16.msra.mxu0 0
      %1701 = vmatprep.subr.bf16.mxu0 0
      %1702 = vmatpush1.bf16.msra.mxu0 0
      %1703 = vmatprep.subr.bf16.mxu0 0
      %1704 = vmatpush1.bf16.msra.mxu0 0
      %1705 = vmatprep.subr.bf16.mxu0 0
      %1706 = vmatpush1.bf16.msra.mxu0 0
      %1707 = vmatprep.subr.bf16.mxu0 0
      %1708 = vmatpush1.bf16.msra.mxu0 0
      %1709 = vmatprep.subr.bf16.mxu0 0
      %1710 = vmatpush1.bf16.msra.mxu0 0
      %1711 = vmatprep.subr.bf16.mxu0 0
      %1712 = vmatpush1.bf16.msra.mxu0 0
      %1713 = vmatprep.mubr.bf16.mxu0 0
      %1714 = vmatmul.mubr.bf16.gmra.mrb[0].mxu0 %v1593
      %v1715 = vpop.f32.mrb[0].mxu0
      %v1716 = vadd.f32 %v1579, %v1715
      %v1717 = vpop.f32.mrb[0].mxu0
      %v1718 = vadd.f32 %v1579, %v1717
      %v1719 = vpop.f32.mrb[0].mxu0
      %v1720 = vadd.f32 %v1584, %v1719
      %v1721 = vpop.f32.mrb[0].mxu0
      %v1722 = vadd.f32 %v1584, %v1721
      %1723 = vdwg.mxu0
      %1724 = vmatprep.subr.bf16.mxu0 %v1557
      %1725 = vmatpush1.bf16.msra.mxu0 %v1556
      %1726 = vmatprep.subr.bf16.mxu0 %v1569
      %1727 = vmatpush1.bf16.msra.mxu0 %v1568
      %1728 = vmatprep.subr.bf16.mxu0 0
      %1729 = vmatpush1.bf16.msra.mxu0 0
      %1730 = vmatprep.subr.bf16.mxu0 0
      %1731 = vmatpush1.bf16.msra.mxu0 0
      %1732 = vmatprep.subr.bf16.mxu0 0
      %1733 = vmatpush1.bf16.msra.mxu0 0
      %1734 = vmatprep.subr.bf16.mxu0 0
      %1735 = vmatpush1.bf16.msra.mxu0 0
      %1736 = vmatprep.subr.bf16.mxu0 0
      %1737 = vmatpush1.bf16.msra.mxu0 0
      %1738 = vmatprep.subr.bf16.mxu0 0
      %1739 = vmatpush1.bf16.msra.mxu0 0
      %1740 = vmatprep.subr.bf16.mxu0 0
      %1741 = vmatpush1.bf16.msra.mxu0 0
      %1742 = vmatprep.subr.bf16.mxu0 0
      %1743 = vmatpush1.bf16.msra.mxu0 0
      %1744 = vmatprep.subr.bf16.mxu0 0
      %1745 = vmatpush1.bf16.msra.mxu0 0
      %1746 = vmatprep.subr.bf16.mxu0 0
      %1747 = vmatpush1.bf16.msra.mxu0 0
      %1748 = vmatprep.subr.bf16.mxu0 0
      %1749 = vmatpush1.bf16.msra.mxu0 0
      %1750 = vmatprep.subr.bf16.mxu0 0
      %1751 = vmatpush1.bf16.msra.mxu0 0
      %1752 = vmatprep.subr.bf16.mxu0 0
      %1753 = vmatpush1.bf16.msra.mxu0 0
      %1754 = vmatprep.subr.bf16.mxu0 0
      %1755 = vmatpush1.bf16.msra.mxu0 0
      %1756 = vmatprep.mubr.bf16.mxu0 0
      %1757 = vmatmul.mubr.bf16.gmra.mrb[0].mxu0 %v1593
      %v1758 = vpop.f32.mrb[0].mxu0
      %v1759 = vadd.f32 %v1579, %v1758
      %v1760 = vpop.f32.mrb[0].mxu0
      %v1761 = vadd.f32 %v1579, %v1760
      %v1762 = vpop.f32.mrb[0].mxu0
      %v1763 = vadd.f32 %v1584, %v1762
      %v1764 = vpop.f32.mrb[0].mxu0
      %v1765 = vadd.f32 %v1584, %v1764
      %1766 = vdwg.mxu0
      %1767 = vmatprep.subr.bf16.mxu0 %v1559
      %1768 = vmatpush1.bf16.msra.mxu0 %v1558
      %1769 = vmatprep.subr.bf16.mxu0 %v1571
      %1770 = vmatpush1.bf16.msra.mxu0 %v1570
      %1771 = vmatprep.subr.bf16.mxu0 0
      %1772 = vmatpush1.bf16.msra.mxu0 0
      %1773 = vmatprep.subr.bf16.mxu0 0
      %1774 = vmatpush1.bf16.msra.mxu0 0
      %1775 = vmatprep.subr.bf16.mxu0 0
      %1776 = vmatpush1.bf16.msra.mxu0 0
      %1777 = vmatprep.subr.bf16.mxu0 0
      %1778 = vmatpush1.bf16.msra.mxu0 0
      %1779 = vmatprep.subr.bf16.mxu0 0
      %1780 = vmatpush1.bf16.msra.mxu0 0
      %1781 = vmatprep.subr.bf16.mxu0 0
      %1782 = vmatpush1.bf16.msra.mxu0 0
      %1783 = vmatprep.subr.bf16.mxu0 0
      %1784 = vmatpush1.bf16.msra.mxu0 0
      %1785 = vmatprep.subr.bf16.mxu0 0
      %1786 = vmatpush1.bf16.msra.mxu0 0
      %1787 = vmatprep.subr.bf16.mxu0 0
      %1788 = vmatpush1.bf16.msra.mxu0 0
      %1789 = vmatprep.subr.bf16.mxu0 0
      %1790 = vmatpush1.bf16.msra.mxu0 0
      %1791 = vmatprep.subr.bf16.mxu0 0
      %1792 = vmatpush1.bf16.msra.mxu0 0
      %1793 = vmatprep.subr.bf16.mxu0 0
      %1794 = vmatpush1.bf16.msra.mxu0 0
      %1795 = vmatprep.subr.bf16.mxu0 0
      %1796 = vmatpush1.bf16.msra.mxu0 0
      %1797 = vmatprep.subr.bf16.mxu0 0
      %1798 = vmatpush1.bf16.msra.mxu0 0
      %1799 = vmatprep.mubr.bf16.mxu0 0
      %1800 = vmatmul.mubr.bf16.gmra.mrb[0].mxu0 %v1593
      %v1801 = vpop.f32.mrb[0].mxu0
      %v1802 = vadd.f32 %v1579, %v1801
      %v1803 = vpop.f32.mrb[0].mxu0
      %v1804 = vadd.f32 %v1579, %v1803
      %v1805 = vpop.f32.mrb[0].mxu0
      %v1806 = vadd.f32 %v1584, %v1805
      %v1807 = vpop.f32.mrb[0].mxu0
      %v1808 = vadd.f32 %v1584, %v1807
      %1809 = vdwg.mxu0
      %1810 = vmatprep.subr.bf16.mxu0 %v1561
      %1811 = vmatpush1.bf16.msra.mxu0 %v1560
      %1812 = vmatprep.subr.bf16.mxu0 %v1573
      %1813 = vmatpush1.bf16.msra.mxu0 %v1572
      %1814 = vmatprep.subr.bf16.mxu0 0
      %1815 = vmatpush1.bf16.msra.mxu0 0
      %1816 = vmatprep.subr.bf16.mxu0 0
      %1817 = vmatpush1.bf16.msra.mxu0 0
      %1818 = vmatprep.subr.bf16.mxu0 0
      %1819 = vmatpush1.bf16.msra.mxu0 0
      %1820 = vmatprep.subr.bf16.mxu0 0
      %1821 = vmatpush1.bf16.msra.mxu0 0
      %1822 = vmatprep.subr.bf16.mxu0 0
      %1823 = vmatpush1.bf16.msra.mxu0 0
      %1824 = vmatprep.subr.bf16.mxu0 0
      %1825 = vmatpush1.bf16.msra.mxu0 0
      %1826 = vmatprep.subr.bf16.mxu0 0
      %1827 = vmatpush1.bf16.msra.mxu0 0
      %1828 = vmatprep.subr.bf16.mxu0 0
      %1829 = vmatpush1.bf16.msra.mxu0 0
      %1830 = vmatprep.subr.bf16.mxu0 0
      %1831 = vmatpush1.bf16.msra.mxu0 0
      %1832 = vmatprep.subr.bf16.mxu0 0
      %1833 = vmatpush1.bf16.msra.mxu0 0
      %1834 = vmatprep.subr.bf16.mxu0 0
      %1835 = vmatpush1.bf16.msra.mxu0 0
      %1836 = vmatprep.subr.bf16.mxu0 0
      %1837 = vmatpush1.bf16.msra.mxu0 0
      %1838 = vmatprep.subr.bf16.mxu0 0
      %1839 = vmatpush1.bf16.msra.mxu0 0
      %1840 = vmatprep.subr.bf16.mxu0 0
      %1841 = vmatpush1.bf16.msra.mxu0 0
      %1842 = vmatprep.mubr.bf16.mxu0 0
      %1843 = vmatmul.mubr.bf16.gmra.mrb[0].mxu0 %v1593
      %v1844 = vpop.f32.mrb[0].mxu0
      %v1845 = vadd.f32 %v1579, %v1844
      %v1846 = vpop.f32.mrb[0].mxu0
      %v1847 = vadd.f32 %v1579, %v1846
      %v1848 = vpop.f32.mrb[0].mxu0
      %v1849 = vadd.f32 %v1584, %v1848
      %v1850 = vpop.f32.mrb[0].mxu0
      %v1851 = vadd.f32 %v1584, %v1850
      %1852 = vdwg.mxu0
      %v1853 = vmax.f32 %v1630, 0.0
      %v1854 = vmax.f32 %v1632, 0.0
      %v1855 = vmax.f32 %v1673, 0.0
      %v1856 = vmax.f32 %v1675, 0.0
      %v1857 = vmax.f32 %v1716, 0.0
      %v1858 = vmax.f32 %v1718, 0.0
      %v1859 = vmax.f32 %v1759, 0.0
      %v1860 = vmax.f32 %v1761, 0.0
      %v1861 = vmax.f32 %v1802, 0.0
      %v1862 = vmax.f32 %v1804, 0.0
      %v1863 = vmax.f32 %v1845, 0.0
      %v1864 = vmax.f32 %v1847, 0.0
      %v1865 = vmax.f32 %v1634, 0.0
      %v1866 = vmax.f32 %v1636, 0.0
      %v1867 = vmax.f32 %v1677, 0.0
      %v1868 = vmax.f32 %v1679, 0.0
      %v1869 = vmax.f32 %v1720, 0.0
      %v1870 = vmax.f32 %v1722, 0.0
      %v1871 = vmax.f32 %v1763, 0.0
      %v1872 = vmax.f32 %v1765, 0.0
      %v1873 = vmax.f32 %v1806, 0.0
      %v1874 = vmax.f32 %v1808, 0.0
      %v1875 = vmax.f32 %v1849, 0.0
      %v1876 = vmax.f32 %v1851, 0.0
      %v1877 = vld [vmem:[%s3] sm:$0xff]
      %v1878 = vld [vmem:[%s3 + $0x8] sm:$0xff]
      %v1879 = vld [vmem:[%s3 + $0x10] sm:$0xff]
      %v1880 = vld [vmem:[%s3 + $0x18] sm:$0xff]
      %v1881 = vld [vmem:[%s3 + $0x20] sm:$0xff]
      %v1882 = vld [vmem:[%s3 + $0x28] sm:$0xff]
      %v1883 = vld [vmem:[%s3 + $0x30] sm:$0xff]
      %v1884 = vld [vmem:[%s3 + $0x38] sm:$0xff]
      %v1885 = vld [vmem:[%s3 + $0x40] sm:$0xff]
      %v1886 = vld [vmem:[%s3 + $0x48] sm:$0xff]
      %v1887 = vld [vmem:[%s3 + $0x50] sm:$0xff]
      %v1888 = vld [vmem:[%s3 + $0x58] sm:$0xff]
      %v1889 = vld [vmem:[%s3 + $0x60] sm:$0xff]
      %v1890 = vld [vmem:[%s3 + $0x68] sm:$0xff]
      %v1891 = vld [vmem:[%s3 + $0x70] sm:$0xff]
      %v1892 = vld [vmem:[%s3 + $0x78] sm:$0xff]
      %v1893 = vld [vmem:[%s3 + $0x80] sm:$0xff]
      %v1894 = vld [vmem:[%s3 + $0x88] sm:$0xff]
      %v1895 = vld [vmem:[%s3 + $0x90] sm:$0xff]
      %v1896 = vld [vmem:[%s3 + $0x98] sm:$0xff]
      %v1897 = vld [vmem:[%s3 + $0xa0] sm:$0xff]
      %v1898 = vld [vmem:[%s3 + $0xa8] sm:$0xff]
      %v1899 = vld [vmem:[%s3 + $0xb0] sm:$0xff]
      %v1900 = vld [vmem:[%s3 + $0xb8] sm:$0xff]
      %v1901 = vld [vmem:[%s3 + $0xc0] sm:$0xff]
      %v1902 = vld [vmem:[%s3 + $0xc8] sm:$0xff]
      %v1903 = vld [vmem:[%s3 + $0xd0] sm:$0xff]
      %v1904 = vld [vmem:[%s3 + $0xd8] sm:$0xff]
      %v1905 = vld [vmem:[%s3 + $0xe0] sm:$0xff]
      %v1906 = vld [vmem:[%s3 + $0xe8] sm:$0xff]
      %v1907 = vld [vmem:[%s3 + $0xf0] sm:$0xff]
      %v1908 = vld [vmem:[%s3 + $0xf8] sm:$0xff]
      %v1909 = vld [vmem:[%s3 + $0x100] sm:$0xff]
      %v1910 = vld [vmem:[%s3 + $0x108] sm:$0xff]
      %v1911 = vld [vmem:[%s3 + $0x110] sm:$0xff]
      %v1912 = vld [vmem:[%s3 + $0x118] sm:$0xff]
      %v1913 = vld [vmem:[%s3 + $0x120] sm:$0xff]
      %v1914 = vld [vmem:[%s3 + $0x128] sm:$0xff]
      %v1915 = vld [vmem:[%s3 + $0x130] sm:$0xff]
      %v1916 = vld [vmem:[%s3 + $0x138] sm:$0xff]
      %v1917 = vld [vmem:[%s3 + $0x140] sm:$0xff]
      %v1918 = vld [vmem:[%s3 + $0x148] sm:$0xff]
      %v1919 = vld [vmem:[%s3 + $0x150] sm:$0xff]
      %v1920 = vld [vmem:[%s3 + $0x158] sm:$0xff]
      %v1921 = vld [vmem:[%s3 + $0x160] sm:$0xff]
      %v1922 = vld [vmem:[%s3 + $0x168] sm:$0xff]
      %v1923 = vld [vmem:[%s3 + $0x170] sm:$0xff]
      %v1924 = vld [vmem:[%s3 + $0x178] sm:$0xff]
      %v1925 = vld [vmem:[%s3 + $0x180] sm:$0xff]
      %v1926 = vld [vmem:[%s3 + $0x188] sm:$0xff]
      %v1927 = vld [vmem:[%s3 + $0x190] sm:$0xff]
      %v1928 = vld [vmem:[%s3 + $0x198] sm:$0xff]
      %v1929 = vld [vmem:[%s3 + $0x1a0] sm:$0xff]
      %v1930 = vld [vmem:[%s3 + $0x1a8] sm:$0xff]
      %v1931 = vld [vmem:[%s3 + $0x1b0] sm:$0xff]
      %v1932 = vld [vmem:[%s3 + $0x1b8] sm:$0xff]
      %v1933 = vld [vmem:[%s3 + $0x1c0] sm:$0xff]
      %v1934 = vld [vmem:[%s3 + $0x1c8] sm:$0xff]
      %v1935 = vld [vmem:[%s3 + $0x1d0] sm:$0xff]
      %v1936 = vld [vmem:[%s3 + $0x1d8] sm:$0xff]
      %v1937 = vld [vmem:[%s3 + $0x1e0] sm:$0xff]
      %v1938 = vld [vmem:[%s3 + $0x1e8] sm:$0xff]
      %v1939 = vld [vmem:[%s3 + $0x1f0] sm:$0xff]
      %v1940 = vld [vmem:[%s3 + $0x1f8] sm:$0xff]
      %v1941 = vld [vmem:[%s3 + $0x200] sm:$0xff]
      %v1942 = vld [vmem:[%s3 + $0x208] sm:$0xff]
      %v1943 = vld [vmem:[%s3 + $0x210] sm:$0xff]
      %v1944 = vld [vmem:[%s3 + $0x218] sm:$0xff]
      %v1945 = vld [vmem:[%s3 + $0x220] sm:$0xff]
      %v1946 = vld [vmem:[%s3 + $0x228] sm:$0xff]
      %v1947 = vld [vmem:[%s3 + $0x230] sm:$0xff]
      %v1948 = vld [vmem:[%s3 + $0x238] sm:$0xff]
      %v1949 = vld [vmem:[%s3 + $0x240] sm:$0xff]
      %v1950 = vld [vmem:[%s3 + $0x248] sm:$0xff]
      %v1951 = vld [vmem:[%s3 + $0x250] sm:$0xff]
      %v1952 = vld [vmem:[%s3 + $0x258] sm:$0xff]
      %v1953 = vld [vmem:[%s3 + $0x260] sm:$0xff]
      %v1954 = vld [vmem:[%s3 + $0x268] sm:$0xff]
      %v1955 = vld [vmem:[%s3 + $0x270] sm:$0xff]
      %v1956 = vld [vmem:[%s3 + $0x278] sm:$0xff]
      %v1957 = vld [vmem:[%s3 + $0x280] sm:$0xff]
      %v1958 = vld [vmem:[%s3 + $0x288] sm:$0xff]
      %v1959 = vld [vmem:[%s3 + $0x290] sm:$0xff]
      %v1960 = vld [vmem:[%s3 + $0x298] sm:$0xff]
      %v1961 = vld [vmem:[%s3 + $0x2a0] sm:$0xff]
      %v1962 = vld [vmem:[%s3 + $0x2a8] sm:$0xff]
      %v1963 = vld [vmem:[%s3 + $0x2b0] sm:$0xff]
      %v1964 = vld [vmem:[%s3 + $0x2b8] sm:$0xff]
      %v1965 = vld [vmem:[%s3 + $0x2c0] sm:$0xff]
      %v1966 = vld [vmem:[%s3 + $0x2c8] sm:$0xff]
      %v1967 = vld [vmem:[%s3 + $0x2d0] sm:$0xff]
      %v1968 = vld [vmem:[%s3 + $0x2d8] sm:$0xff]
      %v1969 = vld [vmem:[%s3 + $0x2e0] sm:$0xff]
      %v1970 = vld [vmem:[%s3 + $0x2e8] sm:$0xff]
      %v1971 = vld [vmem:[%s3 + $0x2f0] sm:$0xff]
      %v1972 = vld [vmem:[%s3 + $0x2f8] sm:$0xff]
      %v1973 = vld [vmem:[%s3 + $0x300] sm:$0xff]
      %v1974 = vld [vmem:[%s3 + $0x308] sm:$0xff]
      %v1975 = vld [vmem:[%s3 + $0x310] sm:$0xff]
      %v1976 = vld [vmem:[%s3 + $0x318] sm:$0xff]
      %v1977 = vld [vmem:[%s3 + $0x320] sm:$0xff]
      %v1978 = vld [vmem:[%s3 + $0x328] sm:$0xff]
      %v1979 = vld [vmem:[%s3 + $0x330] sm:$0xff]
      %v1980 = vld [vmem:[%s3 + $0x338] sm:$0xff]
      %v1981 = vld [vmem:[%s3 + $0x340] sm:$0xff]
      %v1982 = vld [vmem:[%s3 + $0x348] sm:$0xff]
      %v1983 = vld [vmem:[%s3 + $0x350] sm:$0xff]
      %v1984 = vld [vmem:[%s3 + $0x358] sm:$0xff]
      %v1985 = vld [vmem:[%s3 + $0x360] sm:$0xff]
      %v1986 = vld [vmem:[%s3 + $0x368] sm:$0xff]
      %v1987 = vld [vmem:[%s3 + $0x370] sm:$0xff]
      %v1988 = vld [vmem:[%s3 + $0x378] sm:$0xff]
      %v1989 = vld [vmem:[%s3 + $0x380] sm:$0xff]
      %v1990 = vld [vmem:[%s3 + $0x388] sm:$0xff]
      %v1991 = vld [vmem:[%s3 + $0x390] sm:$0xff]
      %v1992 = vld [vmem:[%s3 + $0x398] sm:$0xff]
      %v1993 = vld [vmem:[%s3 + $0x3a0] sm:$0xff]
      %v1994 = vld [vmem:[%s3 + $0x3a8] sm:$0xff]
      %v1995 = vld [vmem:[%s3 + $0x3b0] sm:$0xff]
      %v1996 = vld [vmem:[%s3 + $0x3b8] sm:$0xff]
      %v1997 = vld [vmem:[%s3 + $0x3c0] sm:$0xff]
      %v1998 = vld [vmem:[%s3 + $0x3c8] sm:$0xff]
      %v1999 = vld [vmem:[%s3 + $0x3d0] sm:$0xff]
      %v2000 = vld [vmem:[%s3 + $0x3d8] sm:$0xff]
      %v2001 = vld [vmem:[%s3 + $0x3e0] sm:$0xff]
      %v2002 = vld [vmem:[%s3 + $0x3e8] sm:$0xff]
      %v2003 = vld [vmem:[%s3 + $0x3f0] sm:$0xff]
      %v2004 = vld [vmem:[%s3 + $0x3f8] sm:$0xff]
      %v2005 = vld [vmem:[%s3 + $0x400] sm:$0xff]
      %v2006 = vld [vmem:[%s3 + $0x408] sm:$0xff]
      %v2007 = vld [vmem:[%s3 + $0x410] sm:$0xff]
      %v2008 = vld [vmem:[%s3 + $0x418] sm:$0xff]
      %v2009 = vld [vmem:[%s3 + $0x420] sm:$0xff]
      %v2010 = vld [vmem:[%s3 + $0x428] sm:$0xff]
      %v2011 = vld [vmem:[%s3 + $0x430] sm:$0xff]
      %v2012 = vld [vmem:[%s3 + $0x438] sm:$0xff]
      %v2013 = vld [vmem:[%s3 + $0x440] sm:$0xff]
      %v2014 = vld [vmem:[%s3 + $0x448] sm:$0xff]
      %v2015 = vld [vmem:[%s3 + $0x450] sm:$0xff]
      %v2016 = vld [vmem:[%s3 + $0x458] sm:$0xff]
      %v2017 = vld [vmem:[%s3 + $0x460] sm:$0xff]
      %v2018 = vld [vmem:[%s3 + $0x468] sm:$0xff]
      %v2019 = vld [vmem:[%s3 + $0x470] sm:$0xff]
      %v2020 = vld [vmem:[%s3 + $0x478] sm:$0xff]
      %v2021 = vld [vmem:[%s3 + $0x480] sm:$0xff]
      %v2022 = vld [vmem:[%s3 + $0x488] sm:$0xff]
      %v2023 = vld [vmem:[%s3 + $0x490] sm:$0xff]
      %v2024 = vld [vmem:[%s3 + $0x498] sm:$0xff]
      %v2025 = vld [vmem:[%s3 + $0x4a0] sm:$0xff]
      %v2026 = vld [vmem:[%s3 + $0x4a8] sm:$0xff]
      %v2027 = vld [vmem:[%s3 + $0x4b0] sm:$0xff]
      %v2028 = vld [vmem:[%s3 + $0x4b8] sm:$0xff]
      %v2029 = vld [vmem:[%s3 + $0x4c0] sm:$0xff]
      %v2030 = vld [vmem:[%s3 + $0x4c8] sm:$0xff]
      %v2031 = vld [vmem:[%s3 + $0x4d0] sm:$0xff]
      %v2032 = vld [vmem:[%s3 + $0x4d8] sm:$0xff]
      %v2033 = vld [vmem:[%s3 + $0x4e0] sm:$0xff]
      %v2034 = vld [vmem:[%s3 + $0x4e8] sm:$0xff]
      %v2035 = vld [vmem:[%s3 + $0x4f0] sm:$0xff]
      %v2036 = vld [vmem:[%s3 + $0x4f8] sm:$0xff]
      %v2037 = vld [vmem:[%s3 + $0x500] sm:$0xff]
      %v2038 = vld [vmem:[%s3 + $0x508] sm:$0xff]
      %v2039 = vld [vmem:[%s3 + $0x510] sm:$0xff]
      %v2040 = vld [vmem:[%s3 + $0x518] sm:$0xff]
      %v2041 = vld [vmem:[%s3 + $0x520] sm:$0xff]
      %v2042 = vld [vmem:[%s3 + $0x528] sm:$0xff]
      %v2043 = vld [vmem:[%s3 + $0x530] sm:$0xff]
      %v2044 = vld [vmem:[%s3 + $0x538] sm:$0xff]
      %v2045 = vld [vmem:[%s3 + $0x540] sm:$0xff]
      %v2046 = vld [vmem:[%s3 + $0x548] sm:$0xff]
      %v2047 = vld [vmem:[%s3 + $0x550] sm:$0xff]
      %v2048 = vld [vmem:[%s3 + $0x558] sm:$0xff]
      %v2049 = vld [vmem:[%s3 + $0x560] sm:$0xff]
      %v2050 = vld [vmem:[%s3 + $0x568] sm:$0xff]
      %v2051 = vld [vmem:[%s3 + $0x570] sm:$0xff]
      %v2052 = vld [vmem:[%s3 + $0x578] sm:$0xff]
      %v2053 = vld [vmem:[%s3 + $0x580] sm:$0xff]
      %v2054 = vld [vmem:[%s3 + $0x588] sm:$0xff]
      %v2055 = vld [vmem:[%s3 + $0x590] sm:$0xff]
      %v2056 = vld [vmem:[%s3 + $0x598] sm:$0xff]
      %v2057 = vld [vmem:[%s3 + $0x5a0] sm:$0xff]
      %v2058 = vld [vmem:[%s3 + $0x5a8] sm:$0xff]
      %v2059 = vld [vmem:[%s3 + $0x5b0] sm:$0xff]
      %v2060 = vld [vmem:[%s3 + $0x5b8] sm:$0xff]
      %v2061 = vld [vmem:[%s3 + $0x5c0] sm:$0xff]
      %v2062 = vld [vmem:[%s3 + $0x5c8] sm:$0xff]
      %v2063 = vld [vmem:[%s3 + $0x5d0] sm:$0xff]
      %v2064 = vld [vmem:[%s3 + $0x5d8] sm:$0xff]
      %v2065 = vld [vmem:[%s3 + $0x5e0] sm:$0xff]
      %v2066 = vld [vmem:[%s3 + $0x5e8] sm:$0xff]
      %v2067 = vld [vmem:[%s3 + $0x5f0] sm:$0xff]
      %v2068 = vld [vmem:[%s3 + $0x5f8] sm:$0xff]
      %2069 = vmatprep.subr.mxu0 0.0
      %2070 = vmatpush1.msra.mxu0 %v1877
      %2071 = vmatprep.subr.mxu0 0.0
      %2072 = vmatpush1.msra.mxu0 %v1878
      %2073 = vmatprep.subr.mxu0 0.0
      %2074 = vmatpush1.msra.mxu0 %v1879
      %2075 = vmatprep.subr.mxu0 0.0
      %2076 = vmatpush1.msra.mxu0 %v1880
      %2077 = vmatprep.subr.mxu0 0.0
      %2078 = vmatpush1.msra.mxu0 %v1881
      %2079 = vmatprep.subr.mxu0 0.0
      %2080 = vmatpush1.msra.mxu0 %v1882
      %2081 = vmatprep.subr.mxu0 0.0
      %2082 = vmatpush1.msra.mxu0 %v1883
      %2083 = vmatprep.subr.mxu0 0.0
      %2084 = vmatpush1.msra.mxu0 %v1884
      %2085 = vmatprep.subr.mxu0 0.0
      %2086 = vmatpush1.msra.mxu0 %v1885
      %2087 = vmatprep.subr.mxu0 0.0
      %2088 = vmatpush1.msra.mxu0 %v1886
      %2089 = vmatprep.subr.mxu0 0.0
      %2090 = vmatpush1.msra.mxu0 %v1887
      %2091 = vmatprep.subr.mxu0 0.0
      %2092 = vmatpush1.msra.mxu0 %v1888
      %2093 = vmatprep.subr.mxu0 0.0
      %2094 = vmatpush1.msra.mxu0 %v1889
      %2095 = vmatprep.subr.mxu0 0.0
      %2096 = vmatpush1.msra.mxu0 %v1890
      %2097 = vmatprep.subr.mxu0 0.0
      %2098 = vmatpush1.msra.mxu0 %v1891
      %2099 = vmatprep.subr.mxu0 0.0
      %2100 = vmatpush1.msra.mxu0 %v1892
      %2101 = vmatprep.subr.mxu0 0.0
      %2102 = vmatpush1.msra.mxu0 %v1893
      %2103 = vmatprep.subr.mxu0 0.0
      %2104 = vmatpush1.msra.mxu0 %v1894
      %2105 = vmatprep.subr.mxu0 0.0
      %2106 = vmatpush1.msra.mxu0 %v1895
      %2107 = vmatprep.subr.mxu0 0.0
      %2108 = vmatpush1.msra.mxu0 %v1896
      %2109 = vmatprep.subr.mxu0 0.0
      %2110 = vmatpush1.msra.mxu0 %v1897
      %2111 = vmatprep.subr.mxu0 0.0
      %2112 = vmatpush1.msra.mxu0 %v1898
      %2113 = vmatprep.subr.mxu0 0.0
      %2114 = vmatpush1.msra.mxu0 %v1899
      %2115 = vmatprep.subr.mxu0 0.0
      %2116 = vmatpush1.msra.mxu0 %v1900
      %2117 = vmatprep.subr.mxu0 0.0
      %2118 = vmatpush1.msra.mxu0 %v1901
      %2119 = vmatprep.subr.mxu0 0.0
      %2120 = vmatpush1.msra.mxu0 %v1902
      %2121 = vmatprep.subr.mxu0 0.0
      %2122 = vmatpush1.msra.mxu0 %v1903
      %2123 = vmatprep.subr.mxu0 0.0
      %2124 = vmatpush1.msra.mxu0 %v1904
      %2125 = vmatprep.subr.mxu0 0.0
      %2126 = vmatpush1.msra.mxu0 %v1905
      %2127 = vmatprep.subr.mxu0 0.0
      %2128 = vmatpush1.msra.mxu0 %v1906
      %2129 = vmatprep.subr.mxu0 0.0
      %2130 = vmatpush1.msra.mxu0 %v1907
      %2131 = vmatprep.subr.mxu0 0.0
      %2132 = vmatpush1.msra.mxu0 %v1908
      %2133 = vmatprep.mubr.f32.mxu0 %v1854
      %2134 = vmatmul.mubr.f32.gmra.mrb[0].mxu0 %v1853
      %v2135 = vpop.f32.mrb[0].mxu0
      %v2136 = vadd.f32 0.0, %v2135
      %v2137 = vpop.f32.mrb[0].mxu0
      %2138 = vmatprep.mubr.f32.mxu0 %v1866
      %2139 = vmatmul.mubr.f32.gmra.mrb[0].mxu0 %v1865
      %v2140 = vpop.f32.mrb[0].mxu0
      %v2141 = vadd.f32 0.0, %v2140
      %v2142 = vpop.f32.mrb[0].mxu0
      %2143 = vdwg.mxu0
      %2144 = vmatprep.subr.mxu0 0.0
      %2145 = vmatpush1.msra.mxu0 %v1909
      %2146 = vmatprep.subr.mxu0 0.0
      %2147 = vmatpush1.msra.mxu0 %v1910
      %2148 = vmatprep.subr.mxu0 0.0
      %2149 = vmatpush1.msra.mxu0 %v1911
      %2150 = vmatprep.subr.mxu0 0.0
      %2151 = vmatpush1.msra.mxu0 %v1912
      %2152 = vmatprep.subr.mxu0 0.0
      %2153 = vmatpush1.msra.mxu0 %v1913
      %2154 = vmatprep.subr.mxu0 0.0
      %2155 = vmatpush1.msra.mxu0 %v1914
      %2156 = vmatprep.subr.mxu0 0.0
      %2157 = vmatpush1.msra.mxu0 %v1915
      %2158 = vmatprep.subr.mxu0 0.0
      %2159 = vmatpush1.msra.mxu0 %v1916
      %2160 = vmatprep.subr.mxu0 0.0
      %2161 = vmatpush1.msra.mxu0 %v1917
      %2162 = vmatprep.subr.mxu0 0.0
      %2163 = vmatpush1.msra.mxu0 %v1918
      %2164 = vmatprep.subr.mxu0 0.0
      %2165 = vmatpush1.msra.mxu0 %v1919
      %2166 = vmatprep.subr.mxu0 0.0
      %2167 = vmatpush1.msra.mxu0 %v1920
      %2168 = vmatprep.subr.mxu0 0.0
      %2169 = vmatpush1.msra.mxu0 %v1921
      %2170 = vmatprep.subr.mxu0 0.0
      %2171 = vmatpush1.msra.mxu0 %v1922
      %2172 = vmatprep.subr.mxu0 0.0
      %2173 = vmatpush1.msra.mxu0 %v1923
      %2174 = vmatprep.subr.mxu0 0.0
      %2175 = vmatpush1.msra.mxu0 %v1924
      %2176 = vmatprep.subr.mxu0 0.0
      %2177 = vmatpush1.msra.mxu0 %v1925
      %2178 = vmatprep.subr.mxu0 0.0
      %2179 = vmatpush1.msra.mxu0 %v1926
      %2180 = vmatprep.subr.mxu0 0.0
      %2181 = vmatpush1.msra.mxu0 %v1927
      %2182 = vmatprep.subr.mxu0 0.0
      %2183 = vmatpush1.msra.mxu0 %v1928
      %2184 = vmatprep.subr.mxu0 0.0
      %2185 = vmatpush1.msra.mxu0 %v1929
      %2186 = vmatprep.subr.mxu0 0.0
      %2187 = vmatpush1.msra.mxu0 %v1930
      %2188 = vmatprep.subr.mxu0 0.0
      %2189 = vmatpush1.msra.mxu0 %v1931
      %2190 = vmatprep.subr.mxu0 0.0
      %2191 = vmatpush1.msra.mxu0 %v1932
      %2192 = vmatprep.subr.mxu0 0.0
      %2193 = vmatpush1.msra.mxu0 %v1933
      %2194 = vmatprep.subr.mxu0 0.0
      %2195 = vmatpush1.msra.mxu0 %v1934
      %2196 = vmatprep.subr.mxu0 0.0
      %2197 = vmatpush1.msra.mxu0 %v1935
      %2198 = vmatprep.subr.mxu0 0.0
      %2199 = vmatpush1.msra.mxu0 %v1936
      %2200 = vmatprep.subr.mxu0 0.0
      %2201 = vmatpush1.msra.mxu0 %v1937
      %2202 = vmatprep.subr.mxu0 0.0
      %2203 = vmatpush1.msra.mxu0 %v1938
      %2204 = vmatprep.subr.mxu0 0.0
      %2205 = vmatpush1.msra.mxu0 %v1939
      %2206 = vmatprep.subr.mxu0 0.0
      %2207 = vmatpush1.msra.mxu0 %v1940
      %2208 = vmatprep.mubr.f32.mxu0 %v1856
      %2209 = vmatmul.mubr.f32.gmra.mrb[0].mxu0 %v1855
      %v2210 = vpop.f32.mrb[0].mxu0
      %v2211 = vadd.f32 %v2136, %v2210
      %v2212 = vpop.f32.mrb[0].mxu0
      %2213 = vmatprep.mubr.f32.mxu0 %v1868
      %2214 = vmatmul.mubr.f32.gmra.mrb[0].mxu0 %v1867
      %v2215 = vpop.f32.mrb[0].mxu0
      %v2216 = vadd.f32 %v2141, %v2215
      %v2217 = vpop.f32.mrb[0].mxu0
      %2218 = vdwg.mxu0
      %2219 = vmatprep.subr.mxu0 0.0
      %2220 = vmatpush1.msra.mxu0 %v1941
      %2221 = vmatprep.subr.mxu0 0.0
      %2222 = vmatpush1.msra.mxu0 %v1942
      %2223 = vmatprep.subr.mxu0 0.0
      %2224 = vmatpush1.msra.mxu0 %v1943
      %2225 = vmatprep.subr.mxu0 0.0
      %2226 = vmatpush1.msra.mxu0 %v1944
      %2227 = vmatprep.subr.mxu0 0.0
      %2228 = vmatpush1.msra.mxu0 %v1945
      %2229 = vmatprep.subr.mxu0 0.0
      %2230 = vmatpush1.msra.mxu0 %v1946
      %2231 = vmatprep.subr.mxu0 0.0
      %2232 = vmatpush1.msra.mxu0 %v1947
      %2233 = vmatprep.subr.mxu0 0.0
      %2234 = vmatpush1.msra.mxu0 %v1948
      %2235 = vmatprep.subr.mxu0 0.0
      %2236 = vmatpush1.msra.mxu0 %v1949
      %2237 = vmatprep.subr.mxu0 0.0
      %2238 = vmatpush1.msra.mxu0 %v1950
      %2239 = vmatprep.subr.mxu0 0.0
      %2240 = vmatpush1.msra.mxu0 %v1951
      %2241 = vmatprep.subr.mxu0 0.0
      %2242 = vmatpush1.msra.mxu0 %v1952
      %2243 = vmatprep.subr.mxu0 0.0
      %2244 = vmatpush1.msra.mxu0 %v1953
      %2245 = vmatprep.subr.mxu0 0.0
      %2246 = vmatpush1.msra.mxu0 %v1954
      %2247 = vmatprep.subr.mxu0 0.0
      %2248 = vmatpush1.msra.mxu0 %v1955
      %2249 = vmatprep.subr.mxu0 0.0
      %2250 = vmatpush1.msra.mxu0 %v1956
      %2251 = vmatprep.subr.mxu0 0.0
      %2252 = vmatpush1.msra.mxu0 %v1957
      %2253 = vmatprep.subr.mxu0 0.0
      %2254 = vmatpush1.msra.mxu0 %v1958
      %2255 = vmatprep.subr.mxu0 0.0
      %2256 = vmatpush1.msra.mxu0 %v1959
      %2257 = vmatprep.subr.mxu0 0.0
      %2258 = vmatpush1.msra.mxu0 %v1960
      %2259 = vmatprep.subr.mxu0 0.0
      %2260 = vmatpush1.msra.mxu0 %v1961
      %2261 = vmatprep.subr.mxu0 0.0
      %2262 = vmatpush1.msra.mxu0 %v1962
      %2263 = vmatprep.subr.mxu0 0.0
      %2264 = vmatpush1.msra.mxu0 %v1963
      %2265 = vmatprep.subr.mxu0 0.0
      %2266 = vmatpush1.msra.mxu0 %v1964
      %2267 = vmatprep.subr.mxu0 0.0
      %2268 = vmatpush1.msra.mxu0 %v1965
      %2269 = vmatprep.subr.mxu0 0.0
      %2270 = vmatpush1.msra.mxu0 %v1966
      %2271 = vmatprep.subr.mxu0 0.0
      %2272 = vmatpush1.msra.mxu0 %v1967
      %2273 = vmatprep.subr.mxu0 0.0
      %2274 = vmatpush1.msra.mxu0 %v1968
      %2275 = vmatprep.subr.mxu0 0.0
      %2276 = vmatpush1.msra.mxu0 %v1969
      %2277 = vmatprep.subr.mxu0 0.0
      %2278 = vmatpush1.msra.mxu0 %v1970
      %2279 = vmatprep.subr.mxu0 0.0
      %2280 = vmatpush1.msra.mxu0 %v1971
      %2281 = vmatprep.subr.mxu0 0.0
      %2282 = vmatpush1.msra.mxu0 %v1972
      %2283 = vmatprep.mubr.f32.mxu0 %v1858
      %2284 = vmatmul.mubr.f32.gmra.mrb[0].mxu0 %v1857
      %v2285 = vpop.f32.mrb[0].mxu0
      %v2286 = vadd.f32 %v2211, %v2285
      %v2287 = vpop.f32.mrb[0].mxu0
      %2288 = vmatprep.mubr.f32.mxu0 %v1870
      %2289 = vmatmul.mubr.f32.gmra.mrb[0].mxu0 %v1869
      %v2290 = vpop.f32.mrb[0].mxu0
      %v2291 = vadd.f32 %v2216, %v2290
      %v2292 = vpop.f32.mrb[0].mxu0
      %2293 = vdwg.mxu0
      %2294 = vmatprep.subr.mxu0 0.0
      %2295 = vmatpush1.msra.mxu0 %v1973
      %2296 = vmatprep.subr.mxu0 0.0
      %2297 = vmatpush1.msra.mxu0 %v1974
      %2298 = vmatprep.subr.mxu0 0.0
      %2299 = vmatpush1.msra.mxu0 %v1975
      %2300 = vmatprep.subr.mxu0 0.0
      %2301 = vmatpush1.msra.mxu0 %v1976
      %2302 = vmatprep.subr.mxu0 0.0
      %2303 = vmatpush1.msra.mxu0 %v1977
      %2304 = vmatprep.subr.mxu0 0.0
      %2305 = vmatpush1.msra.mxu0 %v1978
      %2306 = vmatprep.subr.mxu0 0.0
      %2307 = vmatpush1.msra.mxu0 %v1979
      %2308 = vmatprep.subr.mxu0 0.0
      %2309 = vmatpush1.msra.mxu0 %v1980
      %2310 = vmatprep.subr.mxu0 0.0
      %2311 = vmatpush1.msra.mxu0 %v1981
      %2312 = vmatprep.subr.mxu0 0.0
      %2313 = vmatpush1.msra.mxu0 %v1982
      %2314 = vmatprep.subr.mxu0 0.0
      %2315 = vmatpush1.msra.mxu0 %v1983
      %2316 = vmatprep.subr.mxu0 0.0
      %2317 = vmatpush1.msra.mxu0 %v1984
      %2318 = vmatprep.subr.mxu0 0.0
      %2319 = vmatpush1.msra.mxu0 %v1985
      %2320 = vmatprep.subr.mxu0 0.0
      %2321 = vmatpush1.msra.mxu0 %v1986
      %2322 = vmatprep.subr.mxu0 0.0
      %2323 = vmatpush1.msra.mxu0 %v1987
      %2324 = vmatprep.subr.mxu0 0.0
      %2325 = vmatpush1.msra.mxu0 %v1988
      %2326 = vmatprep.subr.mxu0 0.0
      %2327 = vmatpush1.msra.mxu0 %v1989
      %2328 = vmatprep.subr.mxu0 0.0
      %2329 = vmatpush1.msra.mxu0 %v1990
      %2330 = vmatprep.subr.mxu0 0.0
      %2331 = vmatpush1.msra.mxu0 %v1991
      %2332 = vmatprep.subr.mxu0 0.0
      %2333 = vmatpush1.msra.mxu0 %v1992
      %2334 = vmatprep.subr.mxu0 0.0
      %2335 = vmatpush1.msra.mxu0 %v1993
      %2336 = vmatprep.subr.mxu0 0.0
      %2337 = vmatpush1.msra.mxu0 %v1994
      %2338 = vmatprep.subr.mxu0 0.0
      %2339 = vmatpush1.msra.mxu0 %v1995
      %2340 = vmatprep.subr.mxu0 0.0
      %2341 = vmatpush1.msra.mxu0 %v1996
      %2342 = vmatprep.subr.mxu0 0.0
      %2343 = vmatpush1.msra.mxu0 %v1997
      %2344 = vmatprep.subr.mxu0 0.0
      %2345 = vmatpush1.msra.mxu0 %v1998
      %2346 = vmatprep.subr.mxu0 0.0
      %2347 = vmatpush1.msra.mxu0 %v1999
      %2348 = vmatprep.subr.mxu0 0.0
      %2349 = vmatpush1.msra.mxu0 %v2000
      %2350 = vmatprep.subr.mxu0 0.0
      %2351 = vmatpush1.msra.mxu0 %v2001
      %2352 = vmatprep.subr.mxu0 0.0
      %2353 = vmatpush1.msra.mxu0 %v2002
      %2354 = vmatprep.subr.mxu0 0.0
      %2355 = vmatpush1.msra.mxu0 %v2003
      %2356 = vmatprep.subr.mxu0 0.0
      %2357 = vmatpush1.msra.mxu0 %v2004
      %2358 = vmatprep.mubr.f32.mxu0 %v1860
      %2359 = vmatmul.mubr.f32.gmra.mrb[0].mxu0 %v1859
      %v2360 = vpop.f32.mrb[0].mxu0
      %v2361 = vadd.f32 %v2286, %v2360
      %v2362 = vpop.f32.mrb[0].mxu0
      %2363 = vmatprep.mubr.f32.mxu0 %v1872
      %2364 = vmatmul.mubr.f32.gmra.mrb[0].mxu0 %v1871
      %v2365 = vpop.f32.mrb[0].mxu0
      %v2366 = vadd.f32 %v2291, %v2365
      %v2367 = vpop.f32.mrb[0].mxu0
      %2368 = vdwg.mxu0
      %2369 = vmatprep.subr.mxu0 0.0
      %2370 = vmatpush1.msra.mxu0 %v2005
      %2371 = vmatprep.subr.mxu0 0.0
      %2372 = vmatpush1.msra.mxu0 %v2006
      %2373 = vmatprep.subr.mxu0 0.0
      %2374 = vmatpush1.msra.mxu0 %v2007
      %2375 = vmatprep.subr.mxu0 0.0
      %2376 = vmatpush1.msra.mxu0 %v2008
      %2377 = vmatprep.subr.mxu0 0.0
      %2378 = vmatpush1.msra.mxu0 %v2009
      %2379 = vmatprep.subr.mxu0 0.0
      %2380 = vmatpush1.msra.mxu0 %v2010
      %2381 = vmatprep.subr.mxu0 0.0
      %2382 = vmatpush1.msra.mxu0 %v2011
      %2383 = vmatprep.subr.mxu0 0.0
      %2384 = vmatpush1.msra.mxu0 %v2012
      %2385 = vmatprep.subr.mxu0 0.0
      %2386 = vmatpush1.msra.mxu0 %v2013
      %2387 = vmatprep.subr.mxu0 0.0
      %2388 = vmatpush1.msra.mxu0 %v2014
      %2389 = vmatprep.subr.mxu0 0.0
      %2390 = vmatpush1.msra.mxu0 %v2015
      %2391 = vmatprep.subr.mxu0 0.0
      %2392 = vmatpush1.msra.mxu0 %v2016
      %2393 = vmatprep.subr.mxu0 0.0
      %2394 = vmatpush1.msra.mxu0 %v2017
      %2395 = vmatprep.subr.mxu0 0.0
      %2396 = vmatpush1.msra.mxu0 %v2018
      %2397 = vmatprep.subr.mxu0 0.0
      %2398 = vmatpush1.msra.mxu0 %v2019
      %2399 = vmatprep.subr.mxu0 0.0
      %2400 = vmatpush1.msra.mxu0 %v2020
      %2401 = vmatprep.subr.mxu0 0.0
      %2402 = vmatpush1.msra.mxu0 %v2021
      %2403 = vmatprep.subr.mxu0 0.0
      %2404 = vmatpush1.msra.mxu0 %v2022
      %2405 = vmatprep.subr.mxu0 0.0
      %2406 = vmatpush1.msra.mxu0 %v2023
      %2407 = vmatprep.subr.mxu0 0.0
      %2408 = vmatpush1.msra.mxu0 %v2024
      %2409 = vmatprep.subr.mxu0 0.0
      %2410 = vmatpush1.msra.mxu0 %v2025
      %2411 = vmatprep.subr.mxu0 0.0
      %2412 = vmatpush1.msra.mxu0 %v2026
      %2413 = vmatprep.subr.mxu0 0.0
      %2414 = vmatpush1.msra.mxu0 %v2027
      %2415 = vmatprep.subr.mxu0 0.0
      %2416 = vmatpush1.msra.mxu0 %v2028
      %2417 = vmatprep.subr.mxu0 0.0
      %2418 = vmatpush1.msra.mxu0 %v2029
      %2419 = vmatprep.subr.mxu0 0.0
      %2420 = vmatpush1.msra.mxu0 %v2030
      %2421 = vmatprep.subr.mxu0 0.0
      %2422 = vmatpush1.msra.mxu0 %v2031
      %2423 = vmatprep.subr.mxu0 0.0
      %2424 = vmatpush1.msra.mxu0 %v2032
      %2425 = vmatprep.subr.mxu0 0.0
      %2426 = vmatpush1.msra.mxu0 %v2033
      %2427 = vmatprep.subr.mxu0 0.0
      %2428 = vmatpush1.msra.mxu0 %v2034
      %2429 = vmatprep.subr.mxu0 0.0
      %2430 = vmatpush1.msra.mxu0 %v2035
      %2431 = vmatprep.subr.mxu0 0.0
      %2432 = vmatpush1.msra.mxu0 %v2036
      %2433 = vmatprep.mubr.f32.mxu0 %v1862
      %2434 = vmatmul.mubr.f32.gmra.mrb[0].mxu0 %v1861
      %v2435 = vpop.f32.mrb[0].mxu0
      %v2436 = vadd.f32 %v2361, %v2435
      %v2437 = vpop.f32.mrb[0].mxu0
      %2438 = vmatprep.mubr.f32.mxu0 %v1874
      %2439 = vmatmul.mubr.f32.gmra.mrb[0].mxu0 %v1873
      %v2440 = vpop.f32.mrb[0].mxu0
      %v2441 = vadd.f32 %v2366, %v2440
      %v2442 = vpop.f32.mrb[0].mxu0
      %2443 = vdwg.mxu0
      %2444 = vmatprep.subr.mxu0 0.0
      %2445 = vmatpush1.msra.mxu0 %v2037
      %2446 = vmatprep.subr.mxu0 0.0
      %2447 = vmatpush1.msra.mxu0 %v2038
      %2448 = vmatprep.subr.mxu0 0.0
      %2449 = vmatpush1.msra.mxu0 %v2039
      %2450 = vmatprep.subr.mxu0 0.0
      %2451 = vmatpush1.msra.mxu0 %v2040
      %2452 = vmatprep.subr.mxu0 0.0
      %2453 = vmatpush1.msra.mxu0 %v2041
      %2454 = vmatprep.subr.mxu0 0.0
      %2455 = vmatpush1.msra.mxu0 %v2042
      %2456 = vmatprep.subr.mxu0 0.0
      %2457 = vmatpush1.msra.mxu0 %v2043
      %2458 = vmatprep.subr.mxu0 0.0
      %2459 = vmatpush1.msra.mxu0 %v2044
      %2460 = vmatprep.subr.mxu0 0.0
      %2461 = vmatpush1.msra.mxu0 %v2045
      %2462 = vmatprep.subr.mxu0 0.0
      %2463 = vmatpush1.msra.mxu0 %v2046
      %2464 = vmatprep.subr.mxu0 0.0
      %2465 = vmatpush1.msra.mxu0 %v2047
      %2466 = vmatprep.subr.mxu0 0.0
      %2467 = vmatpush1.msra.mxu0 %v2048
      %2468 = vmatprep.subr.mxu0 0.0
      %2469 = vmatpush1.msra.mxu0 %v2049
      %2470 = vmatprep.subr.mxu0 0.0
      %2471 = vmatpush1.msra.mxu0 %v2050
      %2472 = vmatprep.subr.mxu0 0.0
      %2473 = vmatpush1.msra.mxu0 %v2051
      %2474 = vmatprep.subr.mxu0 0.0
      %2475 = vmatpush1.msra.mxu0 %v2052
      %2476 = vmatprep.subr.mxu0 0.0
      %2477 = vmatpush1.msra.mxu0 %v2053
      %2478 = vmatprep.subr.mxu0 0.0
      %2479 = vmatpush1.msra.mxu0 %v2054
      %2480 = vmatprep.subr.mxu0 0.0
      %2481 = vmatpush1.msra.mxu0 %v2055
      %2482 = vmatprep.subr.mxu0 0.0
      %2483 = vmatpush1.msra.mxu0 %v2056
      %2484 = vmatprep.subr.mxu0 0.0
      %2485 = vmatpush1.msra.mxu0 %v2057
      %2486 = vmatprep.subr.mxu0 0.0
      %2487 = vmatpush1.msra.mxu0 %v2058
      %2488 = vmatprep.subr.mxu0 0.0
      %2489 = vmatpush1.msra.mxu0 %v2059
      %2490 = vmatprep.subr.mxu0 0.0
      %2491 = vmatpush1.msra.mxu0 %v2060
      %2492 = vmatprep.subr.mxu0 0.0
      %2493 = vmatpush1.msra.mxu0 %v2061
      %2494 = vmatprep.subr.mxu0 0.0
      %2495 = vmatpush1.msra.mxu0 %v2062
      %2496 = vmatprep.subr.mxu0 0.0
      %2497 = vmatpush1.msra.mxu0 %v2063
      %2498 = vmatprep.subr.mxu0 0.0
      %2499 = vmatpush1.msra.mxu0 %v2064
      %2500 = vmatprep.subr.mxu0 0.0
      %2501 = vmatpush1.msra.mxu0 %v2065
      %2502 = vmatprep.subr.mxu0 0.0
      %2503 = vmatpush1.msra.mxu0 %v2066
      %2504 = vmatprep.subr.mxu0 0.0
      %2505 = vmatpush1.msra.mxu0 %v2067
      %2506 = vmatprep.subr.mxu0 0.0
      %2507 = vmatpush1.msra.mxu0 %v2068
      %2508 = vmatprep.mubr.f32.mxu0 %v1864
      %2509 = vmatmul.mubr.f32.gmra.mrb[0].mxu0 %v1863
      %v2510 = vpop.f32.mrb[0].mxu0
      %v2511 = vadd.f32 %v2436, %v2510
      %v2512 = vpop.f32.mrb[0].mxu0
      %2513 = vmatprep.mubr.f32.mxu0 %v1876
      %2514 = vmatmul.mubr.f32.gmra.mrb[0].mxu0 %v1875
      %v2515 = vpop.f32.mrb[0].mxu0
      %v2516 = vadd.f32 %v2441, %v2515
      %v2517 = vpop.f32.mrb[0].mxu0
      %2518 = vdwg.mxu0
      %v2519 = vld [vmem:[%s4] sm:$0xff]
      %v2520 = vld [vmem:[%s4 + $0x8] sm:$0x3]
      %v2521 = vld [vmem:[%s5] sm:$0xff]
      %v2522 = vld [vmem:[%s5 + $0x8] sm:$0x3]
      %2524 = vset.pattern.permute.xlu0 0
      %2525 = vperm.xlu0 %2524, %v2521
      %v2526 = vpop.permute.xlu0 %2525
      %2529 = vset.pattern.permute.xlu0 0
      %2530 = vperm.xlu0 %2529, %v2522
      %v2531 = vpop.permute.xlu0 %2530
      %vm2533 = vcmask 130048
      %v2535 = vsel %vm2533, %v2519, 0
      %v2538 = vsel %vm2533, %v2520, 0
      %2540 = vmatprep.subr.mxu0 0.0
      %2541 = vmatpush1.msra.mxu0 %v2511
      %2542 = vmatprep.subr.mxu0 0.0
      %2543 = vmatpush1.msra.mxu0 %v2516
      %2544 = vmatprep.subr.mxu0 0.0
      %2545 = vmatpush1.msra.mxu0 0.0
      %2546 = vmatprep.subr.mxu0 0.0
      %2547 = vmatpush1.msra.mxu0 0.0
      %2548 = vmatprep.subr.mxu0 0.0
      %2549 = vmatpush1.msra.mxu0 0.0
      %2550 = vmatprep.subr.mxu0 0.0
      %2551 = vmatpush1.msra.mxu0 0.0
      %2552 = vmatprep.subr.mxu0 0.0
      %2553 = vmatpush1.msra.mxu0 0.0
      %2554 = vmatprep.subr.mxu0 0.0
      %2555 = vmatpush1.msra.mxu0 0.0
      %2556 = vmatprep.subr.mxu0 0.0
      %2557 = vmatpush1.msra.mxu0 0.0
      %2558 = vmatprep.subr.mxu0 0.0
      %2559 = vmatpush1.msra.mxu0 0.0
      %2560 = vmatprep.subr.mxu0 0.0
      %2561 = vmatpush1.msra.mxu0 0.0
      %2562 = vmatprep.subr.mxu0 0.0
      %2563 = vmatpush1.msra.mxu0 0.0
      %2564 = vmatprep.subr.mxu0 0.0
      %2565 = vmatpush1.msra.mxu0 0.0
      %2566 = vmatprep.subr.mxu0 0.0
      %2567 = vmatpush1.msra.mxu0 0.0
      %2568 = vmatprep.subr.mxu0 0.0
      %2569 = vmatpush1.msra.mxu0 0.0
      %2570 = vmatprep.subr.mxu0 0.0
      %2571 = vmatpush1.msra.mxu0 0.0
      %2572 = vmatprep.subr.mxu0 0.0
      %2573 = vmatpush1.msra.mxu0 0.0
      %2574 = vmatprep.subr.mxu0 0.0
      %2575 = vmatpush1.msra.mxu0 0.0
      %2576 = vmatprep.subr.mxu0 0.0
      %2577 = vmatpush1.msra.mxu0 0.0
      %2578 = vmatprep.subr.mxu0 0.0
      %2579 = vmatpush1.msra.mxu0 0.0
      %2580 = vmatprep.subr.mxu0 0.0
      %2581 = vmatpush1.msra.mxu0 0.0
      %2582 = vmatprep.subr.mxu0 0.0
      %2583 = vmatpush1.msra.mxu0 0.0
      %2584 = vmatprep.subr.mxu0 0.0
      %2585 = vmatpush1.msra.mxu0 0.0
      %2586 = vmatprep.subr.mxu0 0.0
      %2587 = vmatpush1.msra.mxu0 0.0
      %2588 = vmatprep.subr.mxu0 0.0
      %2589 = vmatpush1.msra.mxu0 0.0
      %2590 = vmatprep.subr.mxu0 0.0
      %2591 = vmatpush1.msra.mxu0 0.0
      %2592 = vmatprep.subr.mxu0 0.0
      %2593 = vmatpush1.msra.mxu0 0.0
      %2594 = vmatprep.subr.mxu0 0.0
      %2595 = vmatpush1.msra.mxu0 0.0
      %2596 = vmatprep.subr.mxu0 0.0
      %2597 = vmatpush1.msra.mxu0 0.0
      %2598 = vmatprep.subr.mxu0 0.0
      %2599 = vmatpush1.msra.mxu0 0.0
      %2600 = vmatprep.subr.mxu0 0.0
      %2601 = vmatpush1.msra.mxu0 0.0
      %2602 = vmatprep.subr.mxu0 0.0
      %2603 = vmatpush1.msra.mxu0 0.0
      %2604 = vmatprep.mubr.f32.mxu0 0.0
      %2605 = vmatmul.mubr.f32.gmra.mrb[0].mxu0 %v2535
      %v2606 = vpop.f32.mrb[0].mxu0
      %v2607 = vadd.f32 %v2526, %v2606
      %v2608 = vpop.f32.mrb[0].mxu0
      %2609 = vmatprep.mubr.f32.mxu0 0.0
      %2610 = vmatmul.mubr.f32.gmra.mrb[0].mxu0 %v2538
      %v2611 = vpop.f32.mrb[0].mxu0
      %v2612 = vadd.f32 %v2531, %v2611
      %v2613 = vpop.f32.mrb[0].mxu0
      %2614 = vdwg.mxu0
      %vm2615 = vcmask 31744
      %2616 = vst.msk [vmem:[%s251] sm:$0xff] %vm2615, %v2607
      %vm2617 = vcmask 25600
      %2618 = vst.msk [vmem:[%s251 + $0x8] sm:$0x3] %vm2617, %v2612
      %p2619 = scmp.lt.s32.totalorder %s17, 1
      %s2620 = scalar_select %p2619, %s17, 1
      %s2621 = smul.addr %s2620, 2
      %s2622 = smul.addr %s2621, 8
      %s2623 = scalar_lea.vmem %s6, %s2622
      // Predicated region
      $region45: #{test_model_forward.1} parent=43 // pred_check
        %p2624 = pneg %p166
      $region46: #{test_model_forward.1} parent=43 // pred_check_branch
        %2626 = sbr.rel (%p2624) target = $region48
      $region47: #{test_model_forward.1} parent=43 // pred_region
        _
      $region48: #{test_model_forward.1} parent=43 // pred_fallthru
        _
    $region44: #{test_model_forward.1} parent=5 // pred_fallthru
      _
    %p2627 = scmp.le.s32.totalorder 2, %s12
    // Predicated region
    $region49: #{test_model_forward.1} parent=5 // pred_check
      %p2628 = pneg %p2627
    $region50: #{test_model_forward.1} parent=5 // pred_check_branch
      %2630 = sbr.rel (%p2628) target = $region52
    $region51: #{test_model_forward.1} parent=5 // pred_region
      %s2631 = ssub.s32 %s12, 2
      // Predicated region
      $region53: #{test_model_forward.1} parent=51 // pred_check
        %p2632 = pneg %p172
      $region54: #{test_model_forward.1} parent=51 // pred_check_branch
        %2634 = sbr.rel (%p2632) target = $region56
      $region55: #{test_model_forward.1} parent=51 // pred_region
        %p2635 = scmp.lt.s32.totalorder %s18, 1
        %s2636 = scalar_select %p2635, %s18, 1
        %s2637 = smul.addr %s2636, 2
        %s2638 = smul.addr %s2637, 8
        %s2639 = scalar_lea.vmem %s6, %s2638
      $region56: #{test_model_forward.1} parent=51 // pred_fallthru
        _
    $region52: #{test_model_forward.1} parent=5 // pred_fallthru
      _
  $region6: #{test_model_forward.1} parent=0 // loop_footer
    %s16 = sadd.s32 1, %s12
  $region7: #{test_model_forward.1} parent=0 // loop_footer_branch
    %11 = sbr.rel target = $region3
  $region8: #{test_model_forward.1} parent=0 // loop_exit
    _

</llo_original>
